<compile_context>
chip_gen: v7x
topology: tpu7x:2x2x1
jax: 0.10.0
libtpu: 0.0.40
codegen_flags: <defaults>
</compile_context>

<pallas_src>
import functools

import numpy as np
import jax
import jax.numpy as jnp
from jax.experimental import pallas as pl
from jax.experimental.pallas import tpu as pltpu

NUM_FLAME_VERTS = 5023


def _crop_kernel(vidx_ref, x_ref, o_ref, *, n_gather):
    # vidx_ref: (n_gather,) int32 in SMEM (scalar-prefetched)
    # x_ref   : (B_t, 5023, C) VMEM block (full vertex slab for this batch chunk)
    # o_ref   : (B_t, n_gather, C) VMEM block
    # Unrolled gather: one dynamic sublane-offset row copy per gathered vertex.
    for i in range(n_gather):
        v = vidx_ref[i]
        o_ref[:, pl.ds(i, 1), :] = x_ref[:, pl.ds(v, 1), :]


def _largest_divisor_leq(n, cap):
    for t in range(min(n, cap), 0, -1):
        if n % t == 0:
            return t
    return 1


def flame_mesh_crop(x, vidx, *, batch_tile_cap=4):
    """Pallas equivalent of FlameMeshCropper.forward: x[..., vidx, :]."""
    assert x.shape[-2] == NUM_FLAME_VERTS, "expected FLAME mesh with 5023 verts"
    lead = x.shape[:-2]
    V, C = NUM_FLAME_VERTS, x.shape[-1]
    B = int(np.prod(lead)) if lead else 1
    N = int(vidx.shape[0])

    xb = x.reshape(B, V, C)                       # free reshape, no transpose
    bt = _largest_divisor_leq(B, batch_tile_cap)  # VMEM-friendly batch tile

    grid_spec = pltpu.PrefetchScalarGridSpec(
        num_scalar_prefetch=1,        # vidx lands in SMEM before the grid runs
        grid=(B // bt,),              # one grid step per batch chunk
        in_specs=[
            # Full vertex slab for this batch chunk; trailing dims equal the
            # full array dims, so the (8,128) block rule is satisfied.
            pl.BlockSpec((bt, V, C), lambda b, vidx_ref: (b, 0, 0)),
        ],
        out_specs=pl.BlockSpec((bt, N, C), lambda b, vidx_ref: (b, 0, 0)),
    )

    out = pl.pallas_call(
        functools.partial(_crop_kernel, n_gather=N),
        grid_spec=grid_spec,
        out_shape=jax.ShapeDtypeStruct((B, N, C), x.dtype),
        compiler_params=pltpu.CompilerParams(
            dimension_semantics=("parallel",),   # batch chunks are independent
            vmem_limit_bytes=32 * 1024 * 1024,   # staged slab + double buffers
        ),
    )(vidx.astype(jnp.int32), xb)

    return out.reshape(*lead, N, C)


if __name__ == "__main__":
    key = jax.random.PRNGKey(0)
    kx, kv, kx2 = jax.random.split(key, 3)

    # Deterministic synthetic stand-in for assets.<PART>_VIDX:
    # a fixed subset of 256 distinct vertex indices in [0, 5023).
    vidx = jnp.sort(
        jax.random.permutation(kv, NUM_FLAME_VERTS)[:256]
    ).astype(jnp.int32)

    # Case 1: x ~ [batch=2, 5023 verts, 3 coords]
    x = jax.random.normal(kx, (2, NUM_FLAME_VERTS, 3), dtype=jnp.float32)
    y = jax.block_until_ready(flame_mesh_crop(x, vidx))
    y_ref = x[..., vidx, :]
    assert y.shape == y_ref.shape, (y.shape, y_ref.shape)
    np.testing.assert_allclose(np.asarray(y), np.asarray(y_ref), rtol=0, atol=0)

    # Case 2: extra leading dims ~ [2, 3, 5023, 3] (flattened batch 6, tile 3)
    x2 = jax.random.normal(kx2, (2, 3, NUM_FLAME_VERTS, 3), dtype=jnp.float32)
    y2 = jax.block_until_ready(flame_mesh_crop(x2, vidx))
    y2_ref = x2[..., vidx, :]
    assert y2.shape == y2_ref.shape, (y2.shape, y2_ref.shape)
    np.testing.assert_allclose(np.asarray(y2), np.asarray(y2_ref), rtol=0, atol=0)

    print("KERNEL_OK")
</pallas_src>

<mosaic_0001>
module attributes {stable_mosaic.version = 11 : i64} {
  func.func @_crop_kernel(%arg0: i32, %arg1: memref<256xi32, #tpu.memory_space<smem>>, %arg2: memref<2x5023x3xf32, #tpu.memory_space<vmem>>, %arg3: memref<2x256x3xf32, #tpu.memory_space<vmem>>) attributes {dimension_semantics = [#tpu.dimension_semantics<parallel>], iteration_bounds = array<i64: 1>, scalar_prefetch = 1 : i64, scratch_operands = 0 : i64, tpu.core_type = #tpu.core_type<tc>, window_params = [{transform_indices = @transform_0, window_bounds = array<i64: 2, 5023, 3>}, {transform_indices = @transform_1, window_bounds = array<i64: 2, 256, 3>}]} {
    %c0 = arith.constant 0 : index
    %0 = memref.load %arg1[%c0] : memref<256xi32, #tpu.memory_space<smem>>
    %c0_0 = arith.constant 0 : index
    %1 = arith.index_cast %0 : i32 to index
    %c0_1 = arith.constant 0 : index
    %2 = vector.load %arg2[%c0_0, %1, %c0_1] : memref<2x5023x3xf32, #tpu.memory_space<vmem>>, vector<2x1x3xf32>
    %c0_2 = arith.constant 0 : index
    %c0_3 = arith.constant 0 : index
    %c0_4 = arith.constant 0 : index
    %3 = vector.load %arg3[%c0_2, %c0_3, %c0_4] : memref<2x256x3xf32, #tpu.memory_space<vmem>>, vector<2x1x3xf32>
    tpu.vector_store %arg3[%c0_2, %c0_3, %c0_4], %2 {strides = array<i32>} : memref<2x256x3xf32, #tpu.memory_space<vmem>>, vector<2x1x3xf32>,
    %c1 = arith.constant 1 : index
    %4 = memref.load %arg1[%c1] : memref<256xi32, #tpu.memory_space<smem>>
    %c0_5 = arith.constant 0 : index
    %5 = arith.index_cast %4 : i32 to index
    %c0_6 = arith.constant 0 : index
    %6 = vector.load %arg2[%c0_5, %5, %c0_6] : memref<2x5023x3xf32, #tpu.memory_space<vmem>>, vector<2x1x3xf32>
    %c0_7 = arith.constant 0 : index
    %c1_8 = arith.constant 1 : index
    %c0_9 = arith.constant 0 : index
    %7 = vector.load %arg3[%c0_7, %c1_8, %c0_9] : memref<2x256x3xf32, #tpu.memory_space<vmem>>, vector<2x1x3xf32>
    tpu.vector_store %arg3[%c0_7, %c1_8, %c0_9], %6 {strides = array<i32>} : memref<2x256x3xf32, #tpu.memory_space<vmem>>, vector<2x1x3xf32>,
    %c2 = arith.constant 2 : index
    %8 = memref.load %arg1[%c2] : memref<256xi32, #tpu.memory_space<smem>>
    %c0_10 = arith.constant 0 : index
    %9 = arith.index_cast %8 : i32 to index
    %c0_11 = arith.constant 0 : index
    %10 = vector.load %arg2[%c0_10, %9, %c0_11] : memref<2x5023x3xf32, #tpu.memory_space<vmem>>, vector<2x1x3xf32>
    %c0_12 = arith.constant 0 : index
    %c2_13 = arith.constant 2 : index
    %c0_14 = arith.constant 0 : index
    %11 = vector.load %arg3[%c0_12, %c2_13, %c0_14] : memref<2x256x3xf32, #tpu.memory_space<vmem>>, vector<2x1x3xf32>
    tpu.vector_store %arg3[%c0_12, %c2_13, %c0_14], %10 {strides = array<i32>} : memref<2x256x3xf32, #tpu.memory_space<vmem>>, vector<2x1x3xf32>,
    %c3 = arith.constant 3 : index
    %12 = memref.load %arg1[%c3] : memref<256xi32, #tpu.memory_space<smem>>
    %c0_15 = arith.constant 0 : index
    %13 = arith.index_cast %12 : i32 to index
    %c0_16 = arith.constant 0 : index
    %14 = vector.load %arg2[%c0_15, %13, %c0_16] : memref<2x5023x3xf32, #tpu.memory_space<vmem>>, vector<2x1x3xf32>
    %c0_17 = arith.constant 0 : index
    %c3_18 = arith.constant 3 : index
    %c0_19 = arith.constant 0 : index
    %15 = vector.load %arg3[%c0_17, %c3_18, %c0_19] : memref<2x256x3xf32, #tpu.memory_space<vmem>>, vector<2x1x3xf32>
    tpu.vector_store %arg3[%c0_17, %c3_18, %c0_19], %14 {strides = array<i32>} : memref<2x256x3xf32, #tpu.memory_space<vmem>>, vector<2x1x3xf32>,
    %c4 = arith.constant 4 : index
    %16 = memref.load %arg1[%c4] : memref<256xi32, #tpu.memory_space<smem>>
    %c0_20 = arith.constant 0 : index
    %17 = arith.index_cast %16 : i32 to index
    %c0_21 = arith.constant 0 : index
    %18 = vector.load %arg2[%c0_20, %17, %c0_21] : memref<2x5023x3xf32, #tpu.memory_space<vmem>>, vector<2x1x3xf32>
    %c0_22 = arith.constant 0 : index
    %c4_23 = arith.constant 4 : index
    %c0_24 = arith.constant 0 : index
    %19 = vector.load %arg3[%c0_22, %c4_23, %c0_24] : memref<2x256x3xf32, #tpu.memory_space<vmem>>, vector<2x1x3xf32>
    tpu.vector_store %arg3[%c0_22, %c4_23, %c0_24], %18 {strides = array<i32>} : memref<2x256x3xf32, #tpu.memory_space<vmem>>, vector<2x1x3xf32>,
    %c5 = arith.constant 5 : index
    %20 = memref.load %arg1[%c5] : memref<256xi32, #tpu.memory_space<smem>>
    %c0_25 = arith.constant 0 : index
    %21 = arith.index_cast %20 : i32 to index
    %c0_26 = arith.constant 0 : index
    %22 = vector.load %arg2[%c0_25, %21, %c0_26] : memref<2x5023x3xf32, #tpu.memory_space<vmem>>, vector<2x1x3xf32>
    %c0_27 = arith.constant 0 : index
    %c5_28 = arith.constant 5 : index
    %c0_29 = arith.constant 0 : index
    %23 = vector.load %arg3[%c0_27, %c5_28, %c0_29] : memref<2x256x3xf32, #tpu.memory_space<vmem>>, vector<2x1x3xf32>
    tpu.vector_store %arg3[%c0_27, %c5_28, %c0_29], %22 {strides = array<i32>} : memref<2x256x3xf32, #tpu.memory_space<vmem>>, vector<2x1x3xf32>,
    %c6 = arith.constant 6 : index
    %24 = memref.load %arg1[%c6] : memref<256xi32, #tpu.memory_space<smem>>
    %c0_30 = arith.constant 0 : index
    %25 = arith.index_cast %24 : i32 to index
    %c0_31 = arith.constant 0 : index
    %26 = vector.load %arg2[%c0_30, %25, %c0_31] : memref<2x5023x3xf32, #tpu.memory_space<vmem>>, vector<2x1x3xf32>
    %c0_32 = arith.constant 0 : index
    %c6_33 = arith.constant 6 : index
    %c0_34 = arith.constant 0 : index
    %27 = vector.load %arg3[%c0_32, %c6_33, %c0_34] : memref<2x256x3xf32, #tpu.memory_space<vmem>>, vector<2x1x3xf32>
    tpu.vector_store %arg3[%c0_32, %c6_33, %c0_34], %26 {strides = array<i32>} : memref<2x256x3xf32, #tpu.memory_space<vmem>>, vector<2x1x3xf32>,
    %c7 = arith.constant 7 : index
    %28 = memref.load %arg1[%c7] : memref<256xi32, #tpu.memory_space<smem>>
    %c0_35 = arith.constant 0 : index
    %29 = arith.index_cast %28 : i32 to index
    %c0_36 = arith.constant 0 : index
    %30 = vector.load %arg2[%c0_35, %29, %c0_36] : memref<2x5023x3xf32, #tpu.memory_space<vmem>>, vector<2x1x3xf32>
    %c0_37 = arith.constant 0 : index
    %c7_38 = arith.constant 7 : index
    %c0_39 = arith.constant 0 : index
    %31 = vector.load %arg3[%c0_37, %c7_38, %c0_39] : memref<2x256x3xf32, #tpu.memory_space<vmem>>, vector<2x1x3xf32>
    tpu.vector_store %arg3[%c0_37, %c7_38, %c0_39], %30 {strides = array<i32>} : memref<2x256x3xf32, #tpu.memory_space<vmem>>, vector<2x1x3xf32>,
    %c8 = arith.constant 8 : index
    %32 = memref.load %arg1[%c8] : memref<256xi32, #tpu.memory_space<smem>>
    %c0_40 = arith.constant 0 : index
    %33 = arith.index_cast %32 : i32 to index
    %c0_41 = arith.constant 0 : index
    %34 = vector.load %arg2[%c0_40, %33, %c0_41] : memref<2x5023x3xf32, #tpu.memory_space<vmem>>, vector<2x1x3xf32>
    %c0_42 = arith.constant 0 : index
    %c8_43 = arith.constant 8 : index
    %c0_44 = arith.constant 0 : index
    %35 = vector.load %arg3[%c0_42, %c8_43, %c0_44] : memref<2x256x3xf32, #tpu.memory_space<vmem>>, vector<2x1x3xf32>
    tpu.vector_store %arg3[%c0_42, %c8_43, %c0_44], %34 {strides = array<i32>} : memref<2x256x3xf32, #tpu.memory_space<vmem>>, vector<2x1x3xf32>,
    %c9 = arith.constant 9 : index
    %36 = memref.load %arg1[%c9] : memref<256xi32, #tpu.memory_space<smem>>
    %c0_45 = arith.constant 0 : index
    %37 = arith.index_cast %36 : i32 to index
    %c0_46 = arith.constant 0 : index
    %38 = vector.load %arg2[%c0_45, %37, %c0_46] : memref<2x5023x3xf32, #tpu.memory_space<vmem>>, vector<2x1x3xf32>
    %c0_47 = arith.constant 0 : index
    %c9_48 = arith.constant 9 : index
    %c0_49 = arith.constant 0 : index
    %39 = vector.load %arg3[%c0_47, %c9_48, %c0_49] : memref<2x256x3xf32, #tpu.memory_space<vmem>>, vector<2x1x3xf32>
    tpu.vector_store %arg3[%c0_47, %c9_48, %c0_49], %38 {strides = array<i32>} : memref<2x256x3xf32, #tpu.memory_space<vmem>>, vector<2x1x3xf32>,
    %c10 = arith.constant 10 : index
    %40 = memref.load %arg1[%c10] : memref<256xi32, #tpu.memory_space<smem>>
    %c0_50 = arith.constant 0 : index
    %41 = arith.index_cast %40 : i32 to index
    %c0_51 = arith.constant 0 : index
    %42 = vector.load %arg2[%c0_50, %41, %c0_51] : memref<2x5023x3xf32, #tpu.memory_space<vmem>>, vector<2x1x3xf32>
    %c0_52 = arith.constant 0 : index
    %c10_53 = arith.constant 10 : index
    %c0_54 = arith.constant 0 : index
    %43 = vector.load %arg3[%c0_52, %c10_53, %c0_54] : memref<2x256x3xf32, #tpu.memory_space<vmem>>, vector<2x1x3xf32>
    tpu.vector_store %arg3[%c0_52, %c10_53, %c0_54], %42 {strides = array<i32>} : memref<2x256x3xf32, #tpu.memory_space<vmem>>, vector<2x1x3xf32>,
    %c11 = arith.constant 11 : index
    %44 = memref.load %arg1[%c11] : memref<256xi32, #tpu.memory_space<smem>>
    %c0_55 = arith.constant 0 : index
    %45 = arith.index_cast %44 : i32 to index
    %c0_56 = arith.constant 0 : index
    %46 = vector.load %arg2[%c0_55, %45, %c0_56] : memref<2x5023x3xf32, #tpu.memory_space<vmem>>, vector<2x1x3xf32>
    %c0_57 = arith.constant 0 : index
    %c11_58 = arith.constant 11 : index
    %c0_59 = arith.constant 0 : index
    %47 = vector.load %arg3[%c0_57, %c11_58, %c0_59] : memref<2x256x3xf32, #tpu.memory_space<vmem>>, vector<2x1x3xf32>
    tpu.vector_store %arg3[%c0_57, %c11_58, %c0_59], %46 {strides = array<i32>} : memref<2x256x3xf32, #tpu.memory_space<vmem>>, vector<2x1x3xf32>,
    %c12 = arith.constant 12 : index
    %48 = memref.load %arg1[%c12] : memref<256xi32, #tpu.memory_space<smem>>
    %c0_60 = arith.constant 0 : index
    %49 = arith.index_cast %48 : i32 to index
    %c0_61 = arith.constant 0 : index
    %50 = vector.load %arg2[%c0_60, %49, %c0_61] : memref<2x5023x3xf32, #tpu.memory_space<vmem>>, vector<2x1x3xf32>
    %c0_62 = arith.constant 0 : index
    %c12_63 = arith.constant 12 : index
    %c0_64 = arith.constant 0 : index
    %51 = vector.load %arg3[%c0_62, %c12_63, %c0_64] : memref<2x256x3xf32, #tpu.memory_space<vmem>>, vector<2x1x3xf32>
    tpu.vector_store %arg3[%c0_62, %c12_63, %c0_64], %50 {strides = array<i32>} : memref<2x256x3xf32, #tpu.memory_space<vmem>>, vector<2x1x3xf32>,
    %c13 = arith.constant 13 : index
    %52 = memref.load %arg1[%c13] : memref<256xi32, #tpu.memory_space<smem>>
    %c0_65 = arith.constant 0 : index
    %53 = arith.index_cast %52 : i32 to index
    %c0_66 = arith.constant 0 : index
    %54 = vector.load %arg2[%c0_65, %53, %c0_66] : memref<2x5023x3xf32, #tpu.memory_space<vmem>>, vector<2x1x3xf32>
    %c0_67 = arith.constant 0 : index
    %c13_68 = arith.constant 13 : index
    %c0_69 = arith.constant 0 : index
    %55 = vector.load %arg3[%c0_67, %c13_68, %c0_69] : memref<2x256x3xf32, #tpu.memory_space<vmem>>, vector<2x1x3xf32>
    tpu.vector_store %arg3[%c0_67, %c13_68, %c0_69], %54 {strides = array<i32>} : memref<2x256x3xf32, #tpu.memory_space<vmem>>, vector<2x1x3xf32>,
    %c14 = arith.constant 14 : index
    %56 = memref.load %arg1[%c14] : memref<256xi32, #tpu.memory_space<smem>>
    %c0_70 = arith.constant 0 : index
    %57 = arith.index_cast %56 : i32 to index
    %c0_71 = arith.constant 0 : index
    %58 = vector.load %arg2[%c0_70, %57, %c0_71] : memref<2x5023x3xf32, #tpu.memory_space<vmem>>, vector<2x1x3xf32>
    %c0_72 = arith.constant 0 : index
    %c14_73 = arith.constant 14 : index
    %c0_74 = arith.constant 0 : index
    %59 = vector.load %arg3[%c0_72, %c14_73, %c0_74] : memref<2x256x3xf32, #tpu.memory_space<vmem>>, vector<2x1x3xf32>
    tpu.vector_store %arg3[%c0_72, %c14_73, %c0_74], %58 {strides = array<i32>} : memref<2x256x3xf32, #tpu.memory_space<vmem>>, vector<2x1x3xf32>,
    %c15 = arith.constant 15 : index
    %60 = memref.load %arg1[%c15] : memref<256xi32, #tpu.memory_space<smem>>
    %c0_75 = arith.constant 0 : index
    %61 = arith.index_cast %60 : i32 to index
    %c0_76 = arith.constant 0 : index
    %62 = vector.load %arg2[%c0_75, %61, %c0_76] : memref<2x5023x3xf32, #tpu.memory_space<vmem>>, vector<2x1x3xf32>
    %c0_77 = arith.constant 0 : index
    %c15_78 = arith.constant 15 : index
    %c0_79 = arith.constant 0 : index
    %63 = vector.load %arg3[%c0_77, %c15_78, %c0_79] : memref<2x256x3xf32, #tpu.memory_space<vmem>>, vector<2x1x3xf32>
    tpu.vector_store %arg3[%c0_77, %c15_78, %c0_79], %62 {strides = array<i32>} : memref<2x256x3xf32, #tpu.memory_space<vmem>>, vector<2x1x3xf32>,
    %c16 = arith.constant 16 : index
    %64 = memref.load %arg1[%c16] : memref<256xi32, #tpu.memory_space<smem>>
    %c0_80 = arith.constant 0 : index
    %65 = arith.index_cast %64 : i32 to index
    %c0_81 = arith.constant 0 : index
    %66 = vector.load %arg2[%c0_80, %65, %c0_81] : memref<2x5023x3xf32, #tpu.memory_space<vmem>>, vector<2x1x3xf32>
    %c0_82 = arith.constant 0 : index
    %c16_83 = arith.constant 16 : index
    %c0_84 = arith.constant 0 : index
    %67 = vector.load %arg3[%c0_82, %c16_83, %c0_84] : memref<2x256x3xf32, #tpu.memory_space<vmem>>, vector<2x1x3xf32>
    tpu.vector_store %arg3[%c0_82, %c16_83, %c0_84], %66 {strides = array<i32>} : memref<2x256x3xf32, #tpu.memory_space<vmem>>, vector<2x1x3xf32>,
    %c17 = arith.constant 17 : index
    %68 = memref.load %arg1[%c17] : memref<256xi32, #tpu.memory_space<smem>>
    %c0_85 = arith.constant 0 : index
    %69 = arith.index_cast %68 : i32 to index
    %c0_86 = arith.constant 0 : index
    %70 = vector.load %arg2[%c0_85, %69, %c0_86] : memref<2x5023x3xf32, #tpu.memory_space<vmem>>, vector<2x1x3xf32>
    %c0_87 = arith.constant 0 : index
    %c17_88 = arith.constant 17 : index
    %c0_89 = arith.constant 0 : index
    %71 = vector.load %arg3[%c0_87, %c17_88, %c0_89] : memref<2x256x3xf32, #tpu.memory_space<vmem>>, vector<2x1x3xf32>
    tpu.vector_store %arg3[%c0_87, %c17_88, %c0_89], %70 {strides = array<i32>} : memref<2x256x3xf32, #tpu.memory_space<vmem>>, vector<2x1x3xf32>,
    %c18 = arith.constant 18 : index
    %72 = memref.load %arg1[%c18] : memref<256xi32, #tpu.memory_space<smem>>
    %c0_90 = arith.constant 0 : index
    %73 = arith.index_cast %72 : i32 to index
    %c0_91 = arith.constant 0 : index
    %74 = vector.load %arg2[%c0_90, %73, %c0_91] : memref<2x5023x3xf32, #tpu.memory_space<vmem>>, vector<2x1x3xf32>
    %c0_92 = arith.constant 0 : index
    %c18_93 = arith.constant 18 : index
    %c0_94 = arith.constant 0 : index
    %75 = vector.load %arg3[%c0_92, %c18_93, %c0_94] : memref<2x256x3xf32, #tpu.memory_space<vmem>>, vector<2x1x3xf32>
    tpu.vector_store %arg3[%c0_92, %c18_93, %c0_94], %74 {strides = array<i32>} : memref<2x256x3xf32, #tpu.memory_space<vmem>>, vector<2x1x3xf32>,
    %c19 = arith.constant 19 : index
    %76 = memref.load %arg1[%c19] : memref<256xi32, #tpu.memory_space<smem>>
    %c0_95 = arith.constant 0 : index
    %77 = arith.index_cast %76 : i32 to index
    %c0_96 = arith.constant 0 : index
    %78 = vector.load %arg2[%c0_95, %77, %c0_96] : memref<2x5023x3xf32, #tpu.memory_space<vmem>>, vector<2x1x3xf32>
    %c0_97 = arith.constant 0 : index
    %c19_98 = arith.constant 19 : index
    %c0_99 = arith.constant 0 : index
    %79 = vector.load %arg3[%c0_97, %c19_98, %c0_99] : memref<2x256x3xf32, #tpu.memory_space<vmem>>, vector<2x1x3xf32>
    tpu.vector_store %arg3[%c0_97, %c19_98, %c0_99], %78 {strides = array<i32>} : memref<2x256x3xf32, #tpu.memory_space<vmem>>, vector<2x1x3xf32>,
    %c20 = arith.constant 20 : index
    %80 = memref.load %arg1[%c20] : memref<256xi32, #tpu.memory_space<smem>>
    %c0_100 = arith.constant 0 : index
    %81 = arith.index_cast %80 : i32 to index
    %c0_101 = arith.constant 0 : index
    %82 = vector.load %arg2[%c0_100, %81, %c0_101] : memref<2x5023x3xf32, #tpu.memory_space<vmem>>, vector<2x1x3xf32>
    %c0_102 = arith.constant 0 : index
    %c20_103 = arith.constant 20 : index
    %c0_104 = arith.constant 0 : index
    %83 = vector.load %arg3[%c0_102, %c20_103, %c0_104] : memref<2x256x3xf32, #tpu.memory_space<vmem>>, vector<2x1x3xf32>
    tpu.vector_store %arg3[%c0_102, %c20_103, %c0_104], %82 {strides = array<i32>} : memref<2x256x3xf32, #tpu.memory_space<vmem>>, vector<2x1x3xf32>,
    %c21 = arith.constant 21 : index
    %84 = memref.load %arg1[%c21] : memref<256xi32, #tpu.memory_space<smem>>
    %c0_105 = arith.constant 0 : index
    %85 = arith.index_cast %84 : i32 to index
    %c0_106 = arith.constant 0 : index
    %86 = vector.load %arg2[%c0_105, %85, %c0_106] : memref<2x5023x3xf32, #tpu.memory_space<vmem>>, vector<2x1x3xf32>
    %c0_107 = arith.constant 0 : index
    %c21_108 = arith.constant 21 : index
    %c0_109 = arith.constant 0 : index
    %87 = vector.load %arg3[%c0_107, %c21_108, %c0_109] : memref<2x256x3xf32, #tpu.memory_space<vmem>>, vector<2x1x3xf32>
    tpu.vector_store %arg3[%c0_107, %c21_108, %c0_109], %86 {strides = array<i32>} : memref<2x256x3xf32, #tpu.memory_space<vmem>>, vector<2x1x3xf32>,
    %c22 = arith.constant 22 : index
    %88 = memref.load %arg1[%c22] : memref<256xi32, #tpu.memory_space<smem>>
    %c0_110 = arith.constant 0 : index
    %89 = arith.index_cast %88 : i32 to index
    %c0_111 = arith.constant 0 : index
    %90 = vector.load %arg2[%c0_110, %89, %c0_111] : memref<2x5023x3xf32, #tpu.memory_space<vmem>>, vector<2x1x3xf32>
    %c0_112 = arith.constant 0 : index
    %c22_113 = arith.constant 22 : index
    %c0_114 = arith.constant 0 : index
    %91 = vector.load %arg3[%c0_112, %c22_113, %c0_114] : memref<2x256x3xf32, #tpu.memory_space<vmem>>, vector<2x1x3xf32>
    tpu.vector_store %arg3[%c0_112, %c22_113, %c0_114], %90 {strides = array<i32>} : memref<2x256x3xf32, #tpu.memory_space<vmem>>, vector<2x1x3xf32>,
    %c23 = arith.constant 23 : index
    %92 = memref.load %arg1[%c23] : memref<256xi32, #tpu.memory_space<smem>>
    %c0_115 = arith.constant 0 : index
    %93 = arith.index_cast %92 : i32 to index
    %c0_116 = arith.constant 0 : index
    %94 = vector.load %arg2[%c0_115, %93, %c0_116] : memref<2x5023x3xf32, #tpu.memory_space<vmem>>, vector<2x1x3xf32>
    %c0_117 = arith.constant 0 : index
    %c23_118 = arith.constant 23 : index
    %c0_119 = arith.constant 0 : index
    %95 = vector.load %arg3[%c0_117, %c23_118, %c0_119] : memref<2x256x3xf32, #tpu.memory_space<vmem>>, vector<2x1x3xf32>
    tpu.vector_store %arg3[%c0_117, %c23_118, %c0_119], %94 {strides = array<i32>} : memref<2x256x3xf32, #tpu.memory_space<vmem>>, vector<2x1x3xf32>,
    %c24 = arith.constant 24 : index
    %96 = memref.load %arg1[%c24] : memref<256xi32, #tpu.memory_space<smem>>
    %c0_120 = arith.constant 0 : index
    %97 = arith.index_cast %96 : i32 to index
    %c0_121 = arith.constant 0 : index
    %98 = vector.load %arg2[%c0_120, %97, %c0_121] : memref<2x5023x3xf32, #tpu.memory_space<vmem>>, vector<2x1x3xf32>
    %c0_122 = arith.constant 0 : index
    %c24_123 = arith.constant 24 : index
    %c0_124 = arith.constant 0 : index
    %99 = vector.load %arg3[%c0_122, %c24_123, %c0_124] : memref<2x256x3xf32, #tpu.memory_space<vmem>>, vector<2x1x3xf32>
    tpu.vector_store %arg3[%c0_122, %c24_123, %c0_124], %98 {strides = array<i32>} : memref<2x256x3xf32, #tpu.memory_space<vmem>>, vector<2x1x3xf32>,
    %c25 = arith.constant 25 : index
    %100 = memref.load %arg1[%c25] : memref<256xi32, #tpu.memory_space<smem>>
    %c0_125 = arith.constant 0 : index
    %101 = arith.index_cast %100 : i32 to index
    %c0_126 = arith.constant 0 : index
    %102 = vector.load %arg2[%c0_125, %101, %c0_126] : memref<2x5023x3xf32, #tpu.memory_space<vmem>>, vector<2x1x3xf32>
    %c0_127 = arith.constant 0 : index
    %c25_128 = arith.constant 25 : index
    %c0_129 = arith.constant 0 : index
    %103 = vector.load %arg3[%c0_127, %c25_128, %c0_129] : memref<2x256x3xf32, #tpu.memory_space<vmem>>, vector<2x1x3xf32>
    tpu.vector_store %arg3[%c0_127, %c25_128, %c0_129], %102 {strides = array<i32>} : memref<2x256x3xf32, #tpu.memory_space<vmem>>, vector<2x1x3xf32>,
    %c26 = arith.constant 26 : index
    %104 = memref.load %arg1[%c26] : memref<256xi32, #tpu.memory_space<smem>>
    %c0_130 = arith.constant 0 : index
    %105 = arith.index_cast %104 : i32 to index
    %c0_131 = arith.constant 0 : index
    %106 = vector.load %arg2[%c0_130, %105, %c0_131] : memref<2x5023x3xf32, #tpu.memory_space<vmem>>, vector<2x1x3xf32>
    %c0_132 = arith.constant 0 : index
    %c26_133 = arith.constant 26 : index
    %c0_134 = arith.constant 0 : index
    %107 = vector.load %arg3[%c0_132, %c26_133, %c0_134] : memref<2x256x3xf32, #tpu.memory_space<vmem>>, vector<2x1x3xf32>
    tpu.vector_store %arg3[%c0_132, %c26_133, %c0_134], %106 {strides = array<i32>} : memref<2x256x3xf32, #tpu.memory_space<vmem>>, vector<2x1x3xf32>,
    %c27 = arith.constant 27 : index
    %108 = memref.load %arg1[%c27] : memref<256xi32, #tpu.memory_space<smem>>
    %c0_135 = arith.constant 0 : index
    %109 = arith.index_cast %108 : i32 to index
    %c0_136 = arith.constant 0 : index
    %110 = vector.load %arg2[%c0_135, %109, %c0_136] : memref<2x5023x3xf32, #tpu.memory_space<vmem>>, vector<2x1x3xf32>
    %c0_137 = arith.constant 0 : index
    %c27_138 = arith.constant 27 : index
    %c0_139 = arith.constant 0 : index
    %111 = vector.load %arg3[%c0_137, %c27_138, %c0_139] : memref<2x256x3xf32, #tpu.memory_space<vmem>>, vector<2x1x3xf32>
    tpu.vector_store %arg3[%c0_137, %c27_138, %c0_139], %110 {strides = array<i32>} : memref<2x256x3xf32, #tpu.memory_space<vmem>>, vector<2x1x3xf32>,
    %c28 = arith.constant 28 : index
    %112 = memref.load %arg1[%c28] : memref<256xi32, #tpu.memory_space<smem>>
    %c0_140 = arith.constant 0 : index
    %113 = arith.index_cast %112 : i32 to index
    %c0_141 = arith.constant 0 : index
    %114 = vector.load %arg2[%c0_140, %113, %c0_141] : memref<2x5023x3xf32, #tpu.memory_space<vmem>>, vector<2x1x3xf32>
    %c0_142 = arith.constant 0 : index
    %c28_143 = arith.constant 28 : index
    %c0_144 = arith.constant 0 : index
    %115 = vector.load %arg3[%c0_142, %c28_143, %c0_144] : memref<2x256x3xf32, #tpu.memory_space<vmem>>, vector<2x1x3xf32>
    tpu.vector_store %arg3[%c0_142, %c28_143, %c0_144], %114 {strides = array<i32>} : memref<2x256x3xf32, #tpu.memory_space<vmem>>, vector<2x1x3xf32>,
    %c29 = arith.constant 29 : index
    %116 = memref.load %arg1[%c29] : memref<256xi32, #tpu.memory_space<smem>>
    %c0_145 = arith.constant 0 : index
    %117 = arith.index_cast %116 : i32 to index
    %c0_146 = arith.constant 0 : index
    %118 = vector.load %arg2[%c0_145, %117, %c0_146] : memref<2x5023x3xf32, #tpu.memory_space<vmem>>, vector<2x1x3xf32>
    %c0_147 = arith.constant 0 : index
    %c29_148 = arith.constant 29 : index
    %c0_149 = arith.constant 0 : index
    %119 = vector.load %arg3[%c0_147, %c29_148, %c0_149] : memref<2x256x3xf32, #tpu.memory_space<vmem>>, vector<2x1x3xf32>
    tpu.vector_store %arg3[%c0_147, %c29_148, %c0_149], %118 {strides = array<i32>} : memref<2x256x3xf32, #tpu.memory_space<vmem>>, vector<2x1x3xf32>,
    %c30 = arith.constant 30 : index
    %120 = memref.load %arg1[%c30] : memref<256xi32, #tpu.memory_space<smem>>
    %c0_150 = arith.constant 0 : index
    %121 = arith.index_cast %120 : i32 to index
    %c0_151 = arith.constant 0 : index
    %122 = vector.load %arg2[%c0_150, %121, %c0_151] : memref<2x5023x3xf32, #tpu.memory_space<vmem>>, vector<2x1x3xf32>
    %c0_152 = arith.constant 0 : index
    %c30_153 = arith.constant 30 : index
    %c0_154 = arith.constant 0 : index
    %123 = vector.load %arg3[%c0_152, %c30_153, %c0_154] : memref<2x256x3xf32, #tpu.memory_space<vmem>>, vector<2x1x3xf32>
    tpu.vector_store %arg3[%c0_152, %c30_153, %c0_154], %122 {strides = array<i32>} : memref<2x256x3xf32, #tpu.memory_space<vmem>>, vector<2x1x3xf32>,
    %c31 = arith.constant 31 : index
    %124 = memref.load %arg1[%c31] : memref<256xi32, #tpu.memory_space<smem>>
    %c0_155 = arith.constant 0 : index
    %125 = arith.index_cast %124 : i32 to index
    %c0_156 = arith.constant 0 : index
    %126 = vector.load %arg2[%c0_155, %125, %c0_156] : memref<2x5023x3xf32, #tpu.memory_space<vmem>>, vector<2x1x3xf32>
    %c0_157 = arith.constant 0 : index
    %c31_158 = arith.constant 31 : index
    %c0_159 = arith.constant 0 : index
    %127 = vector.load %arg3[%c0_157, %c31_158, %c0_159] : memref<2x256x3xf32, #tpu.memory_space<vmem>>, vector<2x1x3xf32>
    tpu.vector_store %arg3[%c0_157, %c31_158, %c0_159], %126 {strides = array<i32>} : memref<2x256x3xf32, #tpu.memory_space<vmem>>, vector<2x1x3xf32>,
    %c32 = arith.constant 32 : index
    %128 = memref.load %arg1[%c32] : memref<256xi32, #tpu.memory_space<smem>>
    %c0_160 = arith.constant 0 : index
    %129 = arith.index_cast %128 : i32 to index
    %c0_161 = arith.constant 0 : index
    %130 = vector.load %arg2[%c0_160, %129, %c0_161] : memref<2x5023x3xf32, #tpu.memory_space<vmem>>, vector<2x1x3xf32>
    %c0_162 = arith.constant 0 : index
    %c32_163 = arith.constant 32 : index
    %c0_164 = arith.constant 0 : index
    %131 = vector.load %arg3[%c0_162, %c32_163, %c0_164] : memref<2x256x3xf32, #tpu.memory_space<vmem>>, vector<2x1x3xf32>
    tpu.vector_store %arg3[%c0_162, %c32_163, %c0_164], %130 {strides = array<i32>} : memref<2x256x3xf32, #tpu.memory_space<vmem>>, vector<2x1x3xf32>,
    %c33 = arith.constant 33 : index
    %132 = memref.load %arg1[%c33] : memref<256xi32, #tpu.memory_space<smem>>
    %c0_165 = arith.constant 0 : index
    %133 = arith.index_cast %132 : i32 to index
    %c0_166 = arith.constant 0 : index
    %134 = vector.load %arg2[%c0_165, %133, %c0_166] : memref<2x5023x3xf32, #tpu.memory_space<vmem>>, vector<2x1x3xf32>
    %c0_167 = arith.constant 0 : index
    %c33_168 = arith.constant 33 : index
    %c0_169 = arith.constant 0 : index
    %135 = vector.load %arg3[%c0_167, %c33_168, %c0_169] : memref<2x256x3xf32, #tpu.memory_space<vmem>>, vector<2x1x3xf32>
    tpu.vector_store %arg3[%c0_167, %c33_168, %c0_169], %134 {strides = array<i32>} : memref<2x256x3xf32, #tpu.memory_space<vmem>>, vector<2x1x3xf32>,
    %c34 = arith.constant 34 : index
    %136 = memref.load %arg1[%c34] : memref<256xi32, #tpu.memory_space<smem>>
    %c0_170 = arith.constant 0 : index
    %137 = arith.index_cast %136 : i32 to index
    %c0_171 = arith.constant 0 : index
    %138 = vector.load %arg2[%c0_170, %137, %c0_171] : memref<2x5023x3xf32, #tpu.memory_space<vmem>>, vector<2x1x3xf32>
    %c0_172 = arith.constant 0 : index
    %c34_173 = arith.constant 34 : index
    %c0_174 = arith.constant 0 : index
    %139 = vector.load %arg3[%c0_172, %c34_173, %c0_174] : memref<2x256x3xf32, #tpu.memory_space<vmem>>, vector<2x1x3xf32>
    tpu.vector_store %arg3[%c0_172, %c34_173, %c0_174], %138 {strides = array<i32>} : memref<2x256x3xf32, #tpu.memory_space<vmem>>, vector<2x1x3xf32>,
    %c35 = arith.constant 35 : index
    %140 = memref.load %arg1[%c35] : memref<256xi32, #tpu.memory_space<smem>>
    %c0_175 = arith.constant 0 : index
    %141 = arith.index_cast %140 : i32 to index
    %c0_176 = arith.constant 0 : index
    %142 = vector.load %arg2[%c0_175, %141, %c0_176] : memref<2x5023x3xf32, #tpu.memory_space<vmem>>, vector<2x1x3xf32>
    %c0_177 = arith.constant 0 : index
    %c35_178 = arith.constant 35 : index
    %c0_179 = arith.constant 0 : index
    %143 = vector.load %arg3[%c0_177, %c35_178, %c0_179] : memref<2x256x3xf32, #tpu.memory_space<vmem>>, vector<2x1x3xf32>
    tpu.vector_store %arg3[%c0_177, %c35_178, %c0_179], %142 {strides = array<i32>} : memref<2x256x3xf32, #tpu.memory_space<vmem>>, vector<2x1x3xf32>,
    %c36 = arith.constant 36 : index
    %144 = memref.load %arg1[%c36] : memref<256xi32, #tpu.memory_space<smem>>
    %c0_180 = arith.constant 0 : index
    %145 = arith.index_cast %144 : i32 to index
    %c0_181 = arith.constant 0 : index
    %146 = vector.load %arg2[%c0_180, %145, %c0_181] : memref<2x5023x3xf32, #tpu.memory_space<vmem>>, vector<2x1x3xf32>
    %c0_182 = arith.constant 0 : index
    %c36_183 = arith.constant 36 : index
    %c0_184 = arith.constant 0 : index
    %147 = vector.load %arg3[%c0_182, %c36_183, %c0_184] : memref<2x256x3xf32, #tpu.memory_space<vmem>>, vector<2x1x3xf32>
    tpu.vector_store %arg3[%c0_182, %c36_183, %c0_184], %146 {strides = array<i32>} : memref<2x256x3xf32, #tpu.memory_space<vmem>>, vector<2x1x3xf32>,
    %c37 = arith.constant 37 : index
    %148 = memref.load %arg1[%c37] : memref<256xi32, #tpu.memory_space<smem>>
    %c0_185 = arith.constant 0 : index
    %149 = arith.index_cast %148 : i32 to index
    %c0_186 = arith.constant 0 : index
    %150 = vector.load %arg2[%c0_185, %149, %c0_186] : memref<2x5023x3xf32, #tpu.memory_space<vmem>>, vector<2x1x3xf32>
    %c0_187 = arith.constant 0 : index
    %c37_188 = arith.constant 37 : index
    %c0_189 = arith.constant 0 : index
    %151 = vector.load %arg3[%c0_187, %c37_188, %c0_189] : memref<2x256x3xf32, #tpu.memory_space<vmem>>, vector<2x1x3xf32>
    tpu.vector_store %arg3[%c0_187, %c37_188, %c0_189], %150 {strides = array<i32>} : memref<2x256x3xf32, #tpu.memory_space<vmem>>, vector<2x1x3xf32>,
    %c38 = arith.constant 38 : index
    %152 = memref.load %arg1[%c38] : memref<256xi32, #tpu.memory_space<smem>>
    %c0_190 = arith.constant 0 : index
    %153 = arith.index_cast %152 : i32 to index
    %c0_191 = arith.constant 0 : index
    %154 = vector.load %arg2[%c0_190, %153, %c0_191] : memref<2x5023x3xf32, #tpu.memory_space<vmem>>, vector<2x1x3xf32>
    %c0_192 = arith.constant 0 : index
    %c38_193 = arith.constant 38 : index
    %c0_194 = arith.constant 0 : index
    %155 = vector.load %arg3[%c0_192, %c38_193, %c0_194] : memref<2x256x3xf32, #tpu.memory_space<vmem>>, vector<2x1x3xf32>
    tpu.vector_store %arg3[%c0_192, %c38_193, %c0_194], %154 {strides = array<i32>} : memref<2x256x3xf32, #tpu.memory_space<vmem>>, vector<2x1x3xf32>,
    %c39 = arith.constant 39 : index
    %156 = memref.load %arg1[%c39] : memref<256xi32, #tpu.memory_space<smem>>
    %c0_195 = arith.constant 0 : index
    %157 = arith.index_cast %156 : i32 to index
    %c0_196 = arith.constant 0 : index
    %158 = vector.load %arg2[%c0_195, %157, %c0_196] : memref<2x5023x3xf32, #tpu.memory_space<vmem>>, vector<2x1x3xf32>
    %c0_197 = arith.constant 0 : index
    %c39_198 = arith.constant 39 : index
    %c0_199 = arith.constant 0 : index
    %159 = vector.load %arg3[%c0_197, %c39_198, %c0_199] : memref<2x256x3xf32, #tpu.memory_space<vmem>>, vector<2x1x3xf32>
    tpu.vector_store %arg3[%c0_197, %c39_198, %c0_199], %158 {strides = array<i32>} : memref<2x256x3xf32, #tpu.memory_space<vmem>>, vector<2x1x3xf32>,
    %c40 = arith.constant 40 : index
    %160 = memref.load %arg1[%c40] : memref<256xi32, #tpu.memory_space<smem>>
    %c0_200 = arith.constant 0 : index
    %161 = arith.index_cast %160 : i32 to index
    %c0_201 = arith.constant 0 : index
    %162 = vector.load %arg2[%c0_200, %161, %c0_201] : memref<2x5023x3xf32, #tpu.memory_space<vmem>>, vector<2x1x3xf32>
    %c0_202 = arith.constant 0 : index
    %c40_203 = arith.constant 40 : index
    %c0_204 = arith.constant 0 : index
    %163 = vector.load %arg3[%c0_202, %c40_203, %c0_204] : memref<2x256x3xf32, #tpu.memory_space<vmem>>, vector<2x1x3xf32>
    tpu.vector_store %arg3[%c0_202, %c40_203, %c0_204], %162 {strides = array<i32>} : memref<2x256x3xf32, #tpu.memory_space<vmem>>, vector<2x1x3xf32>,
    %c41 = arith.constant 41 : index
    %164 = memref.load %arg1[%c41] : memref<256xi32, #tpu.memory_space<smem>>
    %c0_205 = arith.constant 0 : index
    %165 = arith.index_cast %164 : i32 to index
    %c0_206 = arith.constant 0 : index
    %166 = vector.load %arg2[%c0_205, %165, %c0_206] : memref<2x5023x3xf32, #tpu.memory_space<vmem>>, vector<2x1x3xf32>
    %c0_207 = arith.constant 0 : index
    %c41_208 = arith.constant 41 : index
    %c0_209 = arith.constant 0 : index
    %167 = vector.load %arg3[%c0_207, %c41_208, %c0_209] : memref<2x256x3xf32, #tpu.memory_space<vmem>>, vector<2x1x3xf32>
    tpu.vector_store %arg3[%c0_207, %c41_208, %c0_209], %166 {strides = array<i32>} : memref<2x256x3xf32, #tpu.memory_space<vmem>>, vector<2x1x3xf32>,
    %c42 = arith.constant 42 : index
    %168 = memref.load %arg1[%c42] : memref<256xi32, #tpu.memory_space<smem>>
    %c0_210 = arith.constant 0 : index
    %169 = arith.index_cast %168 : i32 to index
    %c0_211 = arith.constant 0 : index
    %170 = vector.load %arg2[%c0_210, %169, %c0_211] : memref<2x5023x3xf32, #tpu.memory_space<vmem>>, vector<2x1x3xf32>
    %c0_212 = arith.constant 0 : index
    %c42_213 = arith.constant 42 : index
    %c0_214 = arith.constant 0 : index
    %171 = vector.load %arg3[%c0_212, %c42_213, %c0_214] : memref<2x256x3xf32, #tpu.memory_space<vmem>>, vector<2x1x3xf32>
    tpu.vector_store %arg3[%c0_212, %c42_213, %c0_214], %170 {strides = array<i32>} : memref<2x256x3xf32, #tpu.memory_space<vmem>>, vector<2x1x3xf32>,
    %c43 = arith.constant 43 : index
    %172 = memref.load %arg1[%c43] : memref<256xi32, #tpu.memory_space<smem>>
    %c0_215 = arith.constant 0 : index
    %173 = arith.index_cast %172 : i32 to index
    %c0_216 = arith.constant 0 : index
    %174 = vector.load %arg2[%c0_215, %173, %c0_216] : memref<2x5023x3xf32, #tpu.memory_space<vmem>>, vector<2x1x3xf32>
    %c0_217 = arith.constant 0 : index
    %c43_218 = arith.constant 43 : index
    %c0_219 = arith.constant 0 : index
    %175 = vector.load %arg3[%c0_217, %c43_218, %c0_219] : memref<2x256x3xf32, #tpu.memory_space<vmem>>, vector<2x1x3xf32>
    tpu.vector_store %arg3[%c0_217, %c43_218, %c0_219], %174 {strides = array<i32>} : memref<2x256x3xf32, #tpu.memory_space<vmem>>, vector<2x1x3xf32>,
    %c44 = arith.constant 44 : index
    %176 = memref.load %arg1[%c44] : memref<256xi32, #tpu.memory_space<smem>>
    %c0_220 = arith.constant 0 : index
    %177 = arith.index_cast %176 : i32 to index
    %c0_221 = arith.constant 0 : index
    %178 = vector.load %arg2[%c0_220, %177, %c0_221] : memref<2x5023x3xf32, #tpu.memory_space<vmem>>, vector<2x1x3xf32>
    %c0_222 = arith.constant 0 : index
    %c44_223 = arith.constant 44 : index
    %c0_224 = arith.constant 0 : index
    %179 = vector.load %arg3[%c0_222, %c44_223, %c0_224] : memref<2x256x3xf32, #tpu.memory_space<vmem>>, vector<2x1x3xf32>
    tpu.vector_store %arg3[%c0_222, %c44_223, %c0_224], %178 {strides = array<i32>} : memref<2x256x3xf32, #tpu.memory_space<vmem>>, vector<2x1x3xf32>,
    %c45 = arith.constant 45 : index
    %180 = memref.load %arg1[%c45] : memref<256xi32, #tpu.memory_space<smem>>
    %c0_225 = arith.constant 0 : index
    %181 = arith.index_cast %180 : i32 to index
    %c0_226 = arith.constant 0 : index
    %182 = vector.load %arg2[%c0_225, %181, %c0_226] : memref<2x5023x3xf32, #tpu.memory_space<vmem>>, vector<2x1x3xf32>
    %c0_227 = arith.constant 0 : index
    %c45_228 = arith.constant 45 : index
    %c0_229 = arith.constant 0 : index
    %183 = vector.load %arg3[%c0_227, %c45_228, %c0_229] : memref<2x256x3xf32, #tpu.memory_space<vmem>>, vector<2x1x3xf32>
    tpu.vector_store %arg3[%c0_227, %c45_228, %c0_229], %182 {strides = array<i32>} : memref<2x256x3xf32, #tpu.memory_space<vmem>>, vector<2x1x3xf32>,
    %c46 = arith.constant 46 : index
    %184 = memref.load %arg1[%c46] : memref<256xi32, #tpu.memory_space<smem>>
    %c0_230 = arith.constant 0 : index
    %185 = arith.index_cast %184 : i32 to index
    %c0_231 = arith.constant 0 : index
    %186 = vector.load %arg2[%c0_230, %185, %c0_231] : memref<2x5023x3xf32, #tpu.memory_space<vmem>>, vector<2x1x3xf32>
    %c0_232 = arith.constant 0 : index
    %c46_233 = arith.constant 46 : index
    %c0_234 = arith.constant 0 : index
    %187 = vector.load %arg3[%c0_232, %c46_233, %c0_234] : memref<2x256x3xf32, #tpu.memory_space<vmem>>, vector<2x1x3xf32>
    tpu.vector_store %arg3[%c0_232, %c46_233, %c0_234], %186 {strides = array<i32>} : memref<2x256x3xf32, #tpu.memory_space<vmem>>, vector<2x1x3xf32>,
    %c47 = arith.constant 47 : index
    %188 = memref.load %arg1[%c47] : memref<256xi32, #tpu.memory_space<smem>>
    %c0_235 = arith.constant 0 : index
    %189 = arith.index_cast %188 : i32 to index
    %c0_236 = arith.constant 0 : index
    %190 = vector.load %arg2[%c0_235, %189, %c0_236] : memref<2x5023x3xf32, #tpu.memory_space<vmem>>, vector<2x1x3xf32>
    %c0_237 = arith.constant 0 : index
    %c47_238 = arith.constant 47 : index
    %c0_239 = arith.constant 0 : index
    %191 = vector.load %arg3[%c0_237, %c47_238, %c0_239] : memref<2x256x3xf32, #tpu.memory_space<vmem>>, vector<2x1x3xf32>
    tpu.vector_store %arg3[%c0_237, %c47_238, %c0_239], %190 {strides = array<i32>} : memref<2x256x3xf32, #tpu.memory_space<vmem>>, vector<2x1x3xf32>,
    %c48 = arith.constant 48 : index
    %192 = memref.load %arg1[%c48] : memref<256xi32, #tpu.memory_space<smem>>
    %c0_240 = arith.constant 0 : index
    %193 = arith.index_cast %192 : i32 to index
    %c0_241 = arith.constant 0 : index
    %194 = vector.load %arg2[%c0_240, %193, %c0_241] : memref<2x5023x3xf32, #tpu.memory_space<vmem>>, vector<2x1x3xf32>
    %c0_242 = arith.constant 0 : index
    %c48_243 = arith.constant 48 : index
    %c0_244 = arith.constant 0 : index
    %195 = vector.load %arg3[%c0_242, %c48_243, %c0_244] : memref<2x256x3xf32, #tpu.memory_space<vmem>>, vector<2x1x3xf32>
    tpu.vector_store %arg3[%c0_242, %c48_243, %c0_244], %194 {strides = array<i32>} : memref<2x256x3xf32, #tpu.memory_space<vmem>>, vector<2x1x3xf32>,
    %c49 = arith.constant 49 : index
    %196 = memref.load %arg1[%c49] : memref<256xi32, #tpu.memory_space<smem>>
    %c0_245 = arith.constant 0 : index
    %197 = arith.index_cast %196 : i32 to index
    %c0_246 = arith.constant 0 : index
    %198 = vector.load %arg2[%c0_245, %197, %c0_246] : memref<2x5023x3xf32, #tpu.memory_space<vmem>>, vector<2x1x3xf32>
    %c0_247 = arith.constant 0 : index
    %c49_248 = arith.constant 49 : index
    %c0_249 = arith.constant 0 : index
    %199 = vector.load %arg3[%c0_247, %c49_248, %c0_249] : memref<2x256x3xf32, #tpu.memory_space<vmem>>, vector<2x1x3xf32>
    tpu.vector_store %arg3[%c0_247, %c49_248, %c0_249], %198 {strides = array<i32>} : memref<2x256x3xf32, #tpu.memory_space<vmem>>, vector<2x1x3xf32>,
    %c50 = arith.constant 50 : index
    %200 = memref.load %arg1[%c50] : memref<256xi32, #tpu.memory_space<smem>>
    %c0_250 = arith.constant 0 : index
    %201 = arith.index_cast %200 : i32 to index
    %c0_251 = arith.constant 0 : index
    %202 = vector.load %arg2[%c0_250, %201, %c0_251] : memref<2x5023x3xf32, #tpu.memory_space<vmem>>, vector<2x1x3xf32>
    %c0_252 = arith.constant 0 : index
    %c50_253 = arith.constant 50 : index
    %c0_254 = arith.constant 0 : index
    %203 = vector.load %arg3[%c0_252, %c50_253, %c0_254] : memref<2x256x3xf32, #tpu.memory_space<vmem>>, vector<2x1x3xf32>
    tpu.vector_store %arg3[%c0_252, %c50_253, %c0_254], %202 {strides = array<i32>} : memref<2x256x3xf32, #tpu.memory_space<vmem>>, vector<2x1x3xf32>,
    %c51 = arith.constant 51 : index
    %204 = memref.load %arg1[%c51] : memref<256xi32, #tpu.memory_space<smem>>
    %c0_255 = arith.constant 0 : index
    %205 = arith.index_cast %204 : i32 to index
    %c0_256 = arith.constant 0 : index
    %206 = vector.load %arg2[%c0_255, %205, %c0_256] : memref<2x5023x3xf32, #tpu.memory_space<vmem>>, vector<2x1x3xf32>
    %c0_257 = arith.constant 0 : index
    %c51_258 = arith.constant 51 : index
    %c0_259 = arith.constant 0 : index
    %207 = vector.load %arg3[%c0_257, %c51_258, %c0_259] : memref<2x256x3xf32, #tpu.memory_space<vmem>>, vector<2x1x3xf32>
    tpu.vector_store %arg3[%c0_257, %c51_258, %c0_259], %206 {strides = array<i32>} : memref<2x256x3xf32, #tpu.memory_space<vmem>>, vector<2x1x3xf32>,
    %c52 = arith.constant 52 : index
    %208 = memref.load %arg1[%c52] : memref<256xi32, #tpu.memory_space<smem>>
    %c0_260 = arith.constant 0 : index
    %209 = arith.index_cast %208 : i32 to index
    %c0_261 = arith.constant 0 : index
    %210 = vector.load %arg2[%c0_260, %209, %c0_261] : memref<2x5023x3xf32, #tpu.memory_space<vmem>>, vector<2x1x3xf32>
    %c0_262 = arith.constant 0 : index
    %c52_263 = arith.constant 52 : index
    %c0_264 = arith.constant 0 : index
    %211 = vector.load %arg3[%c0_262, %c52_263, %c0_264] : memref<2x256x3xf32, #tpu.memory_space<vmem>>, vector<2x1x3xf32>
    tpu.vector_store %arg3[%c0_262, %c52_263, %c0_264], %210 {strides = array<i32>} : memref<2x256x3xf32, #tpu.memory_space<vmem>>, vector<2x1x3xf32>,
    %c53 = arith.constant 53 : index
    %212 = memref.load %arg1[%c53] : memref<256xi32, #tpu.memory_space<smem>>
    %c0_265 = arith.constant 0 : index
    %213 = arith.index_cast %212 : i32 to index
    %c0_266 = arith.constant 0 : index
    %214 = vector.load %arg2[%c0_265, %213, %c0_266] : memref<2x5023x3xf32, #tpu.memory_space<vmem>>, vector<2x1x3xf32>
    %c0_267 = arith.constant 0 : index
    %c53_268 = arith.constant 53 : index
    %c0_269 = arith.constant 0 : index
    %215 = vector.load %arg3[%c0_267, %c53_268, %c0_269] : memref<2x256x3xf32, #tpu.memory_space<vmem>>, vector<2x1x3xf32>
    tpu.vector_store %arg3[%c0_267, %c53_268, %c0_269], %214 {strides = array<i32>} : memref<2x256x3xf32, #tpu.memory_space<vmem>>, vector<2x1x3xf32>,
    %c54 = arith.constant 54 : index
    %216 = memref.load %arg1[%c54] : memref<256xi32, #tpu.memory_space<smem>>
    %c0_270 = arith.constant 0 : index
    %217 = arith.index_cast %216 : i32 to index
    %c0_271 = arith.constant 0 : index
    %218 = vector.load %arg2[%c0_270, %217, %c0_271] : memref<2x5023x3xf32, #tpu.memory_space<vmem>>, vector<2x1x3xf32>
    %c0_272 = arith.constant 0 : index
    %c54_273 = arith.constant 54 : index
    %c0_274 = arith.constant 0 : index
    %219 = vector.load %arg3[%c0_272, %c54_273, %c0_274] : memref<2x256x3xf32, #tpu.memory_space<vmem>>, vector<2x1x3xf32>
    tpu.vector_store %arg3[%c0_272, %c54_273, %c0_274], %218 {strides = array<i32>} : memref<2x256x3xf32, #tpu.memory_space<vmem>>, vector<2x1x3xf32>,
    %c55 = arith.constant 55 : index
    %220 = memref.load %arg1[%c55] : memref<256xi32, #tpu.memory_space<smem>>
    %c0_275 = arith.constant 0 : index
    %221 = arith.index_cast %220 : i32 to index
    %c0_276 = arith.constant 0 : index
    %222 = vector.load %arg2[%c0_275, %221, %c0_276] : memref<2x5023x3xf32, #tpu.memory_space<vmem>>, vector<2x1x3xf32>
    %c0_277 = arith.constant 0 : index
    %c55_278 = arith.constant 55 : index
    %c0_279 = arith.constant 0 : index
    %223 = vector.load %arg3[%c0_277, %c55_278, %c0_279] : memref<2x256x3xf32, #tpu.memory_space<vmem>>, vector<2x1x3xf32>
    tpu.vector_store %arg3[%c0_277, %c55_278, %c0_279], %222 {strides = array<i32>} : memref<2x256x3xf32, #tpu.memory_space<vmem>>, vector<2x1x3xf32>,
    %c56 = arith.constant 56 : index
    %224 = memref.load %arg1[%c56] : memref<256xi32, #tpu.memory_space<smem>>
    %c0_280 = arith.constant 0 : index
    %225 = arith.index_cast %224 : i32 to index
    %c0_281 = arith.constant 0 : index
    %226 = vector.load %arg2[%c0_280, %225, %c0_281] : memref<2x5023x3xf32, #tpu.memory_space<vmem>>, vector<2x1x3xf32>
    %c0_282 = arith.constant 0 : index
    %c56_283 = arith.constant 56 : index
    %c0_284 = arith.constant 0 : index
    %227 = vector.load %arg3[%c0_282, %c56_283, %c0_284] : memref<2x256x3xf32, #tpu.memory_space<vmem>>, vector<2x1x3xf32>
    tpu.vector_store %arg3[%c0_282, %c56_283, %c0_284], %226 {strides = array<i32>} : memref<2x256x3xf32, #tpu.memory_space<vmem>>, vector<2x1x3xf32>,
    %c57 = arith.constant 57 : index
    %228 = memref.load %arg1[%c57] : memref<256xi32, #tpu.memory_space<smem>>
    %c0_285 = arith.constant 0 : index
    %229 = arith.index_cast %228 : i32 to index
    %c0_286 = arith.constant 0 : index
    %230 = vector.load %arg2[%c0_285, %229, %c0_286] : memref<2x5023x3xf32, #tpu.memory_space<vmem>>, vector<2x1x3xf32>
    %c0_287 = arith.constant 0 : index
    %c57_288 = arith.constant 57 : index
    %c0_289 = arith.constant 0 : index
    %231 = vector.load %arg3[%c0_287, %c57_288, %c0_289] : memref<2x256x3xf32, #tpu.memory_space<vmem>>, vector<2x1x3xf32>
    tpu.vector_store %arg3[%c0_287, %c57_288, %c0_289], %230 {strides = array<i32>} : memref<2x256x3xf32, #tpu.memory_space<vmem>>, vector<2x1x3xf32>,
    %c58 = arith.constant 58 : index
    %232 = memref.load %arg1[%c58] : memref<256xi32, #tpu.memory_space<smem>>
    %c0_290 = arith.constant 0 : index
    %233 = arith.index_cast %232 : i32 to index
    %c0_291 = arith.constant 0 : index
    %234 = vector.load %arg2[%c0_290, %233, %c0_291] : memref<2x5023x3xf32, #tpu.memory_space<vmem>>, vector<2x1x3xf32>
    %c0_292 = arith.constant 0 : index
    %c58_293 = arith.constant 58 : index
    %c0_294 = arith.constant 0 : index
    %235 = vector.load %arg3[%c0_292, %c58_293, %c0_294] : memref<2x256x3xf32, #tpu.memory_space<vmem>>, vector<2x1x3xf32>
    tpu.vector_store %arg3[%c0_292, %c58_293, %c0_294], %234 {strides = array<i32>} : memref<2x256x3xf32, #tpu.memory_space<vmem>>, vector<2x1x3xf32>,
    %c59 = arith.constant 59 : index
    %236 = memref.load %arg1[%c59] : memref<256xi32, #tpu.memory_space<smem>>
    %c0_295 = arith.constant 0 : index
    %237 = arith.index_cast %236 : i32 to index
    %c0_296 = arith.constant 0 : index
    %238 = vector.load %arg2[%c0_295, %237, %c0_296] : memref<2x5023x3xf32, #tpu.memory_space<vmem>>, vector<2x1x3xf32>
    %c0_297 = arith.constant 0 : index
    %c59_298 = arith.constant 59 : index
    %c0_299 = arith.constant 0 : index
    %239 = vector.load %arg3[%c0_297, %c59_298, %c0_299] : memref<2x256x3xf32, #tpu.memory_space<vmem>>, vector<2x1x3xf32>
    tpu.vector_store %arg3[%c0_297, %c59_298, %c0_299], %238 {strides = array<i32>} : memref<2x256x3xf32, #tpu.memory_space<vmem>>, vector<2x1x3xf32>,
    %c60 = arith.constant 60 : index
    %240 = memref.load %arg1[%c60] : memref<256xi32, #tpu.memory_space<smem>>
    %c0_300 = arith.constant 0 : index
    %241 = arith.index_cast %240 : i32 to index
    %c0_301 = arith.constant 0 : index
    %242 = vector.load %arg2[%c0_300, %241, %c0_301] : memref<2x5023x3xf32, #tpu.memory_space<vmem>>, vector<2x1x3xf32>
    %c0_302 = arith.constant 0 : index
    %c60_303 = arith.constant 60 : index
    %c0_304 = arith.constant 0 : index
    %243 = vector.load %arg3[%c0_302, %c60_303, %c0_304] : memref<2x256x3xf32, #tpu.memory_space<vmem>>, vector<2x1x3xf32>
    tpu.vector_store %arg3[%c0_302, %c60_303, %c0_304], %242 {strides = array<i32>} : memref<2x256x3xf32, #tpu.memory_space<vmem>>, vector<2x1x3xf32>,
    %c61 = arith.constant 61 : index
    %244 = memref.load %arg1[%c61] : memref<256xi32, #tpu.memory_space<smem>>
    %c0_305 = arith.constant 0 : index
    %245 = arith.index_cast %244 : i32 to index
    %c0_306 = arith.constant 0 : index
    %246 = vector.load %arg2[%c0_305, %245, %c0_306] : memref<2x5023x3xf32, #tpu.memory_space<vmem>>, vector<2x1x3xf32>
    %c0_307 = arith.constant 0 : index
    %c61_308 = arith.constant 61 : index
    %c0_309 = arith.constant 0 : index
    %247 = vector.load %arg3[%c0_307, %c61_308, %c0_309] : memref<2x256x3xf32, #tpu.memory_space<vmem>>, vector<2x1x3xf32>
    tpu.vector_store %arg3[%c0_307, %c61_308, %c0_309], %246 {strides = array<i32>} : memref<2x256x3xf32, #tpu.memory_space<vmem>>, vector<2x1x3xf32>,
    %c62 = arith.constant 62 : index
    %248 = memref.load %arg1[%c62] : memref<256xi32, #tpu.memory_space<smem>>
    %c0_310 = arith.constant 0 : index
    %249 = arith.index_cast %248 : i32 to index
    %c0_311 = arith.constant 0 : index
    %250 = vector.load %arg2[%c0_310, %249, %c0_311] : memref<2x5023x3xf32, #tpu.memory_space<vmem>>, vector<2x1x3xf32>
    %c0_312 = arith.constant 0 : index
    %c62_313 = arith.constant 62 : index
    %c0_314 = arith.constant 0 : index
    %251 = vector.load %arg3[%c0_312, %c62_313, %c0_314] : memref<2x256x3xf32, #tpu.memory_space<vmem>>, vector<2x1x3xf32>
    tpu.vector_store %arg3[%c0_312, %c62_313, %c0_314], %250 {strides = array<i32>} : memref<2x256x3xf32, #tpu.memory_space<vmem>>, vector<2x1x3xf32>,
    %c63 = arith.constant 63 : index
    %252 = memref.load %arg1[%c63] : memref<256xi32, #tpu.memory_space<smem>>
    %c0_315 = arith.constant 0 : index
    %253 = arith.index_cast %252 : i32 to index
    %c0_316 = arith.constant 0 : index
    %254 = vector.load %arg2[%c0_315, %253, %c0_316] : memref<2x5023x3xf32, #tpu.memory_space<vmem>>, vector<2x1x3xf32>
    %c0_317 = arith.constant 0 : index
    %c63_318 = arith.constant 63 : index
    %c0_319 = arith.constant 0 : index
    %255 = vector.load %arg3[%c0_317, %c63_318, %c0_319] : memref<2x256x3xf32, #tpu.memory_space<vmem>>, vector<2x1x3xf32>
    tpu.vector_store %arg3[%c0_317, %c63_318, %c0_319], %254 {strides = array<i32>} : memref<2x256x3xf32, #tpu.memory_space<vmem>>, vector<2x1x3xf32>,
    %c64 = arith.constant 64 : index
    %256 = memref.load %arg1[%c64] : memref<256xi32, #tpu.memory_space<smem>>
    %c0_320 = arith.constant 0 : index
    %257 = arith.index_cast %256 : i32 to index
    %c0_321 = arith.constant 0 : index
    %258 = vector.load %arg2[%c0_320, %257, %c0_321] : memref<2x5023x3xf32, #tpu.memory_space<vmem>>, vector<2x1x3xf32>
    %c0_322 = arith.constant 0 : index
    %c64_323 = arith.constant 64 : index
    %c0_324 = arith.constant 0 : index
    %259 = vector.load %arg3[%c0_322, %c64_323, %c0_324] : memref<2x256x3xf32, #tpu.memory_space<vmem>>, vector<2x1x3xf32>
    tpu.vector_store %arg3[%c0_322, %c64_323, %c0_324], %258 {strides = array<i32>} : memref<2x256x3xf32, #tpu.memory_space<vmem>>, vector<2x1x3xf32>,
    %c65 = arith.constant 65 : index
    %260 = memref.load %arg1[%c65] : memref<256xi32, #tpu.memory_space<smem>>
    %c0_325 = arith.constant 0 : index
    %261 = arith.index_cast %260 : i32 to index
    %c0_326 = arith.constant 0 : index
    %262 = vector.load %arg2[%c0_325, %261, %c0_326] : memref<2x5023x3xf32, #tpu.memory_space<vmem>>, vector<2x1x3xf32>
    %c0_327 = arith.constant 0 : index
    %c65_328 = arith.constant 65 : index
    %c0_329 = arith.constant 0 : index
    %263 = vector.load %arg3[%c0_327, %c65_328, %c0_329] : memref<2x256x3xf32, #tpu.memory_space<vmem>>, vector<2x1x3xf32>
    tpu.vector_store %arg3[%c0_327, %c65_328, %c0_329], %262 {strides = array<i32>} : memref<2x256x3xf32, #tpu.memory_space<vmem>>, vector<2x1x3xf32>,
    %c66 = arith.constant 66 : index
    %264 = memref.load %arg1[%c66] : memref<256xi32, #tpu.memory_space<smem>>
    %c0_330 = arith.constant 0 : index
    %265 = arith.index_cast %264 : i32 to index
    %c0_331 = arith.constant 0 : index
    %266 = vector.load %arg2[%c0_330, %265, %c0_331] : memref<2x5023x3xf32, #tpu.memory_space<vmem>>, vector<2x1x3xf32>
    %c0_332 = arith.constant 0 : index
    %c66_333 = arith.constant 66 : index
    %c0_334 = arith.constant 0 : index
    %267 = vector.load %arg3[%c0_332, %c66_333, %c0_334] : memref<2x256x3xf32, #tpu.memory_space<vmem>>, vector<2x1x3xf32>
    tpu.vector_store %arg3[%c0_332, %c66_333, %c0_334], %266 {strides = array<i32>} : memref<2x256x3xf32, #tpu.memory_space<vmem>>, vector<2x1x3xf32>,
    %c67 = arith.constant 67 : index
    %268 = memref.load %arg1[%c67] : memref<256xi32, #tpu.memory_space<smem>>
    %c0_335 = arith.constant 0 : index
    %269 = arith.index_cast %268 : i32 to index
    %c0_336 = arith.constant 0 : index
    %270 = vector.load %arg2[%c0_335, %269, %c0_336] : memref<2x5023x3xf32, #tpu.memory_space<vmem>>, vector<2x1x3xf32>
    %c0_337 = arith.constant 0 : index
    %c67_338 = arith.constant 67 : index
    %c0_339 = arith.constant 0 : index
    %271 = vector.load %arg3[%c0_337, %c67_338, %c0_339] : memref<2x256x3xf32, #tpu.memory_space<vmem>>, vector<2x1x3xf32>
    tpu.vector_store %arg3[%c0_337, %c67_338, %c0_339], %270 {strides = array<i32>} : memref<2x256x3xf32, #tpu.memory_space<vmem>>, vector<2x1x3xf32>,
    %c68 = arith.constant 68 : index
    %272 = memref.load %arg1[%c68] : memref<256xi32, #tpu.memory_space<smem>>
    %c0_340 = arith.constant 0 : index
    %273 = arith.index_cast %272 : i32 to index
    %c0_341 = arith.constant 0 : index
    %274 = vector.load %arg2[%c0_340, %273, %c0_341] : memref<2x5023x3xf32, #tpu.memory_space<vmem>>, vector<2x1x3xf32>
    %c0_342 = arith.constant 0 : index
    %c68_343 = arith.constant 68 : index
    %c0_344 = arith.constant 0 : index
    %275 = vector.load %arg3[%c0_342, %c68_343, %c0_344] : memref<2x256x3xf32, #tpu.memory_space<vmem>>, vector<2x1x3xf32>
    tpu.vector_store %arg3[%c0_342, %c68_343, %c0_344], %274 {strides = array<i32>} : memref<2x256x3xf32, #tpu.memory_space<vmem>>, vector<2x1x3xf32>,
    %c69 = arith.constant 69 : index
    %276 = memref.load %arg1[%c69] : memref<256xi32, #tpu.memory_space<smem>>
    %c0_345 = arith.constant 0 : index
    %277 = arith.index_cast %276 : i32 to index
    %c0_346 = arith.constant 0 : index
    %278 = vector.load %arg2[%c0_345, %277, %c0_346] : memref<2x5023x3xf32, #tpu.memory_space<vmem>>, vector<2x1x3xf32>
    %c0_347 = arith.constant 0 : index
    %c69_348 = arith.constant 69 : index
    %c0_349 = arith.constant 0 : index
    %279 = vector.load %arg3[%c0_347, %c69_348, %c0_349] : memref<2x256x3xf32, #tpu.memory_space<vmem>>, vector<2x1x3xf32>
    tpu.vector_store %arg3[%c0_347, %c69_348, %c0_349], %278 {strides = array<i32>} : memref<2x256x3xf32, #tpu.memory_space<vmem>>, vector<2x1x3xf32>,
    %c70 = arith.constant 70 : index
    %280 = memref.load %arg1[%c70] : memref<256xi32, #tpu.memory_space<smem>>
    %c0_350 = arith.constant 0 : index
    %281 = arith.index_cast %280 : i32 to index
    %c0_351 = arith.constant 0 : index
    %282 = vector.load %arg2[%c0_350, %281, %c0_351] : memref<2x5023x3xf32, #tpu.memory_space<vmem>>, vector<2x1x3xf32>
    %c0_352 = arith.constant 0 : index
    %c70_353 = arith.constant 70 : index
    %c0_354 = arith.constant 0 : index
    %283 = vector.load %arg3[%c0_352, %c70_353, %c0_354] : memref<2x256x3xf32, #tpu.memory_space<vmem>>, vector<2x1x3xf32>
    tpu.vector_store %arg3[%c0_352, %c70_353, %c0_354], %282 {strides = array<i32>} : memref<2x256x3xf32, #tpu.memory_space<vmem>>, vector<2x1x3xf32>,
    %c71 = arith.constant 71 : index
    %284 = memref.load %arg1[%c71] : memref<256xi32, #tpu.memory_space<smem>>
    %c0_355 = arith.constant 0 : index
    %285 = arith.index_cast %284 : i32 to index
    %c0_356 = arith.constant 0 : index
    %286 = vector.load %arg2[%c0_355, %285, %c0_356] : memref<2x5023x3xf32, #tpu.memory_space<vmem>>, vector<2x1x3xf32>
    %c0_357 = arith.constant 0 : index
    %c71_358 = arith.constant 71 : index
    %c0_359 = arith.constant 0 : index
    %287 = vector.load %arg3[%c0_357, %c71_358, %c0_359] : memref<2x256x3xf32, #tpu.memory_space<vmem>>, vector<2x1x3xf32>
    tpu.vector_store %arg3[%c0_357, %c71_358, %c0_359], %286 {strides = array<i32>} : memref<2x256x3xf32, #tpu.memory_space<vmem>>, vector<2x1x3xf32>,
    %c72 = arith.constant 72 : index
    %288 = memref.load %arg1[%c72] : memref<256xi32, #tpu.memory_space<smem>>
    %c0_360 = arith.constant 0 : index
    %289 = arith.index_cast %288 : i32 to index
    %c0_361 = arith.constant 0 : index
    %290 = vector.load %arg2[%c0_360, %289, %c0_361] : memref<2x5023x3xf32, #tpu.memory_space<vmem>>, vector<2x1x3xf32>
    %c0_362 = arith.constant 0 : index
    %c72_363 = arith.constant 72 : index
    %c0_364 = arith.constant 0 : index
    %291 = vector.load %arg3[%c0_362, %c72_363, %c0_364] : memref<2x256x3xf32, #tpu.memory_space<vmem>>, vector<2x1x3xf32>
    tpu.vector_store %arg3[%c0_362, %c72_363, %c0_364], %290 {strides = array<i32>} : memref<2x256x3xf32, #tpu.memory_space<vmem>>, vector<2x1x3xf32>,
    %c73 = arith.constant 73 : index
    %292 = memref.load %arg1[%c73] : memref<256xi32, #tpu.memory_space<smem>>
    %c0_365 = arith.constant 0 : index
    %293 = arith.index_cast %292 : i32 to index
    %c0_366 = arith.constant 0 : index
    %294 = vector.load %arg2[%c0_365, %293, %c0_366] : memref<2x5023x3xf32, #tpu.memory_space<vmem>>, vector<2x1x3xf32>
    %c0_367 = arith.constant 0 : index
    %c73_368 = arith.constant 73 : index
    %c0_369 = arith.constant 0 : index
    %295 = vector.load %arg3[%c0_367, %c73_368, %c0_369] : memref<2x256x3xf32, #tpu.memory_space<vmem>>, vector<2x1x3xf32>
    tpu.vector_store %arg3[%c0_367, %c73_368, %c0_369], %294 {strides = array<i32>} : memref<2x256x3xf32, #tpu.memory_space<vmem>>, vector<2x1x3xf32>,
    %c74 = arith.constant 74 : index
    %296 = memref.load %arg1[%c74] : memref<256xi32, #tpu.memory_space<smem>>
    %c0_370 = arith.constant 0 : index
    %297 = arith.index_cast %296 : i32 to index
    %c0_371 = arith.constant 0 : index
    %298 = vector.load %arg2[%c0_370, %297, %c0_371] : memref<2x5023x3xf32, #tpu.memory_space<vmem>>, vector<2x1x3xf32>
    %c0_372 = arith.constant 0 : index
    %c74_373 = arith.constant 74 : index
    %c0_374 = arith.constant 0 : index
    %299 = vector.load %arg3[%c0_372, %c74_373, %c0_374] : memref<2x256x3xf32, #tpu.memory_space<vmem>>, vector<2x1x3xf32>
    tpu.vector_store %arg3[%c0_372, %c74_373, %c0_374], %298 {strides = array<i32>} : memref<2x256x3xf32, #tpu.memory_space<vmem>>, vector<2x1x3xf32>,
    %c75 = arith.constant 75 : index
    %300 = memref.load %arg1[%c75] : memref<256xi32, #tpu.memory_space<smem>>
    %c0_375 = arith.constant 0 : index
    %301 = arith.index_cast %300 : i32 to index
    %c0_376 = arith.constant 0 : index
    %302 = vector.load %arg2[%c0_375, %301, %c0_376] : memref<2x5023x3xf32, #tpu.memory_space<vmem>>, vector<2x1x3xf32>
    %c0_377 = arith.constant 0 : index
    %c75_378 = arith.constant 75 : index
    %c0_379 = arith.constant 0 : index
    %303 = vector.load %arg3[%c0_377, %c75_378, %c0_379] : memref<2x256x3xf32, #tpu.memory_space<vmem>>, vector<2x1x3xf32>
    tpu.vector_store %arg3[%c0_377, %c75_378, %c0_379], %302 {strides = array<i32>} : memref<2x256x3xf32, #tpu.memory_space<vmem>>, vector<2x1x3xf32>,
    %c76 = arith.constant 76 : index
    %304 = memref.load %arg1[%c76] : memref<256xi32, #tpu.memory_space<smem>>
    %c0_380 = arith.constant 0 : index
    %305 = arith.index_cast %304 : i32 to index
    %c0_381 = arith.constant 0 : index
    %306 = vector.load %arg2[%c0_380, %305, %c0_381] : memref<2x5023x3xf32, #tpu.memory_space<vmem>>, vector<2x1x3xf32>
    %c0_382 = arith.constant 0 : index
    %c76_383 = arith.constant 76 : index
    %c0_384 = arith.constant 0 : index
    %307 = vector.load %arg3[%c0_382, %c76_383, %c0_384] : memref<2x256x3xf32, #tpu.memory_space<vmem>>, vector<2x1x3xf32>
    tpu.vector_store %arg3[%c0_382, %c76_383, %c0_384], %306 {strides = array<i32>} : memref<2x256x3xf32, #tpu.memory_space<vmem>>, vector<2x1x3xf32>,
    %c77 = arith.constant 77 : index
    %308 = memref.load %arg1[%c77] : memref<256xi32, #tpu.memory_space<smem>>
    %c0_385 = arith.constant 0 : index
    %309 = arith.index_cast %308 : i32 to index
    %c0_386 = arith.constant 0 : index
    %310 = vector.load %arg2[%c0_385, %309, %c0_386] : memref<2x5023x3xf32, #tpu.memory_space<vmem>>, vector<2x1x3xf32>
    %c0_387 = arith.constant 0 : index
    %c77_388 = arith.constant 77 : index
    %c0_389 = arith.constant 0 : index
    %311 = vector.load %arg3[%c0_387, %c77_388, %c0_389] : memref<2x256x3xf32, #tpu.memory_space<vmem>>, vector<2x1x3xf32>
    tpu.vector_store %arg3[%c0_387, %c77_388, %c0_389], %310 {strides = array<i32>} : memref<2x256x3xf32, #tpu.memory_space<vmem>>, vector<2x1x3xf32>,
    %c78 = arith.constant 78 : index
    %312 = memref.load %arg1[%c78] : memref<256xi32, #tpu.memory_space<smem>>
    %c0_390 = arith.constant 0 : index
    %313 = arith.index_cast %312 : i32 to index
    %c0_391 = arith.constant 0 : index
    %314 = vector.load %arg2[%c0_390, %313, %c0_391] : memref<2x5023x3xf32, #tpu.memory_space<vmem>>, vector<2x1x3xf32>
    %c0_392 = arith.constant 0 : index
    %c78_393 = arith.constant 78 : index
    %c0_394 = arith.constant 0 : index
    %315 = vector.load %arg3[%c0_392, %c78_393, %c0_394] : memref<2x256x3xf32, #tpu.memory_space<vmem>>, vector<2x1x3xf32>
    tpu.vector_store %arg3[%c0_392, %c78_393, %c0_394], %314 {strides = array<i32>} : memref<2x256x3xf32, #tpu.memory_space<vmem>>, vector<2x1x3xf32>,
    %c79 = arith.constant 79 : index
    %316 = memref.load %arg1[%c79] : memref<256xi32, #tpu.memory_space<smem>>
    %c0_395 = arith.constant 0 : index
    %317 = arith.index_cast %316 : i32 to index
    %c0_396 = arith.constant 0 : index
    %318 = vector.load %arg2[%c0_395, %317, %c0_396] : memref<2x5023x3xf32, #tpu.memory_space<vmem>>, vector<2x1x3xf32>
    %c0_397 = arith.constant 0 : index
    %c79_398 = arith.constant 79 : index
    %c0_399 = arith.constant 0 : index
    %319 = vector.load %arg3[%c0_397, %c79_398, %c0_399] : memref<2x256x3xf32, #tpu.memory_space<vmem>>, vector<2x1x3xf32>
    tpu.vector_store %arg3[%c0_397, %c79_398, %c0_399], %318 {strides = array<i32>} : memref<2x256x3xf32, #tpu.memory_space<vmem>>, vector<2x1x3xf32>,
    %c80 = arith.constant 80 : index
    %320 = memref.load %arg1[%c80] : memref<256xi32, #tpu.memory_space<smem>>
    %c0_400 = arith.constant 0 : index
    %321 = arith.index_cast %320 : i32 to index
    %c0_401 = arith.constant 0 : index
    %322 = vector.load %arg2[%c0_400, %321, %c0_401] : memref<2x5023x3xf32, #tpu.memory_space<vmem>>, vector<2x1x3xf32>
    %c0_402 = arith.constant 0 : index
    %c80_403 = arith.constant 80 : index
    %c0_404 = arith.constant 0 : index
    %323 = vector.load %arg3[%c0_402, %c80_403, %c0_404] : memref<2x256x3xf32, #tpu.memory_space<vmem>>, vector<2x1x3xf32>
    tpu.vector_store %arg3[%c0_402, %c80_403, %c0_404], %322 {strides = array<i32>} : memref<2x256x3xf32, #tpu.memory_space<vmem>>, vector<2x1x3xf32>,
    %c81 = arith.constant 81 : index
    %324 = memref.load %arg1[%c81] : memref<256xi32, #tpu.memory_space<smem>>
    %c0_405 = arith.constant 0 : index
    %325 = arith.index_cast %324 : i32 to index
    %c0_406 = arith.constant 0 : index
    %326 = vector.load %arg2[%c0_405, %325, %c0_406] : memref<2x5023x3xf32, #tpu.memory_space<vmem>>, vector<2x1x3xf32>
    %c0_407 = arith.constant 0 : index
    %c81_408 = arith.constant 81 : index
    %c0_409 = arith.constant 0 : index
    %327 = vector.load %arg3[%c0_407, %c81_408, %c0_409] : memref<2x256x3xf32, #tpu.memory_space<vmem>>, vector<2x1x3xf32>
    tpu.vector_store %arg3[%c0_407, %c81_408, %c0_409], %326 {strides = array<i32>} : memref<2x256x3xf32, #tpu.memory_space<vmem>>, vector<2x1x3xf32>,
    %c82 = arith.constant 82 : index
    %328 = memref.load %arg1[%c82] : memref<256xi32, #tpu.memory_space<smem>>
    %c0_410 = arith.constant 0 : index
    %329 = arith.index_cast %328 : i32 to index
    %c0_411 = arith.constant 0 : index
    %330 = vector.load %arg2[%c0_410, %329, %c0_411] : memref<2x5023x3xf32, #tpu.memory_space<vmem>>, vector<2x1x3xf32>
    %c0_412 = arith.constant 0 : index
    %c82_413 = arith.constant 82 : index
    %c0_414 = arith.constant 0 : index
    %331 = vector.load %arg3[%c0_412, %c82_413, %c0_414] : memref<2x256x3xf32, #tpu.memory_space<vmem>>, vector<2x1x3xf32>
    tpu.vector_store %arg3[%c0_412, %c82_413, %c0_414], %330 {strides = array<i32>} : memref<2x256x3xf32, #tpu.memory_space<vmem>>, vector<2x1x3xf32>,
    %c83 = arith.constant 83 : index
    %332 = memref.load %arg1[%c83] : memref<256xi32, #tpu.memory_space<smem>>
    %c0_415 = arith.constant 0 : index
    %333 = arith.index_cast %332 : i32 to index
    %c0_416 = arith.constant 0 : index
    %334 = vector.load %arg2[%c0_415, %333, %c0_416] : memref<2x5023x3xf32, #tpu.memory_space<vmem>>, vector<2x1x3xf32>
    %c0_417 = arith.constant 0 : index
    %c83_418 = arith.constant 83 : index
    %c0_419 = arith.constant 0 : index
    %335 = vector.load %arg3[%c0_417, %c83_418, %c0_419] : memref<2x256x3xf32, #tpu.memory_space<vmem>>, vector<2x1x3xf32>
    tpu.vector_store %arg3[%c0_417, %c83_418, %c0_419], %334 {strides = array<i32>} : memref<2x256x3xf32, #tpu.memory_space<vmem>>, vector<2x1x3xf32>,
    %c84 = arith.constant 84 : index
    %336 = memref.load %arg1[%c84] : memref<256xi32, #tpu.memory_space<smem>>
    %c0_420 = arith.constant 0 : index
    %337 = arith.index_cast %336 : i32 to index
    %c0_421 = arith.constant 0 : index
    %338 = vector.load %arg2[%c0_420, %337, %c0_421] : memref<2x5023x3xf32, #tpu.memory_space<vmem>>, vector<2x1x3xf32>
    %c0_422 = arith.constant 0 : index
    %c84_423 = arith.constant 84 : index
    %c0_424 = arith.constant 0 : index
    %339 = vector.load %arg3[%c0_422, %c84_423, %c0_424] : memref<2x256x3xf32, #tpu.memory_space<vmem>>, vector<2x1x3xf32>
    tpu.vector_store %arg3[%c0_422, %c84_423, %c0_424], %338 {strides = array<i32>} : memref<2x256x3xf32, #tpu.memory_space<vmem>>, vector<2x1x3xf32>,
    %c85 = arith.constant 85 : index
    %340 = memref.load %arg1[%c85] : memref<256xi32, #tpu.memory_space<smem>>
    %c0_425 = arith.constant 0 : index
    %341 = arith.index_cast %340 : i32 to index
    %c0_426 = arith.constant 0 : index
    %342 = vector.load %arg2[%c0_425, %341, %c0_426] : memref<2x5023x3xf32, #tpu.memory_space<vmem>>, vector<2x1x3xf32>
    %c0_427 = arith.constant 0 : index
    %c85_428 = arith.constant 85 : index
    %c0_429 = arith.constant 0 : index
    %343 = vector.load %arg3[%c0_427, %c85_428, %c0_429] : memref<2x256x3xf32, #tpu.memory_space<vmem>>, vector<2x1x3xf32>
    tpu.vector_store %arg3[%c0_427, %c85_428, %c0_429], %342 {strides = array<i32>} : memref<2x256x3xf32, #tpu.memory_space<vmem>>, vector<2x1x3xf32>,
    %c86 = arith.constant 86 : index
    %344 = memref.load %arg1[%c86] : memref<256xi32, #tpu.memory_space<smem>>
    %c0_430 = arith.constant 0 : index
    %345 = arith.index_cast %344 : i32 to index
    %c0_431 = arith.constant 0 : index
    %346 = vector.load %arg2[%c0_430, %345, %c0_431] : memref<2x5023x3xf32, #tpu.memory_space<vmem>>, vector<2x1x3xf32>
    %c0_432 = arith.constant 0 : index
    %c86_433 = arith.constant 86 : index
    %c0_434 = arith.constant 0 : index
    %347 = vector.load %arg3[%c0_432, %c86_433, %c0_434] : memref<2x256x3xf32, #tpu.memory_space<vmem>>, vector<2x1x3xf32>
    tpu.vector_store %arg3[%c0_432, %c86_433, %c0_434], %346 {strides = array<i32>} : memref<2x256x3xf32, #tpu.memory_space<vmem>>, vector<2x1x3xf32>,
    %c87 = arith.constant 87 : index
    %348 = memref.load %arg1[%c87] : memref<256xi32, #tpu.memory_space<smem>>
    %c0_435 = arith.constant 0 : index
    %349 = arith.index_cast %348 : i32 to index
    %c0_436 = arith.constant 0 : index
    %350 = vector.load %arg2[%c0_435, %349, %c0_436] : memref<2x5023x3xf32, #tpu.memory_space<vmem>>, vector<2x1x3xf32>
    %c0_437 = arith.constant 0 : index
    %c87_438 = arith.constant 87 : index
    %c0_439 = arith.constant 0 : index
    %351 = vector.load %arg3[%c0_437, %c87_438, %c0_439] : memref<2x256x3xf32, #tpu.memory_space<vmem>>, vector<2x1x3xf32>
    tpu.vector_store %arg3[%c0_437, %c87_438, %c0_439], %350 {strides = array<i32>} : memref<2x256x3xf32, #tpu.memory_space<vmem>>, vector<2x1x3xf32>,
    %c88 = arith.constant 88 : index
    %352 = memref.load %arg1[%c88] : memref<256xi32, #tpu.memory_space<smem>>
    %c0_440 = arith.constant 0 : index
    %353 = arith.index_cast %352 : i32 to index
    %c0_441 = arith.constant 0 : index
    %354 = vector.load %arg2[%c0_440, %353, %c0_441] : memref<2x5023x3xf32, #tpu.memory_space<vmem>>, vector<2x1x3xf32>
    %c0_442 = arith.constant 0 : index
    %c88_443 = arith.constant 88 : index
    %c0_444 = arith.constant 0 : index
    %355 = vector.load %arg3[%c0_442, %c88_443, %c0_444] : memref<2x256x3xf32, #tpu.memory_space<vmem>>, vector<2x1x3xf32>
    tpu.vector_store %arg3[%c0_442, %c88_443, %c0_444], %354 {strides = array<i32>} : memref<2x256x3xf32, #tpu.memory_space<vmem>>, vector<2x1x3xf32>,
    %c89 = arith.constant 89 : index
    %356 = memref.load %arg1[%c89] : memref<256xi32, #tpu.memory_space<smem>>
    %c0_445 = arith.constant 0 : index
    %357 = arith.index_cast %356 : i32 to index
    %c0_446 = arith.constant 0 : index
    %358 = vector.load %arg2[%c0_445, %357, %c0_446] : memref<2x5023x3xf32, #tpu.memory_space<vmem>>, vector<2x1x3xf32>
    %c0_447 = arith.constant 0 : index
    %c89_448 = arith.constant 89 : index
    %c0_449 = arith.constant 0 : index
    %359 = vector.load %arg3[%c0_447, %c89_448, %c0_449] : memref<2x256x3xf32, #tpu.memory_space<vmem>>, vector<2x1x3xf32>
    tpu.vector_store %arg3[%c0_447, %c89_448, %c0_449], %358 {strides = array<i32>} : memref<2x256x3xf32, #tpu.memory_space<vmem>>, vector<2x1x3xf32>,
    %c90 = arith.constant 90 : index
    %360 = memref.load %arg1[%c90] : memref<256xi32, #tpu.memory_space<smem>>
    %c0_450 = arith.constant 0 : index
    %361 = arith.index_cast %360 : i32 to index
    %c0_451 = arith.constant 0 : index
    %362 = vector.load %arg2[%c0_450, %361, %c0_451] : memref<2x5023x3xf32, #tpu.memory_space<vmem>>, vector<2x1x3xf32>
    %c0_452 = arith.constant 0 : index
    %c90_453 = arith.constant 90 : index
    %c0_454 = arith.constant 0 : index
    %363 = vector.load %arg3[%c0_452, %c90_453, %c0_454] : memref<2x256x3xf32, #tpu.memory_space<vmem>>, vector<2x1x3xf32>
    tpu.vector_store %arg3[%c0_452, %c90_453, %c0_454], %362 {strides = array<i32>} : memref<2x256x3xf32, #tpu.memory_space<vmem>>, vector<2x1x3xf32>,
    %c91 = arith.constant 91 : index
    %364 = memref.load %arg1[%c91] : memref<256xi32, #tpu.memory_space<smem>>
    %c0_455 = arith.constant 0 : index
    %365 = arith.index_cast %364 : i32 to index
    %c0_456 = arith.constant 0 : index
    %366 = vector.load %arg2[%c0_455, %365, %c0_456] : memref<2x5023x3xf32, #tpu.memory_space<vmem>>, vector<2x1x3xf32>
    %c0_457 = arith.constant 0 : index
    %c91_458 = arith.constant 91 : index
    %c0_459 = arith.constant 0 : index
    %367 = vector.load %arg3[%c0_457, %c91_458, %c0_459] : memref<2x256x3xf32, #tpu.memory_space<vmem>>, vector<2x1x3xf32>
    tpu.vector_store %arg3[%c0_457, %c91_458, %c0_459], %366 {strides = array<i32>} : memref<2x256x3xf32, #tpu.memory_space<vmem>>, vector<2x1x3xf32>,
    %c92 = arith.constant 92 : index
    %368 = memref.load %arg1[%c92] : memref<256xi32, #tpu.memory_space<smem>>
    %c0_460 = arith.constant 0 : index
    %369 = arith.index_cast %368 : i32 to index
    %c0_461 = arith.constant 0 : index
    %370 = vector.load %arg2[%c0_460, %369, %c0_461] : memref<2x5023x3xf32, #tpu.memory_space<vmem>>, vector<2x1x3xf32>
    %c0_462 = arith.constant 0 : index
    %c92_463 = arith.constant 92 : index
    %c0_464 = arith.constant 0 : index
    %371 = vector.load %arg3[%c0_462, %c92_463, %c0_464] : memref<2x256x3xf32, #tpu.memory_space<vmem>>, vector<2x1x3xf32>
    tpu.vector_store %arg3[%c0_462, %c92_463, %c0_464], %370 {strides = array<i32>} : memref<2x256x3xf32, #tpu.memory_space<vmem>>, vector<2x1x3xf32>,
    %c93 = arith.constant 93 : index
    %372 = memref.load %arg1[%c93] : memref<256xi32, #tpu.memory_space<smem>>
    %c0_465 = arith.constant 0 : index
    %373 = arith.index_cast %372 : i32 to index
    %c0_466 = arith.constant 0 : index
    %374 = vector.load %arg2[%c0_465, %373, %c0_466] : memref<2x5023x3xf32, #tpu.memory_space<vmem>>, vector<2x1x3xf32>
    %c0_467 = arith.constant 0 : index
    %c93_468 = arith.constant 93 : index
    %c0_469 = arith.constant 0 : index
    %375 = vector.load %arg3[%c0_467, %c93_468, %c0_469] : memref<2x256x3xf32, #tpu.memory_space<vmem>>, vector<2x1x3xf32>
    tpu.vector_store %arg3[%c0_467, %c93_468, %c0_469], %374 {strides = array<i32>} : memref<2x256x3xf32, #tpu.memory_space<vmem>>, vector<2x1x3xf32>,
    %c94 = arith.constant 94 : index
    %376 = memref.load %arg1[%c94] : memref<256xi32, #tpu.memory_space<smem>>
    %c0_470 = arith.constant 0 : index
    %377 = arith.index_cast %376 : i32 to index
    %c0_471 = arith.constant 0 : index
    %378 = vector.load %arg2[%c0_470, %377, %c0_471] : memref<2x5023x3xf32, #tpu.memory_space<vmem>>, vector<2x1x3xf32>
    %c0_472 = arith.constant 0 : index
    %c94_473 = arith.constant 94 : index
    %c0_474 = arith.constant 0 : index
    %379 = vector.load %arg3[%c0_472, %c94_473, %c0_474] : memref<2x256x3xf32, #tpu.memory_space<vmem>>, vector<2x1x3xf32>
    tpu.vector_store %arg3[%c0_472, %c94_473, %c0_474], %378 {strides = array<i32>} : memref<2x256x3xf32, #tpu.memory_space<vmem>>, vector<2x1x3xf32>,
    %c95 = arith.constant 95 : index
    %380 = memref.load %arg1[%c95] : memref<256xi32, #tpu.memory_space<smem>>
    %c0_475 = arith.constant 0 : index
    %381 = arith.index_cast %380 : i32 to index
    %c0_476 = arith.constant 0 : index
    %382 = vector.load %arg2[%c0_475, %381, %c0_476] : memref<2x5023x3xf32, #tpu.memory_space<vmem>>, vector<2x1x3xf32>
    %c0_477 = arith.constant 0 : index
    %c95_478 = arith.constant 95 : index
    %c0_479 = arith.constant 0 : index
    %383 = vector.load %arg3[%c0_477, %c95_478, %c0_479] : memref<2x256x3xf32, #tpu.memory_space<vmem>>, vector<2x1x3xf32>
    tpu.vector_store %arg3[%c0_477, %c95_478, %c0_479], %382 {strides = array<i32>} : memref<2x256x3xf32, #tpu.memory_space<vmem>>, vector<2x1x3xf32>,
    %c96 = arith.constant 96 : index
    %384 = memref.load %arg1[%c96] : memref<256xi32, #tpu.memory_space<smem>>
    %c0_480 = arith.constant 0 : index
    %385 = arith.index_cast %384 : i32 to index
    %c0_481 = arith.constant 0 : index
    %386 = vector.load %arg2[%c0_480, %385, %c0_481] : memref<2x5023x3xf32, #tpu.memory_space<vmem>>, vector<2x1x3xf32>
    %c0_482 = arith.constant 0 : index
    %c96_483 = arith.constant 96 : index
    %c0_484 = arith.constant 0 : index
    %387 = vector.load %arg3[%c0_482, %c96_483, %c0_484] : memref<2x256x3xf32, #tpu.memory_space<vmem>>, vector<2x1x3xf32>
    tpu.vector_store %arg3[%c0_482, %c96_483, %c0_484], %386 {strides = array<i32>} : memref<2x256x3xf32, #tpu.memory_space<vmem>>, vector<2x1x3xf32>,
    %c97 = arith.constant 97 : index
    %388 = memref.load %arg1[%c97] : memref<256xi32, #tpu.memory_space<smem>>
    %c0_485 = arith.constant 0 : index
    %389 = arith.index_cast %388 : i32 to index
    %c0_486 = arith.constant 0 : index
    %390 = vector.load %arg2[%c0_485, %389, %c0_486] : memref<2x5023x3xf32, #tpu.memory_space<vmem>>, vector<2x1x3xf32>
    %c0_487 = arith.constant 0 : index
    %c97_488 = arith.constant 97 : index
    %c0_489 = arith.constant 0 : index
    %391 = vector.load %arg3[%c0_487, %c97_488, %c0_489] : memref<2x256x3xf32, #tpu.memory_space<vmem>>, vector<2x1x3xf32>
    tpu.vector_store %arg3[%c0_487, %c97_488, %c0_489], %390 {strides = array<i32>} : memref<2x256x3xf32, #tpu.memory_space<vmem>>, vector<2x1x3xf32>,
    %c98 = arith.constant 98 : index
    %392 = memref.load %arg1[%c98] : memref<256xi32, #tpu.memory_space<smem>>
    %c0_490 = arith.constant 0 : index
    %393 = arith.index_cast %392 : i32 to index
    %c0_491 = arith.constant 0 : index
    %394 = vector.load %arg2[%c0_490, %393, %c0_491] : memref<2x5023x3xf32, #tpu.memory_space<vmem>>, vector<2x1x3xf32>
    %c0_492 = arith.constant 0 : index
    %c98_493 = arith.constant 98 : index
    %c0_494 = arith.constant 0 : index
    %395 = vector.load %arg3[%c0_492, %c98_493, %c0_494] : memref<2x256x3xf32, #tpu.memory_space<vmem>>, vector<2x1x3xf32>
    tpu.vector_store %arg3[%c0_492, %c98_493, %c0_494], %394 {strides = array<i32>} : memref<2x256x3xf32, #tpu.memory_space<vmem>>, vector<2x1x3xf32>,
    %c99 = arith.constant 99 : index
    %396 = memref.load %arg1[%c99] : memref<256xi32, #tpu.memory_space<smem>>
    %c0_495 = arith.constant 0 : index
    %397 = arith.index_cast %396 : i32 to index
    %c0_496 = arith.constant 0 : index
    %398 = vector.load %arg2[%c0_495, %397, %c0_496] : memref<2x5023x3xf32, #tpu.memory_space<vmem>>, vector<2x1x3xf32>
    %c0_497 = arith.constant 0 : index
    %c99_498 = arith.constant 99 : index
    %c0_499 = arith.constant 0 : index
    %399 = vector.load %arg3[%c0_497, %c99_498, %c0_499] : memref<2x256x3xf32, #tpu.memory_space<vmem>>, vector<2x1x3xf32>
    tpu.vector_store %arg3[%c0_497, %c99_498, %c0_499], %398 {strides = array<i32>} : memref<2x256x3xf32, #tpu.memory_space<vmem>>, vector<2x1x3xf32>,
    %c100 = arith.constant 100 : index
    %400 = memref.load %arg1[%c100] : memref<256xi32, #tpu.memory_space<smem>>
    %c0_500 = arith.constant 0 : index
    %401 = arith.index_cast %400 : i32 to index
    %c0_501 = arith.constant 0 : index
    %402 = vector.load %arg2[%c0_500, %401, %c0_501] : memref<2x5023x3xf32, #tpu.memory_space<vmem>>, vector<2x1x3xf32>
    %c0_502 = arith.constant 0 : index
    %c100_503 = arith.constant 100 : index
    %c0_504 = arith.constant 0 : index
    %403 = vector.load %arg3[%c0_502, %c100_503, %c0_504] : memref<2x256x3xf32, #tpu.memory_space<vmem>>, vector<2x1x3xf32>
    tpu.vector_store %arg3[%c0_502, %c100_503, %c0_504], %402 {strides = array<i32>} : memref<2x256x3xf32, #tpu.memory_space<vmem>>, vector<2x1x3xf32>,
    %c101 = arith.constant 101 : index
    %404 = memref.load %arg1[%c101] : memref<256xi32, #tpu.memory_space<smem>>
    %c0_505 = arith.constant 0 : index
    %405 = arith.index_cast %404 : i32 to index
    %c0_506 = arith.constant 0 : index
    %406 = vector.load %arg2[%c0_505, %405, %c0_506] : memref<2x5023x3xf32, #tpu.memory_space<vmem>>, vector<2x1x3xf32>
    %c0_507 = arith.constant 0 : index
    %c101_508 = arith.constant 101 : index
    %c0_509 = arith.constant 0 : index
    %407 = vector.load %arg3[%c0_507, %c101_508, %c0_509] : memref<2x256x3xf32, #tpu.memory_space<vmem>>, vector<2x1x3xf32>
    tpu.vector_store %arg3[%c0_507, %c101_508, %c0_509], %406 {strides = array<i32>} : memref<2x256x3xf32, #tpu.memory_space<vmem>>, vector<2x1x3xf32>,
    %c102 = arith.constant 102 : index
    %408 = memref.load %arg1[%c102] : memref<256xi32, #tpu.memory_space<smem>>
    %c0_510 = arith.constant 0 : index
    %409 = arith.index_cast %408 : i32 to index
    %c0_511 = arith.constant 0 : index
    %410 = vector.load %arg2[%c0_510, %409, %c0_511] : memref<2x5023x3xf32, #tpu.memory_space<vmem>>, vector<2x1x3xf32>
    %c0_512 = arith.constant 0 : index
    %c102_513 = arith.constant 102 : index
    %c0_514 = arith.constant 0 : index
    %411 = vector.load %arg3[%c0_512, %c102_513, %c0_514] : memref<2x256x3xf32, #tpu.memory_space<vmem>>, vector<2x1x3xf32>
    tpu.vector_store %arg3[%c0_512, %c102_513, %c0_514], %410 {strides = array<i32>} : memref<2x256x3xf32, #tpu.memory_space<vmem>>, vector<2x1x3xf32>,
    %c103 = arith.constant 103 : index
    %412 = memref.load %arg1[%c103] : memref<256xi32, #tpu.memory_space<smem>>
    %c0_515 = arith.constant 0 : index
    %413 = arith.index_cast %412 : i32 to index
    %c0_516 = arith.constant 0 : index
    %414 = vector.load %arg2[%c0_515, %413, %c0_516] : memref<2x5023x3xf32, #tpu.memory_space<vmem>>, vector<2x1x3xf32>
    %c0_517 = arith.constant 0 : index
    %c103_518 = arith.constant 103 : index
    %c0_519 = arith.constant 0 : index
    %415 = vector.load %arg3[%c0_517, %c103_518, %c0_519] : memref<2x256x3xf32, #tpu.memory_space<vmem>>, vector<2x1x3xf32>
    tpu.vector_store %arg3[%c0_517, %c103_518, %c0_519], %414 {strides = array<i32>} : memref<2x256x3xf32, #tpu.memory_space<vmem>>, vector<2x1x3xf32>,
    %c104 = arith.constant 104 : index
    %416 = memref.load %arg1[%c104] : memref<256xi32, #tpu.memory_space<smem>>
    %c0_520 = arith.constant 0 : index
    %417 = arith.index_cast %416 : i32 to index
    %c0_521 = arith.constant 0 : index
    %418 = vector.load %arg2[%c0_520, %417, %c0_521] : memref<2x5023x3xf32, #tpu.memory_space<vmem>>, vector<2x1x3xf32>
    %c0_522 = arith.constant 0 : index
    %c104_523 = arith.constant 104 : index
    %c0_524 = arith.constant 0 : index
    %419 = vector.load %arg3[%c0_522, %c104_523, %c0_524] : memref<2x256x3xf32, #tpu.memory_space<vmem>>, vector<2x1x3xf32>
    tpu.vector_store %arg3[%c0_522, %c104_523, %c0_524], %418 {strides = array<i32>} : memref<2x256x3xf32, #tpu.memory_space<vmem>>, vector<2x1x3xf32>,
    %c105 = arith.constant 105 : index
    %420 = memref.load %arg1[%c105] : memref<256xi32, #tpu.memory_space<smem>>
    %c0_525 = arith.constant 0 : index
    %421 = arith.index_cast %420 : i32 to index
    %c0_526 = arith.constant 0 : index
    %422 = vector.load %arg2[%c0_525, %421, %c0_526] : memref<2x5023x3xf32, #tpu.memory_space<vmem>>, vector<2x1x3xf32>
    %c0_527 = arith.constant 0 : index
    %c105_528 = arith.constant 105 : index
    %c0_529 = arith.constant 0 : index
    %423 = vector.load %arg3[%c0_527, %c105_528, %c0_529] : memref<2x256x3xf32, #tpu.memory_space<vmem>>, vector<2x1x3xf32>
    tpu.vector_store %arg3[%c0_527, %c105_528, %c0_529], %422 {strides = array<i32>} : memref<2x256x3xf32, #tpu.memory_space<vmem>>, vector<2x1x3xf32>,
    %c106 = arith.constant 106 : index
    %424 = memref.load %arg1[%c106] : memref<256xi32, #tpu.memory_space<smem>>
    %c0_530 = arith.constant 0 : index
    %425 = arith.index_cast %424 : i32 to index
    %c0_531 = arith.constant 0 : index
    %426 = vector.load %arg2[%c0_530, %425, %c0_531] : memref<2x5023x3xf32, #tpu.memory_space<vmem>>, vector<2x1x3xf32>
    %c0_532 = arith.constant 0 : index
    %c106_533 = arith.constant 106 : index
    %c0_534 = arith.constant 0 : index
    %427 = vector.load %arg3[%c0_532, %c106_533, %c0_534] : memref<2x256x3xf32, #tpu.memory_space<vmem>>, vector<2x1x3xf32>
    tpu.vector_store %arg3[%c0_532, %c106_533, %c0_534], %426 {strides = array<i32>} : memref<2x256x3xf32, #tpu.memory_space<vmem>>, vector<2x1x3xf32>,
    %c107 = arith.constant 107 : index
    %428 = memref.load %arg1[%c107] : memref<256xi32, #tpu.memory_space<smem>>
    %c0_535 = arith.constant 0 : index
    %429 = arith.index_cast %428 : i32 to index
    %c0_536 = arith.constant 0 : index
    %430 = vector.load %arg2[%c0_535, %429, %c0_536] : memref<2x5023x3xf32, #tpu.memory_space<vmem>>, vector<2x1x3xf32>
    %c0_537 = arith.constant 0 : index
    %c107_538 = arith.constant 107 : index
    %c0_539 = arith.constant 0 : index
    %431 = vector.load %arg3[%c0_537, %c107_538, %c0_539] : memref<2x256x3xf32, #tpu.memory_space<vmem>>, vector<2x1x3xf32>
    tpu.vector_store %arg3[%c0_537, %c107_538, %c0_539], %430 {strides = array<i32>} : memref<2x256x3xf32, #tpu.memory_space<vmem>>, vector<2x1x3xf32>,
    %c108 = arith.constant 108 : index
    %432 = memref.load %arg1[%c108] : memref<256xi32, #tpu.memory_space<smem>>
    %c0_540 = arith.constant 0 : index
    %433 = arith.index_cast %432 : i32 to index
    %c0_541 = arith.constant 0 : index
    %434 = vector.load %arg2[%c0_540, %433, %c0_541] : memref<2x5023x3xf32, #tpu.memory_space<vmem>>, vector<2x1x3xf32>
    %c0_542 = arith.constant 0 : index
    %c108_543 = arith.constant 108 : index
    %c0_544 = arith.constant 0 : index
    %435 = vector.load %arg3[%c0_542, %c108_543, %c0_544] : memref<2x256x3xf32, #tpu.memory_space<vmem>>, vector<2x1x3xf32>
    tpu.vector_store %arg3[%c0_542, %c108_543, %c0_544], %434 {strides = array<i32>} : memref<2x256x3xf32, #tpu.memory_space<vmem>>, vector<2x1x3xf32>,
    %c109 = arith.constant 109 : index
    %436 = memref.load %arg1[%c109] : memref<256xi32, #tpu.memory_space<smem>>
    %c0_545 = arith.constant 0 : index
    %437 = arith.index_cast %436 : i32 to index
    %c0_546 = arith.constant 0 : index
    %438 = vector.load %arg2[%c0_545, %437, %c0_546] : memref<2x5023x3xf32, #tpu.memory_space<vmem>>, vector<2x1x3xf32>
    %c0_547 = arith.constant 0 : index
    %c109_548 = arith.constant 109 : index
    %c0_549 = arith.constant 0 : index
    %439 = vector.load %arg3[%c0_547, %c109_548, %c0_549] : memref<2x256x3xf32, #tpu.memory_space<vmem>>, vector<2x1x3xf32>
    tpu.vector_store %arg3[%c0_547, %c109_548, %c0_549], %438 {strides = array<i32>} : memref<2x256x3xf32, #tpu.memory_space<vmem>>, vector<2x1x3xf32>,
    %c110 = arith.constant 110 : index
    %440 = memref.load %arg1[%c110] : memref<256xi32, #tpu.memory_space<smem>>
    %c0_550 = arith.constant 0 : index
    %441 = arith.index_cast %440 : i32 to index
    %c0_551 = arith.constant 0 : index
    %442 = vector.load %arg2[%c0_550, %441, %c0_551] : memref<2x5023x3xf32, #tpu.memory_space<vmem>>, vector<2x1x3xf32>
    %c0_552 = arith.constant 0 : index
    %c110_553 = arith.constant 110 : index
    %c0_554 = arith.constant 0 : index
    %443 = vector.load %arg3[%c0_552, %c110_553, %c0_554] : memref<2x256x3xf32, #tpu.memory_space<vmem>>, vector<2x1x3xf32>
    tpu.vector_store %arg3[%c0_552, %c110_553, %c0_554], %442 {strides = array<i32>} : memref<2x256x3xf32, #tpu.memory_space<vmem>>, vector<2x1x3xf32>,
    %c111 = arith.constant 111 : index
    %444 = memref.load %arg1[%c111] : memref<256xi32, #tpu.memory_space<smem>>
    %c0_555 = arith.constant 0 : index
    %445 = arith.index_cast %444 : i32 to index
    %c0_556 = arith.constant 0 : index
    %446 = vector.load %arg2[%c0_555, %445, %c0_556] : memref<2x5023x3xf32, #tpu.memory_space<vmem>>, vector<2x1x3xf32>
    %c0_557 = arith.constant 0 : index
    %c111_558 = arith.constant 111 : index
    %c0_559 = arith.constant 0 : index
    %447 = vector.load %arg3[%c0_557, %c111_558, %c0_559] : memref<2x256x3xf32, #tpu.memory_space<vmem>>, vector<2x1x3xf32>
    tpu.vector_store %arg3[%c0_557, %c111_558, %c0_559], %446 {strides = array<i32>} : memref<2x256x3xf32, #tpu.memory_space<vmem>>, vector<2x1x3xf32>,
    %c112 = arith.constant 112 : index
    %448 = memref.load %arg1[%c112] : memref<256xi32, #tpu.memory_space<smem>>
    %c0_560 = arith.constant 0 : index
    %449 = arith.index_cast %448 : i32 to index
    %c0_561 = arith.constant 0 : index
    %450 = vector.load %arg2[%c0_560, %449, %c0_561] : memref<2x5023x3xf32, #tpu.memory_space<vmem>>, vector<2x1x3xf32>
    %c0_562 = arith.constant 0 : index
    %c112_563 = arith.constant 112 : index
    %c0_564 = arith.constant 0 : index
    %451 = vector.load %arg3[%c0_562, %c112_563, %c0_564] : memref<2x256x3xf32, #tpu.memory_space<vmem>>, vector<2x1x3xf32>
    tpu.vector_store %arg3[%c0_562, %c112_563, %c0_564], %450 {strides = array<i32>} : memref<2x256x3xf32, #tpu.memory_space<vmem>>, vector<2x1x3xf32>,
    %c113 = arith.constant 113 : index
    %452 = memref.load %arg1[%c113] : memref<256xi32, #tpu.memory_space<smem>>
    %c0_565 = arith.constant 0 : index
    %453 = arith.index_cast %452 : i32 to index
    %c0_566 = arith.constant 0 : index
    %454 = vector.load %arg2[%c0_565, %453, %c0_566] : memref<2x5023x3xf32, #tpu.memory_space<vmem>>, vector<2x1x3xf32>
    %c0_567 = arith.constant 0 : index
    %c113_568 = arith.constant 113 : index
    %c0_569 = arith.constant 0 : index
    %455 = vector.load %arg3[%c0_567, %c113_568, %c0_569] : memref<2x256x3xf32, #tpu.memory_space<vmem>>, vector<2x1x3xf32>
    tpu.vector_store %arg3[%c0_567, %c113_568, %c0_569], %454 {strides = array<i32>} : memref<2x256x3xf32, #tpu.memory_space<vmem>>, vector<2x1x3xf32>,
    %c114 = arith.constant 114 : index
    %456 = memref.load %arg1[%c114] : memref<256xi32, #tpu.memory_space<smem>>
    %c0_570 = arith.constant 0 : index
    %457 = arith.index_cast %456 : i32 to index
    %c0_571 = arith.constant 0 : index
    %458 = vector.load %arg2[%c0_570, %457, %c0_571] : memref<2x5023x3xf32, #tpu.memory_space<vmem>>, vector<2x1x3xf32>
    %c0_572 = arith.constant 0 : index
    %c114_573 = arith.constant 114 : index
    %c0_574 = arith.constant 0 : index
    %459 = vector.load %arg3[%c0_572, %c114_573, %c0_574] : memref<2x256x3xf32, #tpu.memory_space<vmem>>, vector<2x1x3xf32>
    tpu.vector_store %arg3[%c0_572, %c114_573, %c0_574], %458 {strides = array<i32>} : memref<2x256x3xf32, #tpu.memory_space<vmem>>, vector<2x1x3xf32>,
    %c115 = arith.constant 115 : index
    %460 = memref.load %arg1[%c115] : memref<256xi32, #tpu.memory_space<smem>>
    %c0_575 = arith.constant 0 : index
    %461 = arith.index_cast %460 : i32 to index
    %c0_576 = arith.constant 0 : index
    %462 = vector.load %arg2[%c0_575, %461, %c0_576] : memref<2x5023x3xf32, #tpu.memory_space<vmem>>, vector<2x1x3xf32>
    %c0_577 = arith.constant 0 : index
    %c115_578 = arith.constant 115 : index
    %c0_579 = arith.constant 0 : index
    %463 = vector.load %arg3[%c0_577, %c115_578, %c0_579] : memref<2x256x3xf32, #tpu.memory_space<vmem>>, vector<2x1x3xf32>
    tpu.vector_store %arg3[%c0_577, %c115_578, %c0_579], %462 {strides = array<i32>} : memref<2x256x3xf32, #tpu.memory_space<vmem>>, vector<2x1x3xf32>,
    %c116 = arith.constant 116 : index
    %464 = memref.load %arg1[%c116] : memref<256xi32, #tpu.memory_space<smem>>
    %c0_580 = arith.constant 0 : index
    %465 = arith.index_cast %464 : i32 to index
    %c0_581 = arith.constant 0 : index
    %466 = vector.load %arg2[%c0_580, %465, %c0_581] : memref<2x5023x3xf32, #tpu.memory_space<vmem>>, vector<2x1x3xf32>
    %c0_582 = arith.constant 0 : index
    %c116_583 = arith.constant 116 : index
    %c0_584 = arith.constant 0 : index
    %467 = vector.load %arg3[%c0_582, %c116_583, %c0_584] : memref<2x256x3xf32, #tpu.memory_space<vmem>>, vector<2x1x3xf32>
    tpu.vector_store %arg3[%c0_582, %c116_583, %c0_584], %466 {strides = array<i32>} : memref<2x256x3xf32, #tpu.memory_space<vmem>>, vector<2x1x3xf32>,
    %c117 = arith.constant 117 : index
    %468 = memref.load %arg1[%c117] : memref<256xi32, #tpu.memory_space<smem>>
    %c0_585 = arith.constant 0 : index
    %469 = arith.index_cast %468 : i32 to index
    %c0_586 = arith.constant 0 : index
    %470 = vector.load %arg2[%c0_585, %469, %c0_586] : memref<2x5023x3xf32, #tpu.memory_space<vmem>>, vector<2x1x3xf32>
    %c0_587 = arith.constant 0 : index
    %c117_588 = arith.constant 117 : index
    %c0_589 = arith.constant 0 : index
    %471 = vector.load %arg3[%c0_587, %c117_588, %c0_589] : memref<2x256x3xf32, #tpu.memory_space<vmem>>, vector<2x1x3xf32>
    tpu.vector_store %arg3[%c0_587, %c117_588, %c0_589], %470 {strides = array<i32>} : memref<2x256x3xf32, #tpu.memory_space<vmem>>, vector<2x1x3xf32>,
    %c118 = arith.constant 118 : index
    %472 = memref.load %arg1[%c118] : memref<256xi32, #tpu.memory_space<smem>>
    %c0_590 = arith.constant 0 : index
    %473 = arith.index_cast %472 : i32 to index
    %c0_591 = arith.constant 0 : index
    %474 = vector.load %arg2[%c0_590, %473, %c0_591] : memref<2x5023x3xf32, #tpu.memory_space<vmem>>, vector<2x1x3xf32>
    %c0_592 = arith.constant 0 : index
    %c118_593 = arith.constant 118 : index
    %c0_594 = arith.constant 0 : index
    %475 = vector.load %arg3[%c0_592, %c118_593, %c0_594] : memref<2x256x3xf32, #tpu.memory_space<vmem>>, vector<2x1x3xf32>
    tpu.vector_store %arg3[%c0_592, %c118_593, %c0_594], %474 {strides = array<i32>} : memref<2x256x3xf32, #tpu.memory_space<vmem>>, vector<2x1x3xf32>,
    %c119 = arith.constant 119 : index
    %476 = memref.load %arg1[%c119] : memref<256xi32, #tpu.memory_space<smem>>
    %c0_595 = arith.constant 0 : index
    %477 = arith.index_cast %476 : i32 to index
    %c0_596 = arith.constant 0 : index
    %478 = vector.load %arg2[%c0_595, %477, %c0_596] : memref<2x5023x3xf32, #tpu.memory_space<vmem>>, vector<2x1x3xf32>
    %c0_597 = arith.constant 0 : index
    %c119_598 = arith.constant 119 : index
    %c0_599 = arith.constant 0 : index
    %479 = vector.load %arg3[%c0_597, %c119_598, %c0_599] : memref<2x256x3xf32, #tpu.memory_space<vmem>>, vector<2x1x3xf32>
    tpu.vector_store %arg3[%c0_597, %c119_598, %c0_599], %478 {strides = array<i32>} : memref<2x256x3xf32, #tpu.memory_space<vmem>>, vector<2x1x3xf32>,
    %c120 = arith.constant 120 : index
    %480 = memref.load %arg1[%c120] : memref<256xi32, #tpu.memory_space<smem>>
    %c0_600 = arith.constant 0 : index
    %481 = arith.index_cast %480 : i32 to index
    %c0_601 = arith.constant 0 : index
    %482 = vector.load %arg2[%c0_600, %481, %c0_601] : memref<2x5023x3xf32, #tpu.memory_space<vmem>>, vector<2x1x3xf32>
    %c0_602 = arith.constant 0 : index
    %c120_603 = arith.constant 120 : index
    %c0_604 = arith.constant 0 : index
    %483 = vector.load %arg3[%c0_602, %c120_603, %c0_604] : memref<2x256x3xf32, #tpu.memory_space<vmem>>, vector<2x1x3xf32>
    tpu.vector_store %arg3[%c0_602, %c120_603, %c0_604], %482 {strides = array<i32>} : memref<2x256x3xf32, #tpu.memory_space<vmem>>, vector<2x1x3xf32>,
    %c121 = arith.constant 121 : index
    %484 = memref.load %arg1[%c121] : memref<256xi32, #tpu.memory_space<smem>>
    %c0_605 = arith.constant 0 : index
    %485 = arith.index_cast %484 : i32 to index
    %c0_606 = arith.constant 0 : index
    %486 = vector.load %arg2[%c0_605, %485, %c0_606] : memref<2x5023x3xf32, #tpu.memory_space<vmem>>, vector<2x1x3xf32>
    %c0_607 = arith.constant 0 : index
    %c121_608 = arith.constant 121 : index
    %c0_609 = arith.constant 0 : index
    %487 = vector.load %arg3[%c0_607, %c121_608, %c0_609] : memref<2x256x3xf32, #tpu.memory_space<vmem>>, vector<2x1x3xf32>
    tpu.vector_store %arg3[%c0_607, %c121_608, %c0_609], %486 {strides = array<i32>} : memref<2x256x3xf32, #tpu.memory_space<vmem>>, vector<2x1x3xf32>,
    %c122 = arith.constant 122 : index
    %488 = memref.load %arg1[%c122] : memref<256xi32, #tpu.memory_space<smem>>
    %c0_610 = arith.constant 0 : index
    %489 = arith.index_cast %488 : i32 to index
    %c0_611 = arith.constant 0 : index
    %490 = vector.load %arg2[%c0_610, %489, %c0_611] : memref<2x5023x3xf32, #tpu.memory_space<vmem>>, vector<2x1x3xf32>
    %c0_612 = arith.constant 0 : index
    %c122_613 = arith.constant 122 : index
    %c0_614 = arith.constant 0 : index
    %491 = vector.load %arg3[%c0_612, %c122_613, %c0_614] : memref<2x256x3xf32, #tpu.memory_space<vmem>>, vector<2x1x3xf32>
    tpu.vector_store %arg3[%c0_612, %c122_613, %c0_614], %490 {strides = array<i32>} : memref<2x256x3xf32, #tpu.memory_space<vmem>>, vector<2x1x3xf32>,
    %c123 = arith.constant 123 : index
    %492 = memref.load %arg1[%c123] : memref<256xi32, #tpu.memory_space<smem>>
    %c0_615 = arith.constant 0 : index
    %493 = arith.index_cast %492 : i32 to index
    %c0_616 = arith.constant 0 : index
    %494 = vector.load %arg2[%c0_615, %493, %c0_616] : memref<2x5023x3xf32, #tpu.memory_space<vmem>>, vector<2x1x3xf32>
    %c0_617 = arith.constant 0 : index
    %c123_618 = arith.constant 123 : index
    %c0_619 = arith.constant 0 : index
    %495 = vector.load %arg3[%c0_617, %c123_618, %c0_619] : memref<2x256x3xf32, #tpu.memory_space<vmem>>, vector<2x1x3xf32>
    tpu.vector_store %arg3[%c0_617, %c123_618, %c0_619], %494 {strides = array<i32>} : memref<2x256x3xf32, #tpu.memory_space<vmem>>, vector<2x1x3xf32>,
    %c124 = arith.constant 124 : index
    %496 = memref.load %arg1[%c124] : memref<256xi32, #tpu.memory_space<smem>>
    %c0_620 = arith.constant 0 : index
    %497 = arith.index_cast %496 : i32 to index
    %c0_621 = arith.constant 0 : index
    %498 = vector.load %arg2[%c0_620, %497, %c0_621] : memref<2x5023x3xf32, #tpu.memory_space<vmem>>, vector<2x1x3xf32>
    %c0_622 = arith.constant 0 : index
    %c124_623 = arith.constant 124 : index
    %c0_624 = arith.constant 0 : index
    %499 = vector.load %arg3[%c0_622, %c124_623, %c0_624] : memref<2x256x3xf32, #tpu.memory_space<vmem>>, vector<2x1x3xf32>
    tpu.vector_store %arg3[%c0_622, %c124_623, %c0_624], %498 {strides = array<i32>} : memref<2x256x3xf32, #tpu.memory_space<vmem>>, vector<2x1x3xf32>,
    %c125 = arith.constant 125 : index
    %500 = memref.load %arg1[%c125] : memref<256xi32, #tpu.memory_space<smem>>
    %c0_625 = arith.constant 0 : index
    %501 = arith.index_cast %500 : i32 to index
    %c0_626 = arith.constant 0 : index
    %502 = vector.load %arg2[%c0_625, %501, %c0_626] : memref<2x5023x3xf32, #tpu.memory_space<vmem>>, vector<2x1x3xf32>
    %c0_627 = arith.constant 0 : index
    %c125_628 = arith.constant 125 : index
    %c0_629 = arith.constant 0 : index
    %503 = vector.load %arg3[%c0_627, %c125_628, %c0_629] : memref<2x256x3xf32, #tpu.memory_space<vmem>>, vector<2x1x3xf32>
    tpu.vector_store %arg3[%c0_627, %c125_628, %c0_629], %502 {strides = array<i32>} : memref<2x256x3xf32, #tpu.memory_space<vmem>>, vector<2x1x3xf32>,
    %c126 = arith.constant 126 : index
    %504 = memref.load %arg1[%c126] : memref<256xi32, #tpu.memory_space<smem>>
    %c0_630 = arith.constant 0 : index
    %505 = arith.index_cast %504 : i32 to index
    %c0_631 = arith.constant 0 : index
    %506 = vector.load %arg2[%c0_630, %505, %c0_631] : memref<2x5023x3xf32, #tpu.memory_space<vmem>>, vector<2x1x3xf32>
    %c0_632 = arith.constant 0 : index
    %c126_633 = arith.constant 126 : index
    %c0_634 = arith.constant 0 : index
    %507 = vector.load %arg3[%c0_632, %c126_633, %c0_634] : memref<2x256x3xf32, #tpu.memory_space<vmem>>, vector<2x1x3xf32>
    tpu.vector_store %arg3[%c0_632, %c126_633, %c0_634], %506 {strides = array<i32>} : memref<2x256x3xf32, #tpu.memory_space<vmem>>, vector<2x1x3xf32>,
    %c127 = arith.constant 127 : index
    %508 = memref.load %arg1[%c127] : memref<256xi32, #tpu.memory_space<smem>>
    %c0_635 = arith.constant 0 : index
    %509 = arith.index_cast %508 : i32 to index
    %c0_636 = arith.constant 0 : index
    %510 = vector.load %arg2[%c0_635, %509, %c0_636] : memref<2x5023x3xf32, #tpu.memory_space<vmem>>, vector<2x1x3xf32>
    %c0_637 = arith.constant 0 : index
    %c127_638 = arith.constant 127 : index
    %c0_639 = arith.constant 0 : index
    %511 = vector.load %arg3[%c0_637, %c127_638, %c0_639] : memref<2x256x3xf32, #tpu.memory_space<vmem>>, vector<2x1x3xf32>
    tpu.vector_store %arg3[%c0_637, %c127_638, %c0_639], %510 {strides = array<i32>} : memref<2x256x3xf32, #tpu.memory_space<vmem>>, vector<2x1x3xf32>,
    %c128 = arith.constant 128 : index
    %512 = memref.load %arg1[%c128] : memref<256xi32, #tpu.memory_space<smem>>
    %c0_640 = arith.constant 0 : index
    %513 = arith.index_cast %512 : i32 to index
    %c0_641 = arith.constant 0 : index
    %514 = vector.load %arg2[%c0_640, %513, %c0_641] : memref<2x5023x3xf32, #tpu.memory_space<vmem>>, vector<2x1x3xf32>
    %c0_642 = arith.constant 0 : index
    %c128_643 = arith.constant 128 : index
    %c0_644 = arith.constant 0 : index
    %515 = vector.load %arg3[%c0_642, %c128_643, %c0_644] : memref<2x256x3xf32, #tpu.memory_space<vmem>>, vector<2x1x3xf32>
    tpu.vector_store %arg3[%c0_642, %c128_643, %c0_644], %514 {strides = array<i32>} : memref<2x256x3xf32, #tpu.memory_space<vmem>>, vector<2x1x3xf32>,
    %c129 = arith.constant 129 : index
    %516 = memref.load %arg1[%c129] : memref<256xi32, #tpu.memory_space<smem>>
    %c0_645 = arith.constant 0 : index
    %517 = arith.index_cast %516 : i32 to index
    %c0_646 = arith.constant 0 : index
    %518 = vector.load %arg2[%c0_645, %517, %c0_646] : memref<2x5023x3xf32, #tpu.memory_space<vmem>>, vector<2x1x3xf32>
    %c0_647 = arith.constant 0 : index
    %c129_648 = arith.constant 129 : index
    %c0_649 = arith.constant 0 : index
    %519 = vector.load %arg3[%c0_647, %c129_648, %c0_649] : memref<2x256x3xf32, #tpu.memory_space<vmem>>, vector<2x1x3xf32>
    tpu.vector_store %arg3[%c0_647, %c129_648, %c0_649], %518 {strides = array<i32>} : memref<2x256x3xf32, #tpu.memory_space<vmem>>, vector<2x1x3xf32>,
    %c130 = arith.constant 130 : index
    %520 = memref.load %arg1[%c130] : memref<256xi32, #tpu.memory_space<smem>>
    %c0_650 = arith.constant 0 : index
    %521 = arith.index_cast %520 : i32 to index
    %c0_651 = arith.constant 0 : index
    %522 = vector.load %arg2[%c0_650, %521, %c0_651] : memref<2x5023x3xf32, #tpu.memory_space<vmem>>, vector<2x1x3xf32>
    %c0_652 = arith.constant 0 : index
    %c130_653 = arith.constant 130 : index
    %c0_654 = arith.constant 0 : index
    %523 = vector.load %arg3[%c0_652, %c130_653, %c0_654] : memref<2x256x3xf32, #tpu.memory_space<vmem>>, vector<2x1x3xf32>
    tpu.vector_store %arg3[%c0_652, %c130_653, %c0_654], %522 {strides = array<i32>} : memref<2x256x3xf32, #tpu.memory_space<vmem>>, vector<2x1x3xf32>,
    %c131 = arith.constant 131 : index
    %524 = memref.load %arg1[%c131] : memref<256xi32, #tpu.memory_space<smem>>
    %c0_655 = arith.constant 0 : index
    %525 = arith.index_cast %524 : i32 to index
    %c0_656 = arith.constant 0 : index
    %526 = vector.load %arg2[%c0_655, %525, %c0_656] : memref<2x5023x3xf32, #tpu.memory_space<vmem>>, vector<2x1x3xf32>
    %c0_657 = arith.constant 0 : index
    %c131_658 = arith.constant 131 : index
    %c0_659 = arith.constant 0 : index
    %527 = vector.load %arg3[%c0_657, %c131_658, %c0_659] : memref<2x256x3xf32, #tpu.memory_space<vmem>>, vector<2x1x3xf32>
    tpu.vector_store %arg3[%c0_657, %c131_658, %c0_659], %526 {strides = array<i32>} : memref<2x256x3xf32, #tpu.memory_space<vmem>>, vector<2x1x3xf32>,
    %c132 = arith.constant 132 : index
    %528 = memref.load %arg1[%c132] : memref<256xi32, #tpu.memory_space<smem>>
    %c0_660 = arith.constant 0 : index
    %529 = arith.index_cast %528 : i32 to index
    %c0_661 = arith.constant 0 : index
    %530 = vector.load %arg2[%c0_660, %529, %c0_661] : memref<2x5023x3xf32, #tpu.memory_space<vmem>>, vector<2x1x3xf32>
    %c0_662 = arith.constant 0 : index
    %c132_663 = arith.constant 132 : index
    %c0_664 = arith.constant 0 : index
    %531 = vector.load %arg3[%c0_662, %c132_663, %c0_664] : memref<2x256x3xf32, #tpu.memory_space<vmem>>, vector<2x1x3xf32>
    tpu.vector_store %arg3[%c0_662, %c132_663, %c0_664], %530 {strides = array<i32>} : memref<2x256x3xf32, #tpu.memory_space<vmem>>, vector<2x1x3xf32>,
    %c133 = arith.constant 133 : index
    %532 = memref.load %arg1[%c133] : memref<256xi32, #tpu.memory_space<smem>>
    %c0_665 = arith.constant 0 : index
    %533 = arith.index_cast %532 : i32 to index
    %c0_666 = arith.constant 0 : index
    %534 = vector.load %arg2[%c0_665, %533, %c0_666] : memref<2x5023x3xf32, #tpu.memory_space<vmem>>, vector<2x1x3xf32>
    %c0_667 = arith.constant 0 : index
    %c133_668 = arith.constant 133 : index
    %c0_669 = arith.constant 0 : index
    %535 = vector.load %arg3[%c0_667, %c133_668, %c0_669] : memref<2x256x3xf32, #tpu.memory_space<vmem>>, vector<2x1x3xf32>
    tpu.vector_store %arg3[%c0_667, %c133_668, %c0_669], %534 {strides = array<i32>} : memref<2x256x3xf32, #tpu.memory_space<vmem>>, vector<2x1x3xf32>,
    %c134 = arith.constant 134 : index
    %536 = memref.load %arg1[%c134] : memref<256xi32, #tpu.memory_space<smem>>
    %c0_670 = arith.constant 0 : index
    %537 = arith.index_cast %536 : i32 to index
    %c0_671 = arith.constant 0 : index
    %538 = vector.load %arg2[%c0_670, %537, %c0_671] : memref<2x5023x3xf32, #tpu.memory_space<vmem>>, vector<2x1x3xf32>
    %c0_672 = arith.constant 0 : index
    %c134_673 = arith.constant 134 : index
    %c0_674 = arith.constant 0 : index
    %539 = vector.load %arg3[%c0_672, %c134_673, %c0_674] : memref<2x256x3xf32, #tpu.memory_space<vmem>>, vector<2x1x3xf32>
    tpu.vector_store %arg3[%c0_672, %c134_673, %c0_674], %538 {strides = array<i32>} : memref<2x256x3xf32, #tpu.memory_space<vmem>>, vector<2x1x3xf32>,
    %c135 = arith.constant 135 : index
    %540 = memref.load %arg1[%c135] : memref<256xi32, #tpu.memory_space<smem>>
    %c0_675 = arith.constant 0 : index
    %541 = arith.index_cast %540 : i32 to index
    %c0_676 = arith.constant 0 : index
    %542 = vector.load %arg2[%c0_675, %541, %c0_676] : memref<2x5023x3xf32, #tpu.memory_space<vmem>>, vector<2x1x3xf32>
    %c0_677 = arith.constant 0 : index
    %c135_678 = arith.constant 135 : index
    %c0_679 = arith.constant 0 : index
    %543 = vector.load %arg3[%c0_677, %c135_678, %c0_679] : memref<2x256x3xf32, #tpu.memory_space<vmem>>, vector<2x1x3xf32>
    tpu.vector_store %arg3[%c0_677, %c135_678, %c0_679], %542 {strides = array<i32>} : memref<2x256x3xf32, #tpu.memory_space<vmem>>, vector<2x1x3xf32>,
    %c136 = arith.constant 136 : index
    %544 = memref.load %arg1[%c136] : memref<256xi32, #tpu.memory_space<smem>>
    %c0_680 = arith.constant 0 : index
    %545 = arith.index_cast %544 : i32 to index
    %c0_681 = arith.constant 0 : index
    %546 = vector.load %arg2[%c0_680, %545, %c0_681] : memref<2x5023x3xf32, #tpu.memory_space<vmem>>, vector<2x1x3xf32>
    %c0_682 = arith.constant 0 : index
    %c136_683 = arith.constant 136 : index
    %c0_684 = arith.constant 0 : index
    %547 = vector.load %arg3[%c0_682, %c136_683, %c0_684] : memref<2x256x3xf32, #tpu.memory_space<vmem>>, vector<2x1x3xf32>
    tpu.vector_store %arg3[%c0_682, %c136_683, %c0_684], %546 {strides = array<i32>} : memref<2x256x3xf32, #tpu.memory_space<vmem>>, vector<2x1x3xf32>,
    %c137 = arith.constant 137 : index
    %548 = memref.load %arg1[%c137] : memref<256xi32, #tpu.memory_space<smem>>
    %c0_685 = arith.constant 0 : index
    %549 = arith.index_cast %548 : i32 to index
    %c0_686 = arith.constant 0 : index
    %550 = vector.load %arg2[%c0_685, %549, %c0_686] : memref<2x5023x3xf32, #tpu.memory_space<vmem>>, vector<2x1x3xf32>
    %c0_687 = arith.constant 0 : index
    %c137_688 = arith.constant 137 : index
    %c0_689 = arith.constant 0 : index
    %551 = vector.load %arg3[%c0_687, %c137_688, %c0_689] : memref<2x256x3xf32, #tpu.memory_space<vmem>>, vector<2x1x3xf32>
    tpu.vector_store %arg3[%c0_687, %c137_688, %c0_689], %550 {strides = array<i32>} : memref<2x256x3xf32, #tpu.memory_space<vmem>>, vector<2x1x3xf32>,
    %c138 = arith.constant 138 : index
    %552 = memref.load %arg1[%c138] : memref<256xi32, #tpu.memory_space<smem>>
    %c0_690 = arith.constant 0 : index
    %553 = arith.index_cast %552 : i32 to index
    %c0_691 = arith.constant 0 : index
    %554 = vector.load %arg2[%c0_690, %553, %c0_691] : memref<2x5023x3xf32, #tpu.memory_space<vmem>>, vector<2x1x3xf32>
    %c0_692 = arith.constant 0 : index
    %c138_693 = arith.constant 138 : index
    %c0_694 = arith.constant 0 : index
    %555 = vector.load %arg3[%c0_692, %c138_693, %c0_694] : memref<2x256x3xf32, #tpu.memory_space<vmem>>, vector<2x1x3xf32>
    tpu.vector_store %arg3[%c0_692, %c138_693, %c0_694], %554 {strides = array<i32>} : memref<2x256x3xf32, #tpu.memory_space<vmem>>, vector<2x1x3xf32>,
    %c139 = arith.constant 139 : index
    %556 = memref.load %arg1[%c139] : memref<256xi32, #tpu.memory_space<smem>>
    %c0_695 = arith.constant 0 : index
    %557 = arith.index_cast %556 : i32 to index
    %c0_696 = arith.constant 0 : index
    %558 = vector.load %arg2[%c0_695, %557, %c0_696] : memref<2x5023x3xf32, #tpu.memory_space<vmem>>, vector<2x1x3xf32>
    %c0_697 = arith.constant 0 : index
    %c139_698 = arith.constant 139 : index
    %c0_699 = arith.constant 0 : index
    %559 = vector.load %arg3[%c0_697, %c139_698, %c0_699] : memref<2x256x3xf32, #tpu.memory_space<vmem>>, vector<2x1x3xf32>
    tpu.vector_store %arg3[%c0_697, %c139_698, %c0_699], %558 {strides = array<i32>} : memref<2x256x3xf32, #tpu.memory_space<vmem>>, vector<2x1x3xf32>,
    %c140 = arith.constant 140 : index
    %560 = memref.load %arg1[%c140] : memref<256xi32, #tpu.memory_space<smem>>
    %c0_700 = arith.constant 0 : index
    %561 = arith.index_cast %560 : i32 to index
    %c0_701 = arith.constant 0 : index
    %562 = vector.load %arg2[%c0_700, %561, %c0_701] : memref<2x5023x3xf32, #tpu.memory_space<vmem>>, vector<2x1x3xf32>
    %c0_702 = arith.constant 0 : index
    %c140_703 = arith.constant 140 : index
    %c0_704 = arith.constant 0 : index
    %563 = vector.load %arg3[%c0_702, %c140_703, %c0_704] : memref<2x256x3xf32, #tpu.memory_space<vmem>>, vector<2x1x3xf32>
    tpu.vector_store %arg3[%c0_702, %c140_703, %c0_704], %562 {strides = array<i32>} : memref<2x256x3xf32, #tpu.memory_space<vmem>>, vector<2x1x3xf32>,
    %c141 = arith.constant 141 : index
    %564 = memref.load %arg1[%c141] : memref<256xi32, #tpu.memory_space<smem>>
    %c0_705 = arith.constant 0 : index
    %565 = arith.index_cast %564 : i32 to index
    %c0_706 = arith.constant 0 : index
    %566 = vector.load %arg2[%c0_705, %565, %c0_706] : memref<2x5023x3xf32, #tpu.memory_space<vmem>>, vector<2x1x3xf32>
    %c0_707 = arith.constant 0 : index
    %c141_708 = arith.constant 141 : index
    %c0_709 = arith.constant 0 : index
    %567 = vector.load %arg3[%c0_707, %c141_708, %c0_709] : memref<2x256x3xf32, #tpu.memory_space<vmem>>, vector<2x1x3xf32>
    tpu.vector_store %arg3[%c0_707, %c141_708, %c0_709], %566 {strides = array<i32>} : memref<2x256x3xf32, #tpu.memory_space<vmem>>, vector<2x1x3xf32>,
    %c142 = arith.constant 142 : index
    %568 = memref.load %arg1[%c142] : memref<256xi32, #tpu.memory_space<smem>>
    %c0_710 = arith.constant 0 : index
    %569 = arith.index_cast %568 : i32 to index
    %c0_711 = arith.constant 0 : index
    %570 = vector.load %arg2[%c0_710, %569, %c0_711] : memref<2x5023x3xf32, #tpu.memory_space<vmem>>, vector<2x1x3xf32>
    %c0_712 = arith.constant 0 : index
    %c142_713 = arith.constant 142 : index
    %c0_714 = arith.constant 0 : index
    %571 = vector.load %arg3[%c0_712, %c142_713, %c0_714] : memref<2x256x3xf32, #tpu.memory_space<vmem>>, vector<2x1x3xf32>
    tpu.vector_store %arg3[%c0_712, %c142_713, %c0_714], %570 {strides = array<i32>} : memref<2x256x3xf32, #tpu.memory_space<vmem>>, vector<2x1x3xf32>,
    %c143 = arith.constant 143 : index
    %572 = memref.load %arg1[%c143] : memref<256xi32, #tpu.memory_space<smem>>
    %c0_715 = arith.constant 0 : index
    %573 = arith.index_cast %572 : i32 to index
    %c0_716 = arith.constant 0 : index
    %574 = vector.load %arg2[%c0_715, %573, %c0_716] : memref<2x5023x3xf32, #tpu.memory_space<vmem>>, vector<2x1x3xf32>
    %c0_717 = arith.constant 0 : index
    %c143_718 = arith.constant 143 : index
    %c0_719 = arith.constant 0 : index
    %575 = vector.load %arg3[%c0_717, %c143_718, %c0_719] : memref<2x256x3xf32, #tpu.memory_space<vmem>>, vector<2x1x3xf32>
    tpu.vector_store %arg3[%c0_717, %c143_718, %c0_719], %574 {strides = array<i32>} : memref<2x256x3xf32, #tpu.memory_space<vmem>>, vector<2x1x3xf32>,
    %c144 = arith.constant 144 : index
    %576 = memref.load %arg1[%c144] : memref<256xi32, #tpu.memory_space<smem>>
    %c0_720 = arith.constant 0 : index
    %577 = arith.index_cast %576 : i32 to index
    %c0_721 = arith.constant 0 : index
    %578 = vector.load %arg2[%c0_720, %577, %c0_721] : memref<2x5023x3xf32, #tpu.memory_space<vmem>>, vector<2x1x3xf32>
    %c0_722 = arith.constant 0 : index
    %c144_723 = arith.constant 144 : index
    %c0_724 = arith.constant 0 : index
    %579 = vector.load %arg3[%c0_722, %c144_723, %c0_724] : memref<2x256x3xf32, #tpu.memory_space<vmem>>, vector<2x1x3xf32>
    tpu.vector_store %arg3[%c0_722, %c144_723, %c0_724], %578 {strides = array<i32>} : memref<2x256x3xf32, #tpu.memory_space<vmem>>, vector<2x1x3xf32>,
    %c145 = arith.constant 145 : index
    %580 = memref.load %arg1[%c145] : memref<256xi32, #tpu.memory_space<smem>>
    %c0_725 = arith.constant 0 : index
    %581 = arith.index_cast %580 : i32 to index
    %c0_726 = arith.constant 0 : index
    %582 = vector.load %arg2[%c0_725, %581, %c0_726] : memref<2x5023x3xf32, #tpu.memory_space<vmem>>, vector<2x1x3xf32>
    %c0_727 = arith.constant 0 : index
    %c145_728 = arith.constant 145 : index
    %c0_729 = arith.constant 0 : index
    %583 = vector.load %arg3[%c0_727, %c145_728, %c0_729] : memref<2x256x3xf32, #tpu.memory_space<vmem>>, vector<2x1x3xf32>
    tpu.vector_store %arg3[%c0_727, %c145_728, %c0_729], %582 {strides = array<i32>} : memref<2x256x3xf32, #tpu.memory_space<vmem>>, vector<2x1x3xf32>,
    %c146 = arith.constant 146 : index
    %584 = memref.load %arg1[%c146] : memref<256xi32, #tpu.memory_space<smem>>
    %c0_730 = arith.constant 0 : index
    %585 = arith.index_cast %584 : i32 to index
    %c0_731 = arith.constant 0 : index
    %586 = vector.load %arg2[%c0_730, %585, %c0_731] : memref<2x5023x3xf32, #tpu.memory_space<vmem>>, vector<2x1x3xf32>
    %c0_732 = arith.constant 0 : index
    %c146_733 = arith.constant 146 : index
    %c0_734 = arith.constant 0 : index
    %587 = vector.load %arg3[%c0_732, %c146_733, %c0_734] : memref<2x256x3xf32, #tpu.memory_space<vmem>>, vector<2x1x3xf32>
    tpu.vector_store %arg3[%c0_732, %c146_733, %c0_734], %586 {strides = array<i32>} : memref<2x256x3xf32, #tpu.memory_space<vmem>>, vector<2x1x3xf32>,
    %c147 = arith.constant 147 : index
    %588 = memref.load %arg1[%c147] : memref<256xi32, #tpu.memory_space<smem>>
    %c0_735 = arith.constant 0 : index
    %589 = arith.index_cast %588 : i32 to index
    %c0_736 = arith.constant 0 : index
    %590 = vector.load %arg2[%c0_735, %589, %c0_736] : memref<2x5023x3xf32, #tpu.memory_space<vmem>>, vector<2x1x3xf32>
    %c0_737 = arith.constant 0 : index
    %c147_738 = arith.constant 147 : index
    %c0_739 = arith.constant 0 : index
    %591 = vector.load %arg3[%c0_737, %c147_738, %c0_739] : memref<2x256x3xf32, #tpu.memory_space<vmem>>, vector<2x1x3xf32>
    tpu.vector_store %arg3[%c0_737, %c147_738, %c0_739], %590 {strides = array<i32>} : memref<2x256x3xf32, #tpu.memory_space<vmem>>, vector<2x1x3xf32>,
    %c148 = arith.constant 148 : index
    %592 = memref.load %arg1[%c148] : memref<256xi32, #tpu.memory_space<smem>>
    %c0_740 = arith.constant 0 : index
    %593 = arith.index_cast %592 : i32 to index
    %c0_741 = arith.constant 0 : index
    %594 = vector.load %arg2[%c0_740, %593, %c0_741] : memref<2x5023x3xf32, #tpu.memory_space<vmem>>, vector<2x1x3xf32>
    %c0_742 = arith.constant 0 : index
    %c148_743 = arith.constant 148 : index
    %c0_744 = arith.constant 0 : index
    %595 = vector.load %arg3[%c0_742, %c148_743, %c0_744] : memref<2x256x3xf32, #tpu.memory_space<vmem>>, vector<2x1x3xf32>
    tpu.vector_store %arg3[%c0_742, %c148_743, %c0_744], %594 {strides = array<i32>} : memref<2x256x3xf32, #tpu.memory_space<vmem>>, vector<2x1x3xf32>,
    %c149 = arith.constant 149 : index
    %596 = memref.load %arg1[%c149] : memref<256xi32, #tpu.memory_space<smem>>
    %c0_745 = arith.constant 0 : index
    %597 = arith.index_cast %596 : i32 to index
    %c0_746 = arith.constant 0 : index
    %598 = vector.load %arg2[%c0_745, %597, %c0_746] : memref<2x5023x3xf32, #tpu.memory_space<vmem>>, vector<2x1x3xf32>
    %c0_747 = arith.constant 0 : index
    %c149_748 = arith.constant 149 : index
    %c0_749 = arith.constant 0 : index
    %599 = vector.load %arg3[%c0_747, %c149_748, %c0_749] : memref<2x256x3xf32, #tpu.memory_space<vmem>>, vector<2x1x3xf32>
    tpu.vector_store %arg3[%c0_747, %c149_748, %c0_749], %598 {strides = array<i32>} : memref<2x256x3xf32, #tpu.memory_space<vmem>>, vector<2x1x3xf32>,
    %c150 = arith.constant 150 : index
    %600 = memref.load %arg1[%c150] : memref<256xi32, #tpu.memory_space<smem>>
    %c0_750 = arith.constant 0 : index
    %601 = arith.index_cast %600 : i32 to index
    %c0_751 = arith.constant 0 : index
    %602 = vector.load %arg2[%c0_750, %601, %c0_751] : memref<2x5023x3xf32, #tpu.memory_space<vmem>>, vector<2x1x3xf32>
    %c0_752 = arith.constant 0 : index
    %c150_753 = arith.constant 150 : index
    %c0_754 = arith.constant 0 : index
    %603 = vector.load %arg3[%c0_752, %c150_753, %c0_754] : memref<2x256x3xf32, #tpu.memory_space<vmem>>, vector<2x1x3xf32>
    tpu.vector_store %arg3[%c0_752, %c150_753, %c0_754], %602 {strides = array<i32>} : memref<2x256x3xf32, #tpu.memory_space<vmem>>, vector<2x1x3xf32>,
    %c151 = arith.constant 151 : index
    %604 = memref.load %arg1[%c151] : memref<256xi32, #tpu.memory_space<smem>>
    %c0_755 = arith.constant 0 : index
    %605 = arith.index_cast %604 : i32 to index
    %c0_756 = arith.constant 0 : index
    %606 = vector.load %arg2[%c0_755, %605, %c0_756] : memref<2x5023x3xf32, #tpu.memory_space<vmem>>, vector<2x1x3xf32>
    %c0_757 = arith.constant 0 : index
    %c151_758 = arith.constant 151 : index
    %c0_759 = arith.constant 0 : index
    %607 = vector.load %arg3[%c0_757, %c151_758, %c0_759] : memref<2x256x3xf32, #tpu.memory_space<vmem>>, vector<2x1x3xf32>
    tpu.vector_store %arg3[%c0_757, %c151_758, %c0_759], %606 {strides = array<i32>} : memref<2x256x3xf32, #tpu.memory_space<vmem>>, vector<2x1x3xf32>,
    %c152 = arith.constant 152 : index
    %608 = memref.load %arg1[%c152] : memref<256xi32, #tpu.memory_space<smem>>
    %c0_760 = arith.constant 0 : index
    %609 = arith.index_cast %608 : i32 to index
    %c0_761 = arith.constant 0 : index
    %610 = vector.load %arg2[%c0_760, %609, %c0_761] : memref<2x5023x3xf32, #tpu.memory_space<vmem>>, vector<2x1x3xf32>
    %c0_762 = arith.constant 0 : index
    %c152_763 = arith.constant 152 : index
    %c0_764 = arith.constant 0 : index
    %611 = vector.load %arg3[%c0_762, %c152_763, %c0_764] : memref<2x256x3xf32, #tpu.memory_space<vmem>>, vector<2x1x3xf32>
    tpu.vector_store %arg3[%c0_762, %c152_763, %c0_764], %610 {strides = array<i32>} : memref<2x256x3xf32, #tpu.memory_space<vmem>>, vector<2x1x3xf32>,
    %c153 = arith.constant 153 : index
    %612 = memref.load %arg1[%c153] : memref<256xi32, #tpu.memory_space<smem>>
    %c0_765 = arith.constant 0 : index
    %613 = arith.index_cast %612 : i32 to index
    %c0_766 = arith.constant 0 : index
    %614 = vector.load %arg2[%c0_765, %613, %c0_766] : memref<2x5023x3xf32, #tpu.memory_space<vmem>>, vector<2x1x3xf32>
    %c0_767 = arith.constant 0 : index
    %c153_768 = arith.constant 153 : index
    %c0_769 = arith.constant 0 : index
    %615 = vector.load %arg3[%c0_767, %c153_768, %c0_769] : memref<2x256x3xf32, #tpu.memory_space<vmem>>, vector<2x1x3xf32>
    tpu.vector_store %arg3[%c0_767, %c153_768, %c0_769], %614 {strides = array<i32>} : memref<2x256x3xf32, #tpu.memory_space<vmem>>, vector<2x1x3xf32>,
    %c154 = arith.constant 154 : index
    %616 = memref.load %arg1[%c154] : memref<256xi32, #tpu.memory_space<smem>>
    %c0_770 = arith.constant 0 : index
    %617 = arith.index_cast %616 : i32 to index
    %c0_771 = arith.constant 0 : index
    %618 = vector.load %arg2[%c0_770, %617, %c0_771] : memref<2x5023x3xf32, #tpu.memory_space<vmem>>, vector<2x1x3xf32>
    %c0_772 = arith.constant 0 : index
    %c154_773 = arith.constant 154 : index
    %c0_774 = arith.constant 0 : index
    %619 = vector.load %arg3[%c0_772, %c154_773, %c0_774] : memref<2x256x3xf32, #tpu.memory_space<vmem>>, vector<2x1x3xf32>
    tpu.vector_store %arg3[%c0_772, %c154_773, %c0_774], %618 {strides = array<i32>} : memref<2x256x3xf32, #tpu.memory_space<vmem>>, vector<2x1x3xf32>,
    %c155 = arith.constant 155 : index
    %620 = memref.load %arg1[%c155] : memref<256xi32, #tpu.memory_space<smem>>
    %c0_775 = arith.constant 0 : index
    %621 = arith.index_cast %620 : i32 to index
    %c0_776 = arith.constant 0 : index
    %622 = vector.load %arg2[%c0_775, %621, %c0_776] : memref<2x5023x3xf32, #tpu.memory_space<vmem>>, vector<2x1x3xf32>
    %c0_777 = arith.constant 0 : index
    %c155_778 = arith.constant 155 : index
    %c0_779 = arith.constant 0 : index
    %623 = vector.load %arg3[%c0_777, %c155_778, %c0_779] : memref<2x256x3xf32, #tpu.memory_space<vmem>>, vector<2x1x3xf32>
    tpu.vector_store %arg3[%c0_777, %c155_778, %c0_779], %622 {strides = array<i32>} : memref<2x256x3xf32, #tpu.memory_space<vmem>>, vector<2x1x3xf32>,
    %c156 = arith.constant 156 : index
    %624 = memref.load %arg1[%c156] : memref<256xi32, #tpu.memory_space<smem>>
    %c0_780 = arith.constant 0 : index
    %625 = arith.index_cast %624 : i32 to index
    %c0_781 = arith.constant 0 : index
    %626 = vector.load %arg2[%c0_780, %625, %c0_781] : memref<2x5023x3xf32, #tpu.memory_space<vmem>>, vector<2x1x3xf32>
    %c0_782 = arith.constant 0 : index
    %c156_783 = arith.constant 156 : index
    %c0_784 = arith.constant 0 : index
    %627 = vector.load %arg3[%c0_782, %c156_783, %c0_784] : memref<2x256x3xf32, #tpu.memory_space<vmem>>, vector<2x1x3xf32>
    tpu.vector_store %arg3[%c0_782, %c156_783, %c0_784], %626 {strides = array<i32>} : memref<2x256x3xf32, #tpu.memory_space<vmem>>, vector<2x1x3xf32>,
    %c157 = arith.constant 157 : index
    %628 = memref.load %arg1[%c157] : memref<256xi32, #tpu.memory_space<smem>>
    %c0_785 = arith.constant 0 : index
    %629 = arith.index_cast %628 : i32 to index
    %c0_786 = arith.constant 0 : index
    %630 = vector.load %arg2[%c0_785, %629, %c0_786] : memref<2x5023x3xf32, #tpu.memory_space<vmem>>, vector<2x1x3xf32>
    %c0_787 = arith.constant 0 : index
    %c157_788 = arith.constant 157 : index
    %c0_789 = arith.constant 0 : index
    %631 = vector.load %arg3[%c0_787, %c157_788, %c0_789] : memref<2x256x3xf32, #tpu.memory_space<vmem>>, vector<2x1x3xf32>
    tpu.vector_store %arg3[%c0_787, %c157_788, %c0_789], %630 {strides = array<i32>} : memref<2x256x3xf32, #tpu.memory_space<vmem>>, vector<2x1x3xf32>,
    %c158 = arith.constant 158 : index
    %632 = memref.load %arg1[%c158] : memref<256xi32, #tpu.memory_space<smem>>
    %c0_790 = arith.constant 0 : index
    %633 = arith.index_cast %632 : i32 to index
    %c0_791 = arith.constant 0 : index
    %634 = vector.load %arg2[%c0_790, %633, %c0_791] : memref<2x5023x3xf32, #tpu.memory_space<vmem>>, vector<2x1x3xf32>
    %c0_792 = arith.constant 0 : index
    %c158_793 = arith.constant 158 : index
    %c0_794 = arith.constant 0 : index
    %635 = vector.load %arg3[%c0_792, %c158_793, %c0_794] : memref<2x256x3xf32, #tpu.memory_space<vmem>>, vector<2x1x3xf32>
    tpu.vector_store %arg3[%c0_792, %c158_793, %c0_794], %634 {strides = array<i32>} : memref<2x256x3xf32, #tpu.memory_space<vmem>>, vector<2x1x3xf32>,
    %c159 = arith.constant 159 : index
    %636 = memref.load %arg1[%c159] : memref<256xi32, #tpu.memory_space<smem>>
    %c0_795 = arith.constant 0 : index
    %637 = arith.index_cast %636 : i32 to index
    %c0_796 = arith.constant 0 : index
    %638 = vector.load %arg2[%c0_795, %637, %c0_796] : memref<2x5023x3xf32, #tpu.memory_space<vmem>>, vector<2x1x3xf32>
    %c0_797 = arith.constant 0 : index
    %c159_798 = arith.constant 159 : index
    %c0_799 = arith.constant 0 : index
    %639 = vector.load %arg3[%c0_797, %c159_798, %c0_799] : memref<2x256x3xf32, #tpu.memory_space<vmem>>, vector<2x1x3xf32>
    tpu.vector_store %arg3[%c0_797, %c159_798, %c0_799], %638 {strides = array<i32>} : memref<2x256x3xf32, #tpu.memory_space<vmem>>, vector<2x1x3xf32>,
    %c160 = arith.constant 160 : index
    %640 = memref.load %arg1[%c160] : memref<256xi32, #tpu.memory_space<smem>>
    %c0_800 = arith.constant 0 : index
    %641 = arith.index_cast %640 : i32 to index
    %c0_801 = arith.constant 0 : index
    %642 = vector.load %arg2[%c0_800, %641, %c0_801] : memref<2x5023x3xf32, #tpu.memory_space<vmem>>, vector<2x1x3xf32>
    %c0_802 = arith.constant 0 : index
    %c160_803 = arith.constant 160 : index
    %c0_804 = arith.constant 0 : index
    %643 = vector.load %arg3[%c0_802, %c160_803, %c0_804] : memref<2x256x3xf32, #tpu.memory_space<vmem>>, vector<2x1x3xf32>
    tpu.vector_store %arg3[%c0_802, %c160_803, %c0_804], %642 {strides = array<i32>} : memref<2x256x3xf32, #tpu.memory_space<vmem>>, vector<2x1x3xf32>,
    %c161 = arith.constant 161 : index
    %644 = memref.load %arg1[%c161] : memref<256xi32, #tpu.memory_space<smem>>
    %c0_805 = arith.constant 0 : index
    %645 = arith.index_cast %644 : i32 to index
    %c0_806 = arith.constant 0 : index
    %646 = vector.load %arg2[%c0_805, %645, %c0_806] : memref<2x5023x3xf32, #tpu.memory_space<vmem>>, vector<2x1x3xf32>
    %c0_807 = arith.constant 0 : index
    %c161_808 = arith.constant 161 : index
    %c0_809 = arith.constant 0 : index
    %647 = vector.load %arg3[%c0_807, %c161_808, %c0_809] : memref<2x256x3xf32, #tpu.memory_space<vmem>>, vector<2x1x3xf32>
    tpu.vector_store %arg3[%c0_807, %c161_808, %c0_809], %646 {strides = array<i32>} : memref<2x256x3xf32, #tpu.memory_space<vmem>>, vector<2x1x3xf32>,
    %c162 = arith.constant 162 : index
    %648 = memref.load %arg1[%c162] : memref<256xi32, #tpu.memory_space<smem>>
    %c0_810 = arith.constant 0 : index
    %649 = arith.index_cast %648 : i32 to index
    %c0_811 = arith.constant 0 : index
    %650 = vector.load %arg2[%c0_810, %649, %c0_811] : memref<2x5023x3xf32, #tpu.memory_space<vmem>>, vector<2x1x3xf32>
    %c0_812 = arith.constant 0 : index
    %c162_813 = arith.constant 162 : index
    %c0_814 = arith.constant 0 : index
    %651 = vector.load %arg3[%c0_812, %c162_813, %c0_814] : memref<2x256x3xf32, #tpu.memory_space<vmem>>, vector<2x1x3xf32>
    tpu.vector_store %arg3[%c0_812, %c162_813, %c0_814], %650 {strides = array<i32>} : memref<2x256x3xf32, #tpu.memory_space<vmem>>, vector<2x1x3xf32>,
    %c163 = arith.constant 163 : index
    %652 = memref.load %arg1[%c163] : memref<256xi32, #tpu.memory_space<smem>>
    %c0_815 = arith.constant 0 : index
    %653 = arith.index_cast %652 : i32 to index
    %c0_816 = arith.constant 0 : index
    %654 = vector.load %arg2[%c0_815, %653, %c0_816] : memref<2x5023x3xf32, #tpu.memory_space<vmem>>, vector<2x1x3xf32>
    %c0_817 = arith.constant 0 : index
    %c163_818 = arith.constant 163 : index
    %c0_819 = arith.constant 0 : index
    %655 = vector.load %arg3[%c0_817, %c163_818, %c0_819] : memref<2x256x3xf32, #tpu.memory_space<vmem>>, vector<2x1x3xf32>
    tpu.vector_store %arg3[%c0_817, %c163_818, %c0_819], %654 {strides = array<i32>} : memref<2x256x3xf32, #tpu.memory_space<vmem>>, vector<2x1x3xf32>,
    %c164 = arith.constant 164 : index
    %656 = memref.load %arg1[%c164] : memref<256xi32, #tpu.memory_space<smem>>
    %c0_820 = arith.constant 0 : index
    %657 = arith.index_cast %656 : i32 to index
    %c0_821 = arith.constant 0 : index
    %658 = vector.load %arg2[%c0_820, %657, %c0_821] : memref<2x5023x3xf32, #tpu.memory_space<vmem>>, vector<2x1x3xf32>
    %c0_822 = arith.constant 0 : index
    %c164_823 = arith.constant 164 : index
    %c0_824 = arith.constant 0 : index
    %659 = vector.load %arg3[%c0_822, %c164_823, %c0_824] : memref<2x256x3xf32, #tpu.memory_space<vmem>>, vector<2x1x3xf32>
    tpu.vector_store %arg3[%c0_822, %c164_823, %c0_824], %658 {strides = array<i32>} : memref<2x256x3xf32, #tpu.memory_space<vmem>>, vector<2x1x3xf32>,
    %c165 = arith.constant 165 : index
    %660 = memref.load %arg1[%c165] : memref<256xi32, #tpu.memory_space<smem>>
    %c0_825 = arith.constant 0 : index
    %661 = arith.index_cast %660 : i32 to index
    %c0_826 = arith.constant 0 : index
    %662 = vector.load %arg2[%c0_825, %661, %c0_826] : memref<2x5023x3xf32, #tpu.memory_space<vmem>>, vector<2x1x3xf32>
    %c0_827 = arith.constant 0 : index
    %c165_828 = arith.constant 165 : index
    %c0_829 = arith.constant 0 : index
    %663 = vector.load %arg3[%c0_827, %c165_828, %c0_829] : memref<2x256x3xf32, #tpu.memory_space<vmem>>, vector<2x1x3xf32>
    tpu.vector_store %arg3[%c0_827, %c165_828, %c0_829], %662 {strides = array<i32>} : memref<2x256x3xf32, #tpu.memory_space<vmem>>, vector<2x1x3xf32>,
    %c166 = arith.constant 166 : index
    %664 = memref.load %arg1[%c166] : memref<256xi32, #tpu.memory_space<smem>>
    %c0_830 = arith.constant 0 : index
    %665 = arith.index_cast %664 : i32 to index
    %c0_831 = arith.constant 0 : index
    %666 = vector.load %arg2[%c0_830, %665, %c0_831] : memref<2x5023x3xf32, #tpu.memory_space<vmem>>, vector<2x1x3xf32>
    %c0_832 = arith.constant 0 : index
    %c166_833 = arith.constant 166 : index
    %c0_834 = arith.constant 0 : index
    %667 = vector.load %arg3[%c0_832, %c166_833, %c0_834] : memref<2x256x3xf32, #tpu.memory_space<vmem>>, vector<2x1x3xf32>
    tpu.vector_store %arg3[%c0_832, %c166_833, %c0_834], %666 {strides = array<i32>} : memref<2x256x3xf32, #tpu.memory_space<vmem>>, vector<2x1x3xf32>,
    %c167 = arith.constant 167 : index
    %668 = memref.load %arg1[%c167] : memref<256xi32, #tpu.memory_space<smem>>
    %c0_835 = arith.constant 0 : index
    %669 = arith.index_cast %668 : i32 to index
    %c0_836 = arith.constant 0 : index
    %670 = vector.load %arg2[%c0_835, %669, %c0_836] : memref<2x5023x3xf32, #tpu.memory_space<vmem>>, vector<2x1x3xf32>
    %c0_837 = arith.constant 0 : index
    %c167_838 = arith.constant 167 : index
    %c0_839 = arith.constant 0 : index
    %671 = vector.load %arg3[%c0_837, %c167_838, %c0_839] : memref<2x256x3xf32, #tpu.memory_space<vmem>>, vector<2x1x3xf32>
    tpu.vector_store %arg3[%c0_837, %c167_838, %c0_839], %670 {strides = array<i32>} : memref<2x256x3xf32, #tpu.memory_space<vmem>>, vector<2x1x3xf32>,
    %c168 = arith.constant 168 : index
    %672 = memref.load %arg1[%c168] : memref<256xi32, #tpu.memory_space<smem>>
    %c0_840 = arith.constant 0 : index
    %673 = arith.index_cast %672 : i32 to index
    %c0_841 = arith.constant 0 : index
    %674 = vector.load %arg2[%c0_840, %673, %c0_841] : memref<2x5023x3xf32, #tpu.memory_space<vmem>>, vector<2x1x3xf32>
    %c0_842 = arith.constant 0 : index
    %c168_843 = arith.constant 168 : index
    %c0_844 = arith.constant 0 : index
    %675 = vector.load %arg3[%c0_842, %c168_843, %c0_844] : memref<2x256x3xf32, #tpu.memory_space<vmem>>, vector<2x1x3xf32>
    tpu.vector_store %arg3[%c0_842, %c168_843, %c0_844], %674 {strides = array<i32>} : memref<2x256x3xf32, #tpu.memory_space<vmem>>, vector<2x1x3xf32>,
    %c169 = arith.constant 169 : index
    %676 = memref.load %arg1[%c169] : memref<256xi32, #tpu.memory_space<smem>>
    %c0_845 = arith.constant 0 : index
    %677 = arith.index_cast %676 : i32 to index
    %c0_846 = arith.constant 0 : index
    %678 = vector.load %arg2[%c0_845, %677, %c0_846] : memref<2x5023x3xf32, #tpu.memory_space<vmem>>, vector<2x1x3xf32>
    %c0_847 = arith.constant 0 : index
    %c169_848 = arith.constant 169 : index
    %c0_849 = arith.constant 0 : index
    %679 = vector.load %arg3[%c0_847, %c169_848, %c0_849] : memref<2x256x3xf32, #tpu.memory_space<vmem>>, vector<2x1x3xf32>
    tpu.vector_store %arg3[%c0_847, %c169_848, %c0_849], %678 {strides = array<i32>} : memref<2x256x3xf32, #tpu.memory_space<vmem>>, vector<2x1x3xf32>,
    %c170 = arith.constant 170 : index
    %680 = memref.load %arg1[%c170] : memref<256xi32, #tpu.memory_space<smem>>
    %c0_850 = arith.constant 0 : index
    %681 = arith.index_cast %680 : i32 to index
    %c0_851 = arith.constant 0 : index
    %682 = vector.load %arg2[%c0_850, %681, %c0_851] : memref<2x5023x3xf32, #tpu.memory_space<vmem>>, vector<2x1x3xf32>
    %c0_852 = arith.constant 0 : index
    %c170_853 = arith.constant 170 : index
    %c0_854 = arith.constant 0 : index
    %683 = vector.load %arg3[%c0_852, %c170_853, %c0_854] : memref<2x256x3xf32, #tpu.memory_space<vmem>>, vector<2x1x3xf32>
    tpu.vector_store %arg3[%c0_852, %c170_853, %c0_854], %682 {strides = array<i32>} : memref<2x256x3xf32, #tpu.memory_space<vmem>>, vector<2x1x3xf32>,
    %c171 = arith.constant 171 : index
    %684 = memref.load %arg1[%c171] : memref<256xi32, #tpu.memory_space<smem>>
    %c0_855 = arith.constant 0 : index
    %685 = arith.index_cast %684 : i32 to index
    %c0_856 = arith.constant 0 : index
    %686 = vector.load %arg2[%c0_855, %685, %c0_856] : memref<2x5023x3xf32, #tpu.memory_space<vmem>>, vector<2x1x3xf32>
    %c0_857 = arith.constant 0 : index
    %c171_858 = arith.constant 171 : index
    %c0_859 = arith.constant 0 : index
    %687 = vector.load %arg3[%c0_857, %c171_858, %c0_859] : memref<2x256x3xf32, #tpu.memory_space<vmem>>, vector<2x1x3xf32>
    tpu.vector_store %arg3[%c0_857, %c171_858, %c0_859], %686 {strides = array<i32>} : memref<2x256x3xf32, #tpu.memory_space<vmem>>, vector<2x1x3xf32>,
    %c172 = arith.constant 172 : index
    %688 = memref.load %arg1[%c172] : memref<256xi32, #tpu.memory_space<smem>>
    %c0_860 = arith.constant 0 : index
    %689 = arith.index_cast %688 : i32 to index
    %c0_861 = arith.constant 0 : index
    %690 = vector.load %arg2[%c0_860, %689, %c0_861] : memref<2x5023x3xf32, #tpu.memory_space<vmem>>, vector<2x1x3xf32>
    %c0_862 = arith.constant 0 : index
    %c172_863 = arith.constant 172 : index
    %c0_864 = arith.constant 0 : index
    %691 = vector.load %arg3[%c0_862, %c172_863, %c0_864] : memref<2x256x3xf32, #tpu.memory_space<vmem>>, vector<2x1x3xf32>
    tpu.vector_store %arg3[%c0_862, %c172_863, %c0_864], %690 {strides = array<i32>} : memref<2x256x3xf32, #tpu.memory_space<vmem>>, vector<2x1x3xf32>,
    %c173 = arith.constant 173 : index
    %692 = memref.load %arg1[%c173] : memref<256xi32, #tpu.memory_space<smem>>
    %c0_865 = arith.constant 0 : index
    %693 = arith.index_cast %692 : i32 to index
    %c0_866 = arith.constant 0 : index
    %694 = vector.load %arg2[%c0_865, %693, %c0_866] : memref<2x5023x3xf32, #tpu.memory_space<vmem>>, vector<2x1x3xf32>
    %c0_867 = arith.constant 0 : index
    %c173_868 = arith.constant 173 : index
    %c0_869 = arith.constant 0 : index
    %695 = vector.load %arg3[%c0_867, %c173_868, %c0_869] : memref<2x256x3xf32, #tpu.memory_space<vmem>>, vector<2x1x3xf32>
    tpu.vector_store %arg3[%c0_867, %c173_868, %c0_869], %694 {strides = array<i32>} : memref<2x256x3xf32, #tpu.memory_space<vmem>>, vector<2x1x3xf32>,
    %c174 = arith.constant 174 : index
    %696 = memref.load %arg1[%c174] : memref<256xi32, #tpu.memory_space<smem>>
    %c0_870 = arith.constant 0 : index
    %697 = arith.index_cast %696 : i32 to index
    %c0_871 = arith.constant 0 : index
    %698 = vector.load %arg2[%c0_870, %697, %c0_871] : memref<2x5023x3xf32, #tpu.memory_space<vmem>>, vector<2x1x3xf32>
    %c0_872 = arith.constant 0 : index
    %c174_873 = arith.constant 174 : index
    %c0_874 = arith.constant 0 : index
    %699 = vector.load %arg3[%c0_872, %c174_873, %c0_874] : memref<2x256x3xf32, #tpu.memory_space<vmem>>, vector<2x1x3xf32>
    tpu.vector_store %arg3[%c0_872, %c174_873, %c0_874], %698 {strides = array<i32>} : memref<2x256x3xf32, #tpu.memory_space<vmem>>, vector<2x1x3xf32>,
    %c175 = arith.constant 175 : index
    %700 = memref.load %arg1[%c175] : memref<256xi32, #tpu.memory_space<smem>>
    %c0_875 = arith.constant 0 : index
    %701 = arith.index_cast %700 : i32 to index
    %c0_876 = arith.constant 0 : index
    %702 = vector.load %arg2[%c0_875, %701, %c0_876] : memref<2x5023x3xf32, #tpu.memory_space<vmem>>, vector<2x1x3xf32>
    %c0_877 = arith.constant 0 : index
    %c175_878 = arith.constant 175 : index
    %c0_879 = arith.constant 0 : index
    %703 = vector.load %arg3[%c0_877, %c175_878, %c0_879] : memref<2x256x3xf32, #tpu.memory_space<vmem>>, vector<2x1x3xf32>
    tpu.vector_store %arg3[%c0_877, %c175_878, %c0_879], %702 {strides = array<i32>} : memref<2x256x3xf32, #tpu.memory_space<vmem>>, vector<2x1x3xf32>,
    %c176 = arith.constant 176 : index
    %704 = memref.load %arg1[%c176] : memref<256xi32, #tpu.memory_space<smem>>
    %c0_880 = arith.constant 0 : index
    %705 = arith.index_cast %704 : i32 to index
    %c0_881 = arith.constant 0 : index
    %706 = vector.load %arg2[%c0_880, %705, %c0_881] : memref<2x5023x3xf32, #tpu.memory_space<vmem>>, vector<2x1x3xf32>
    %c0_882 = arith.constant 0 : index
    %c176_883 = arith.constant 176 : index
    %c0_884 = arith.constant 0 : index
    %707 = vector.load %arg3[%c0_882, %c176_883, %c0_884] : memref<2x256x3xf32, #tpu.memory_space<vmem>>, vector<2x1x3xf32>
    tpu.vector_store %arg3[%c0_882, %c176_883, %c0_884], %706 {strides = array<i32>} : memref<2x256x3xf32, #tpu.memory_space<vmem>>, vector<2x1x3xf32>,
    %c177 = arith.constant 177 : index
    %708 = memref.load %arg1[%c177] : memref<256xi32, #tpu.memory_space<smem>>
    %c0_885 = arith.constant 0 : index
    %709 = arith.index_cast %708 : i32 to index
    %c0_886 = arith.constant 0 : index
    %710 = vector.load %arg2[%c0_885, %709, %c0_886] : memref<2x5023x3xf32, #tpu.memory_space<vmem>>, vector<2x1x3xf32>
    %c0_887 = arith.constant 0 : index
    %c177_888 = arith.constant 177 : index
    %c0_889 = arith.constant 0 : index
    %711 = vector.load %arg3[%c0_887, %c177_888, %c0_889] : memref<2x256x3xf32, #tpu.memory_space<vmem>>, vector<2x1x3xf32>
    tpu.vector_store %arg3[%c0_887, %c177_888, %c0_889], %710 {strides = array<i32>} : memref<2x256x3xf32, #tpu.memory_space<vmem>>, vector<2x1x3xf32>,
    %c178 = arith.constant 178 : index
    %712 = memref.load %arg1[%c178] : memref<256xi32, #tpu.memory_space<smem>>
    %c0_890 = arith.constant 0 : index
    %713 = arith.index_cast %712 : i32 to index
    %c0_891 = arith.constant 0 : index
    %714 = vector.load %arg2[%c0_890, %713, %c0_891] : memref<2x5023x3xf32, #tpu.memory_space<vmem>>, vector<2x1x3xf32>
    %c0_892 = arith.constant 0 : index
    %c178_893 = arith.constant 178 : index
    %c0_894 = arith.constant 0 : index
    %715 = vector.load %arg3[%c0_892, %c178_893, %c0_894] : memref<2x256x3xf32, #tpu.memory_space<vmem>>, vector<2x1x3xf32>
    tpu.vector_store %arg3[%c0_892, %c178_893, %c0_894], %714 {strides = array<i32>} : memref<2x256x3xf32, #tpu.memory_space<vmem>>, vector<2x1x3xf32>,
    %c179 = arith.constant 179 : index
    %716 = memref.load %arg1[%c179] : memref<256xi32, #tpu.memory_space<smem>>
    %c0_895 = arith.constant 0 : index
    %717 = arith.index_cast %716 : i32 to index
    %c0_896 = arith.constant 0 : index
    %718 = vector.load %arg2[%c0_895, %717, %c0_896] : memref<2x5023x3xf32, #tpu.memory_space<vmem>>, vector<2x1x3xf32>
    %c0_897 = arith.constant 0 : index
    %c179_898 = arith.constant 179 : index
    %c0_899 = arith.constant 0 : index
    %719 = vector.load %arg3[%c0_897, %c179_898, %c0_899] : memref<2x256x3xf32, #tpu.memory_space<vmem>>, vector<2x1x3xf32>
    tpu.vector_store %arg3[%c0_897, %c179_898, %c0_899], %718 {strides = array<i32>} : memref<2x256x3xf32, #tpu.memory_space<vmem>>, vector<2x1x3xf32>,
    %c180 = arith.constant 180 : index
    %720 = memref.load %arg1[%c180] : memref<256xi32, #tpu.memory_space<smem>>
    %c0_900 = arith.constant 0 : index
    %721 = arith.index_cast %720 : i32 to index
    %c0_901 = arith.constant 0 : index
    %722 = vector.load %arg2[%c0_900, %721, %c0_901] : memref<2x5023x3xf32, #tpu.memory_space<vmem>>, vector<2x1x3xf32>
    %c0_902 = arith.constant 0 : index
    %c180_903 = arith.constant 180 : index
    %c0_904 = arith.constant 0 : index
    %723 = vector.load %arg3[%c0_902, %c180_903, %c0_904] : memref<2x256x3xf32, #tpu.memory_space<vmem>>, vector<2x1x3xf32>
    tpu.vector_store %arg3[%c0_902, %c180_903, %c0_904], %722 {strides = array<i32>} : memref<2x256x3xf32, #tpu.memory_space<vmem>>, vector<2x1x3xf32>,
    %c181 = arith.constant 181 : index
    %724 = memref.load %arg1[%c181] : memref<256xi32, #tpu.memory_space<smem>>
    %c0_905 = arith.constant 0 : index
    %725 = arith.index_cast %724 : i32 to index
    %c0_906 = arith.constant 0 : index
    %726 = vector.load %arg2[%c0_905, %725, %c0_906] : memref<2x5023x3xf32, #tpu.memory_space<vmem>>, vector<2x1x3xf32>
    %c0_907 = arith.constant 0 : index
    %c181_908 = arith.constant 181 : index
    %c0_909 = arith.constant 0 : index
    %727 = vector.load %arg3[%c0_907, %c181_908, %c0_909] : memref<2x256x3xf32, #tpu.memory_space<vmem>>, vector<2x1x3xf32>
    tpu.vector_store %arg3[%c0_907, %c181_908, %c0_909], %726 {strides = array<i32>} : memref<2x256x3xf32, #tpu.memory_space<vmem>>, vector<2x1x3xf32>,
    %c182 = arith.constant 182 : index
    %728 = memref.load %arg1[%c182] : memref<256xi32, #tpu.memory_space<smem>>
    %c0_910 = arith.constant 0 : index
    %729 = arith.index_cast %728 : i32 to index
    %c0_911 = arith.constant 0 : index
    %730 = vector.load %arg2[%c0_910, %729, %c0_911] : memref<2x5023x3xf32, #tpu.memory_space<vmem>>, vector<2x1x3xf32>
    %c0_912 = arith.constant 0 : index
    %c182_913 = arith.constant 182 : index
    %c0_914 = arith.constant 0 : index
    %731 = vector.load %arg3[%c0_912, %c182_913, %c0_914] : memref<2x256x3xf32, #tpu.memory_space<vmem>>, vector<2x1x3xf32>
    tpu.vector_store %arg3[%c0_912, %c182_913, %c0_914], %730 {strides = array<i32>} : memref<2x256x3xf32, #tpu.memory_space<vmem>>, vector<2x1x3xf32>,
    %c183 = arith.constant 183 : index
    %732 = memref.load %arg1[%c183] : memref<256xi32, #tpu.memory_space<smem>>
    %c0_915 = arith.constant 0 : index
    %733 = arith.index_cast %732 : i32 to index
    %c0_916 = arith.constant 0 : index
    %734 = vector.load %arg2[%c0_915, %733, %c0_916] : memref<2x5023x3xf32, #tpu.memory_space<vmem>>, vector<2x1x3xf32>
    %c0_917 = arith.constant 0 : index
    %c183_918 = arith.constant 183 : index
    %c0_919 = arith.constant 0 : index
    %735 = vector.load %arg3[%c0_917, %c183_918, %c0_919] : memref<2x256x3xf32, #tpu.memory_space<vmem>>, vector<2x1x3xf32>
    tpu.vector_store %arg3[%c0_917, %c183_918, %c0_919], %734 {strides = array<i32>} : memref<2x256x3xf32, #tpu.memory_space<vmem>>, vector<2x1x3xf32>,
    %c184 = arith.constant 184 : index
    %736 = memref.load %arg1[%c184] : memref<256xi32, #tpu.memory_space<smem>>
    %c0_920 = arith.constant 0 : index
    %737 = arith.index_cast %736 : i32 to index
    %c0_921 = arith.constant 0 : index
    %738 = vector.load %arg2[%c0_920, %737, %c0_921] : memref<2x5023x3xf32, #tpu.memory_space<vmem>>, vector<2x1x3xf32>
    %c0_922 = arith.constant 0 : index
    %c184_923 = arith.constant 184 : index
    %c0_924 = arith.constant 0 : index
    %739 = vector.load %arg3[%c0_922, %c184_923, %c0_924] : memref<2x256x3xf32, #tpu.memory_space<vmem>>, vector<2x1x3xf32>
    tpu.vector_store %arg3[%c0_922, %c184_923, %c0_924], %738 {strides = array<i32>} : memref<2x256x3xf32, #tpu.memory_space<vmem>>, vector<2x1x3xf32>,
    %c185 = arith.constant 185 : index
    %740 = memref.load %arg1[%c185] : memref<256xi32, #tpu.memory_space<smem>>
    %c0_925 = arith.constant 0 : index
    %741 = arith.index_cast %740 : i32 to index
    %c0_926 = arith.constant 0 : index
    %742 = vector.load %arg2[%c0_925, %741, %c0_926] : memref<2x5023x3xf32, #tpu.memory_space<vmem>>, vector<2x1x3xf32>
    %c0_927 = arith.constant 0 : index
    %c185_928 = arith.constant 185 : index
    %c0_929 = arith.constant 0 : index
    %743 = vector.load %arg3[%c0_927, %c185_928, %c0_929] : memref<2x256x3xf32, #tpu.memory_space<vmem>>, vector<2x1x3xf32>
    tpu.vector_store %arg3[%c0_927, %c185_928, %c0_929], %742 {strides = array<i32>} : memref<2x256x3xf32, #tpu.memory_space<vmem>>, vector<2x1x3xf32>,
    %c186 = arith.constant 186 : index
    %744 = memref.load %arg1[%c186] : memref<256xi32, #tpu.memory_space<smem>>
    %c0_930 = arith.constant 0 : index
    %745 = arith.index_cast %744 : i32 to index
    %c0_931 = arith.constant 0 : index
    %746 = vector.load %arg2[%c0_930, %745, %c0_931] : memref<2x5023x3xf32, #tpu.memory_space<vmem>>, vector<2x1x3xf32>
    %c0_932 = arith.constant 0 : index
    %c186_933 = arith.constant 186 : index
    %c0_934 = arith.constant 0 : index
    %747 = vector.load %arg3[%c0_932, %c186_933, %c0_934] : memref<2x256x3xf32, #tpu.memory_space<vmem>>, vector<2x1x3xf32>
    tpu.vector_store %arg3[%c0_932, %c186_933, %c0_934], %746 {strides = array<i32>} : memref<2x256x3xf32, #tpu.memory_space<vmem>>, vector<2x1x3xf32>,
    %c187 = arith.constant 187 : index
    %748 = memref.load %arg1[%c187] : memref<256xi32, #tpu.memory_space<smem>>
    %c0_935 = arith.constant 0 : index
    %749 = arith.index_cast %748 : i32 to index
    %c0_936 = arith.constant 0 : index
    %750 = vector.load %arg2[%c0_935, %749, %c0_936] : memref<2x5023x3xf32, #tpu.memory_space<vmem>>, vector<2x1x3xf32>
    %c0_937 = arith.constant 0 : index
    %c187_938 = arith.constant 187 : index
    %c0_939 = arith.constant 0 : index
    %751 = vector.load %arg3[%c0_937, %c187_938, %c0_939] : memref<2x256x3xf32, #tpu.memory_space<vmem>>, vector<2x1x3xf32>
    tpu.vector_store %arg3[%c0_937, %c187_938, %c0_939], %750 {strides = array<i32>} : memref<2x256x3xf32, #tpu.memory_space<vmem>>, vector<2x1x3xf32>,
    %c188 = arith.constant 188 : index
    %752 = memref.load %arg1[%c188] : memref<256xi32, #tpu.memory_space<smem>>
    %c0_940 = arith.constant 0 : index
    %753 = arith.index_cast %752 : i32 to index
    %c0_941 = arith.constant 0 : index
    %754 = vector.load %arg2[%c0_940, %753, %c0_941] : memref<2x5023x3xf32, #tpu.memory_space<vmem>>, vector<2x1x3xf32>
    %c0_942 = arith.constant 0 : index
    %c188_943 = arith.constant 188 : index
    %c0_944 = arith.constant 0 : index
    %755 = vector.load %arg3[%c0_942, %c188_943, %c0_944] : memref<2x256x3xf32, #tpu.memory_space<vmem>>, vector<2x1x3xf32>
    tpu.vector_store %arg3[%c0_942, %c188_943, %c0_944], %754 {strides = array<i32>} : memref<2x256x3xf32, #tpu.memory_space<vmem>>, vector<2x1x3xf32>,
    %c189 = arith.constant 189 : index
    %756 = memref.load %arg1[%c189] : memref<256xi32, #tpu.memory_space<smem>>
    %c0_945 = arith.constant 0 : index
    %757 = arith.index_cast %756 : i32 to index
    %c0_946 = arith.constant 0 : index
    %758 = vector.load %arg2[%c0_945, %757, %c0_946] : memref<2x5023x3xf32, #tpu.memory_space<vmem>>, vector<2x1x3xf32>
    %c0_947 = arith.constant 0 : index
    %c189_948 = arith.constant 189 : index
    %c0_949 = arith.constant 0 : index
    %759 = vector.load %arg3[%c0_947, %c189_948, %c0_949] : memref<2x256x3xf32, #tpu.memory_space<vmem>>, vector<2x1x3xf32>
    tpu.vector_store %arg3[%c0_947, %c189_948, %c0_949], %758 {strides = array<i32>} : memref<2x256x3xf32, #tpu.memory_space<vmem>>, vector<2x1x3xf32>,
    %c190 = arith.constant 190 : index
    %760 = memref.load %arg1[%c190] : memref<256xi32, #tpu.memory_space<smem>>
    %c0_950 = arith.constant 0 : index
    %761 = arith.index_cast %760 : i32 to index
    %c0_951 = arith.constant 0 : index
    %762 = vector.load %arg2[%c0_950, %761, %c0_951] : memref<2x5023x3xf32, #tpu.memory_space<vmem>>, vector<2x1x3xf32>
    %c0_952 = arith.constant 0 : index
    %c190_953 = arith.constant 190 : index
    %c0_954 = arith.constant 0 : index
    %763 = vector.load %arg3[%c0_952, %c190_953, %c0_954] : memref<2x256x3xf32, #tpu.memory_space<vmem>>, vector<2x1x3xf32>
    tpu.vector_store %arg3[%c0_952, %c190_953, %c0_954], %762 {strides = array<i32>} : memref<2x256x3xf32, #tpu.memory_space<vmem>>, vector<2x1x3xf32>,
    %c191 = arith.constant 191 : index
    %764 = memref.load %arg1[%c191] : memref<256xi32, #tpu.memory_space<smem>>
    %c0_955 = arith.constant 0 : index
    %765 = arith.index_cast %764 : i32 to index
    %c0_956 = arith.constant 0 : index
    %766 = vector.load %arg2[%c0_955, %765, %c0_956] : memref<2x5023x3xf32, #tpu.memory_space<vmem>>, vector<2x1x3xf32>
    %c0_957 = arith.constant 0 : index
    %c191_958 = arith.constant 191 : index
    %c0_959 = arith.constant 0 : index
    %767 = vector.load %arg3[%c0_957, %c191_958, %c0_959] : memref<2x256x3xf32, #tpu.memory_space<vmem>>, vector<2x1x3xf32>
    tpu.vector_store %arg3[%c0_957, %c191_958, %c0_959], %766 {strides = array<i32>} : memref<2x256x3xf32, #tpu.memory_space<vmem>>, vector<2x1x3xf32>,
    %c192 = arith.constant 192 : index
    %768 = memref.load %arg1[%c192] : memref<256xi32, #tpu.memory_space<smem>>
    %c0_960 = arith.constant 0 : index
    %769 = arith.index_cast %768 : i32 to index
    %c0_961 = arith.constant 0 : index
    %770 = vector.load %arg2[%c0_960, %769, %c0_961] : memref<2x5023x3xf32, #tpu.memory_space<vmem>>, vector<2x1x3xf32>
    %c0_962 = arith.constant 0 : index
    %c192_963 = arith.constant 192 : index
    %c0_964 = arith.constant 0 : index
    %771 = vector.load %arg3[%c0_962, %c192_963, %c0_964] : memref<2x256x3xf32, #tpu.memory_space<vmem>>, vector<2x1x3xf32>
    tpu.vector_store %arg3[%c0_962, %c192_963, %c0_964], %770 {strides = array<i32>} : memref<2x256x3xf32, #tpu.memory_space<vmem>>, vector<2x1x3xf32>,
    %c193 = arith.constant 193 : index
    %772 = memref.load %arg1[%c193] : memref<256xi32, #tpu.memory_space<smem>>
    %c0_965 = arith.constant 0 : index
    %773 = arith.index_cast %772 : i32 to index
    %c0_966 = arith.constant 0 : index
    %774 = vector.load %arg2[%c0_965, %773, %c0_966] : memref<2x5023x3xf32, #tpu.memory_space<vmem>>, vector<2x1x3xf32>
    %c0_967 = arith.constant 0 : index
    %c193_968 = arith.constant 193 : index
    %c0_969 = arith.constant 0 : index
    %775 = vector.load %arg3[%c0_967, %c193_968, %c0_969] : memref<2x256x3xf32, #tpu.memory_space<vmem>>, vector<2x1x3xf32>
    tpu.vector_store %arg3[%c0_967, %c193_968, %c0_969], %774 {strides = array<i32>} : memref<2x256x3xf32, #tpu.memory_space<vmem>>, vector<2x1x3xf32>,
    %c194 = arith.constant 194 : index
    %776 = memref.load %arg1[%c194] : memref<256xi32, #tpu.memory_space<smem>>
    %c0_970 = arith.constant 0 : index
    %777 = arith.index_cast %776 : i32 to index
    %c0_971 = arith.constant 0 : index
    %778 = vector.load %arg2[%c0_970, %777, %c0_971] : memref<2x5023x3xf32, #tpu.memory_space<vmem>>, vector<2x1x3xf32>
    %c0_972 = arith.constant 0 : index
    %c194_973 = arith.constant 194 : index
    %c0_974 = arith.constant 0 : index
    %779 = vector.load %arg3[%c0_972, %c194_973, %c0_974] : memref<2x256x3xf32, #tpu.memory_space<vmem>>, vector<2x1x3xf32>
    tpu.vector_store %arg3[%c0_972, %c194_973, %c0_974], %778 {strides = array<i32>} : memref<2x256x3xf32, #tpu.memory_space<vmem>>, vector<2x1x3xf32>,
    %c195 = arith.constant 195 : index
    %780 = memref.load %arg1[%c195] : memref<256xi32, #tpu.memory_space<smem>>
    %c0_975 = arith.constant 0 : index
    %781 = arith.index_cast %780 : i32 to index
    %c0_976 = arith.constant 0 : index
    %782 = vector.load %arg2[%c0_975, %781, %c0_976] : memref<2x5023x3xf32, #tpu.memory_space<vmem>>, vector<2x1x3xf32>
    %c0_977 = arith.constant 0 : index
    %c195_978 = arith.constant 195 : index
    %c0_979 = arith.constant 0 : index
    %783 = vector.load %arg3[%c0_977, %c195_978, %c0_979] : memref<2x256x3xf32, #tpu.memory_space<vmem>>, vector<2x1x3xf32>
    tpu.vector_store %arg3[%c0_977, %c195_978, %c0_979], %782 {strides = array<i32>} : memref<2x256x3xf32, #tpu.memory_space<vmem>>, vector<2x1x3xf32>,
    %c196 = arith.constant 196 : index
    %784 = memref.load %arg1[%c196] : memref<256xi32, #tpu.memory_space<smem>>
    %c0_980 = arith.constant 0 : index
    %785 = arith.index_cast %784 : i32 to index
    %c0_981 = arith.constant 0 : index
    %786 = vector.load %arg2[%c0_980, %785, %c0_981] : memref<2x5023x3xf32, #tpu.memory_space<vmem>>, vector<2x1x3xf32>
    %c0_982 = arith.constant 0 : index
    %c196_983 = arith.constant 196 : index
    %c0_984 = arith.constant 0 : index
    %787 = vector.load %arg3[%c0_982, %c196_983, %c0_984] : memref<2x256x3xf32, #tpu.memory_space<vmem>>, vector<2x1x3xf32>
    tpu.vector_store %arg3[%c0_982, %c196_983, %c0_984], %786 {strides = array<i32>} : memref<2x256x3xf32, #tpu.memory_space<vmem>>, vector<2x1x3xf32>,
    %c197 = arith.constant 197 : index
    %788 = memref.load %arg1[%c197] : memref<256xi32, #tpu.memory_space<smem>>
    %c0_985 = arith.constant 0 : index
    %789 = arith.index_cast %788 : i32 to index
    %c0_986 = arith.constant 0 : index
    %790 = vector.load %arg2[%c0_985, %789, %c0_986] : memref<2x5023x3xf32, #tpu.memory_space<vmem>>, vector<2x1x3xf32>
    %c0_987 = arith.constant 0 : index
    %c197_988 = arith.constant 197 : index
    %c0_989 = arith.constant 0 : index
    %791 = vector.load %arg3[%c0_987, %c197_988, %c0_989] : memref<2x256x3xf32, #tpu.memory_space<vmem>>, vector<2x1x3xf32>
    tpu.vector_store %arg3[%c0_987, %c197_988, %c0_989], %790 {strides = array<i32>} : memref<2x256x3xf32, #tpu.memory_space<vmem>>, vector<2x1x3xf32>,
    %c198 = arith.constant 198 : index
    %792 = memref.load %arg1[%c198] : memref<256xi32, #tpu.memory_space<smem>>
    %c0_990 = arith.constant 0 : index
    %793 = arith.index_cast %792 : i32 to index
    %c0_991 = arith.constant 0 : index
    %794 = vector.load %arg2[%c0_990, %793, %c0_991] : memref<2x5023x3xf32, #tpu.memory_space<vmem>>, vector<2x1x3xf32>
    %c0_992 = arith.constant 0 : index
    %c198_993 = arith.constant 198 : index
    %c0_994 = arith.constant 0 : index
    %795 = vector.load %arg3[%c0_992, %c198_993, %c0_994] : memref<2x256x3xf32, #tpu.memory_space<vmem>>, vector<2x1x3xf32>
    tpu.vector_store %arg3[%c0_992, %c198_993, %c0_994], %794 {strides = array<i32>} : memref<2x256x3xf32, #tpu.memory_space<vmem>>, vector<2x1x3xf32>,
    %c199 = arith.constant 199 : index
    %796 = memref.load %arg1[%c199] : memref<256xi32, #tpu.memory_space<smem>>
    %c0_995 = arith.constant 0 : index
    %797 = arith.index_cast %796 : i32 to index
    %c0_996 = arith.constant 0 : index
    %798 = vector.load %arg2[%c0_995, %797, %c0_996] : memref<2x5023x3xf32, #tpu.memory_space<vmem>>, vector<2x1x3xf32>
    %c0_997 = arith.constant 0 : index
    %c199_998 = arith.constant 199 : index
    %c0_999 = arith.constant 0 : index
    %799 = vector.load %arg3[%c0_997, %c199_998, %c0_999] : memref<2x256x3xf32, #tpu.memory_space<vmem>>, vector<2x1x3xf32>
    tpu.vector_store %arg3[%c0_997, %c199_998, %c0_999], %798 {strides = array<i32>} : memref<2x256x3xf32, #tpu.memory_space<vmem>>, vector<2x1x3xf32>,
    %c200 = arith.constant 200 : index
    %800 = memref.load %arg1[%c200] : memref<256xi32, #tpu.memory_space<smem>>
    %c0_1000 = arith.constant 0 : index
    %801 = arith.index_cast %800 : i32 to index
    %c0_1001 = arith.constant 0 : index
    %802 = vector.load %arg2[%c0_1000, %801, %c0_1001] : memref<2x5023x3xf32, #tpu.memory_space<vmem>>, vector<2x1x3xf32>
    %c0_1002 = arith.constant 0 : index
    %c200_1003 = arith.constant 200 : index
    %c0_1004 = arith.constant 0 : index
    %803 = vector.load %arg3[%c0_1002, %c200_1003, %c0_1004] : memref<2x256x3xf32, #tpu.memory_space<vmem>>, vector<2x1x3xf32>
    tpu.vector_store %arg3[%c0_1002, %c200_1003, %c0_1004], %802 {strides = array<i32>} : memref<2x256x3xf32, #tpu.memory_space<vmem>>, vector<2x1x3xf32>,
    %c201 = arith.constant 201 : index
    %804 = memref.load %arg1[%c201] : memref<256xi32, #tpu.memory_space<smem>>
    %c0_1005 = arith.constant 0 : index
    %805 = arith.index_cast %804 : i32 to index
    %c0_1006 = arith.constant 0 : index
    %806 = vector.load %arg2[%c0_1005, %805, %c0_1006] : memref<2x5023x3xf32, #tpu.memory_space<vmem>>, vector<2x1x3xf32>
    %c0_1007 = arith.constant 0 : index
    %c201_1008 = arith.constant 201 : index
    %c0_1009 = arith.constant 0 : index
    %807 = vector.load %arg3[%c0_1007, %c201_1008, %c0_1009] : memref<2x256x3xf32, #tpu.memory_space<vmem>>, vector<2x1x3xf32>
    tpu.vector_store %arg3[%c0_1007, %c201_1008, %c0_1009], %806 {strides = array<i32>} : memref<2x256x3xf32, #tpu.memory_space<vmem>>, vector<2x1x3xf32>,
    %c202 = arith.constant 202 : index
    %808 = memref.load %arg1[%c202] : memref<256xi32, #tpu.memory_space<smem>>
    %c0_1010 = arith.constant 0 : index
    %809 = arith.index_cast %808 : i32 to index
    %c0_1011 = arith.constant 0 : index
    %810 = vector.load %arg2[%c0_1010, %809, %c0_1011] : memref<2x5023x3xf32, #tpu.memory_space<vmem>>, vector<2x1x3xf32>
    %c0_1012 = arith.constant 0 : index
    %c202_1013 = arith.constant 202 : index
    %c0_1014 = arith.constant 0 : index
    %811 = vector.load %arg3[%c0_1012, %c202_1013, %c0_1014] : memref<2x256x3xf32, #tpu.memory_space<vmem>>, vector<2x1x3xf32>
    tpu.vector_store %arg3[%c0_1012, %c202_1013, %c0_1014], %810 {strides = array<i32>} : memref<2x256x3xf32, #tpu.memory_space<vmem>>, vector<2x1x3xf32>,
    %c203 = arith.constant 203 : index
    %812 = memref.load %arg1[%c203] : memref<256xi32, #tpu.memory_space<smem>>
    %c0_1015 = arith.constant 0 : index
    %813 = arith.index_cast %812 : i32 to index
    %c0_1016 = arith.constant 0 : index
    %814 = vector.load %arg2[%c0_1015, %813, %c0_1016] : memref<2x5023x3xf32, #tpu.memory_space<vmem>>, vector<2x1x3xf32>
    %c0_1017 = arith.constant 0 : index
    %c203_1018 = arith.constant 203 : index
    %c0_1019 = arith.constant 0 : index
    %815 = vector.load %arg3[%c0_1017, %c203_1018, %c0_1019] : memref<2x256x3xf32, #tpu.memory_space<vmem>>, vector<2x1x3xf32>
    tpu.vector_store %arg3[%c0_1017, %c203_1018, %c0_1019], %814 {strides = array<i32>} : memref<2x256x3xf32, #tpu.memory_space<vmem>>, vector<2x1x3xf32>,
    %c204 = arith.constant 204 : index
    %816 = memref.load %arg1[%c204] : memref<256xi32, #tpu.memory_space<smem>>
    %c0_1020 = arith.constant 0 : index
    %817 = arith.index_cast %816 : i32 to index
    %c0_1021 = arith.constant 0 : index
    %818 = vector.load %arg2[%c0_1020, %817, %c0_1021] : memref<2x5023x3xf32, #tpu.memory_space<vmem>>, vector<2x1x3xf32>
    %c0_1022 = arith.constant 0 : index
    %c204_1023 = arith.constant 204 : index
    %c0_1024 = arith.constant 0 : index
    %819 = vector.load %arg3[%c0_1022, %c204_1023, %c0_1024] : memref<2x256x3xf32, #tpu.memory_space<vmem>>, vector<2x1x3xf32>
    tpu.vector_store %arg3[%c0_1022, %c204_1023, %c0_1024], %818 {strides = array<i32>} : memref<2x256x3xf32, #tpu.memory_space<vmem>>, vector<2x1x3xf32>,
    %c205 = arith.constant 205 : index
    %820 = memref.load %arg1[%c205] : memref<256xi32, #tpu.memory_space<smem>>
    %c0_1025 = arith.constant 0 : index
    %821 = arith.index_cast %820 : i32 to index
    %c0_1026 = arith.constant 0 : index
    %822 = vector.load %arg2[%c0_1025, %821, %c0_1026] : memref<2x5023x3xf32, #tpu.memory_space<vmem>>, vector<2x1x3xf32>
    %c0_1027 = arith.constant 0 : index
    %c205_1028 = arith.constant 205 : index
    %c0_1029 = arith.constant 0 : index
    %823 = vector.load %arg3[%c0_1027, %c205_1028, %c0_1029] : memref<2x256x3xf32, #tpu.memory_space<vmem>>, vector<2x1x3xf32>
    tpu.vector_store %arg3[%c0_1027, %c205_1028, %c0_1029], %822 {strides = array<i32>} : memref<2x256x3xf32, #tpu.memory_space<vmem>>, vector<2x1x3xf32>,
    %c206 = arith.constant 206 : index
    %824 = memref.load %arg1[%c206] : memref<256xi32, #tpu.memory_space<smem>>
    %c0_1030 = arith.constant 0 : index
    %825 = arith.index_cast %824 : i32 to index
    %c0_1031 = arith.constant 0 : index
    %826 = vector.load %arg2[%c0_1030, %825, %c0_1031] : memref<2x5023x3xf32, #tpu.memory_space<vmem>>, vector<2x1x3xf32>
    %c0_1032 = arith.constant 0 : index
    %c206_1033 = arith.constant 206 : index
    %c0_1034 = arith.constant 0 : index
    %827 = vector.load %arg3[%c0_1032, %c206_1033, %c0_1034] : memref<2x256x3xf32, #tpu.memory_space<vmem>>, vector<2x1x3xf32>
    tpu.vector_store %arg3[%c0_1032, %c206_1033, %c0_1034], %826 {strides = array<i32>} : memref<2x256x3xf32, #tpu.memory_space<vmem>>, vector<2x1x3xf32>,
    %c207 = arith.constant 207 : index
    %828 = memref.load %arg1[%c207] : memref<256xi32, #tpu.memory_space<smem>>
    %c0_1035 = arith.constant 0 : index
    %829 = arith.index_cast %828 : i32 to index
    %c0_1036 = arith.constant 0 : index
    %830 = vector.load %arg2[%c0_1035, %829, %c0_1036] : memref<2x5023x3xf32, #tpu.memory_space<vmem>>, vector<2x1x3xf32>
    %c0_1037 = arith.constant 0 : index
    %c207_1038 = arith.constant 207 : index
    %c0_1039 = arith.constant 0 : index
    %831 = vector.load %arg3[%c0_1037, %c207_1038, %c0_1039] : memref<2x256x3xf32, #tpu.memory_space<vmem>>, vector<2x1x3xf32>
    tpu.vector_store %arg3[%c0_1037, %c207_1038, %c0_1039], %830 {strides = array<i32>} : memref<2x256x3xf32, #tpu.memory_space<vmem>>, vector<2x1x3xf32>,
    %c208 = arith.constant 208 : index
    %832 = memref.load %arg1[%c208] : memref<256xi32, #tpu.memory_space<smem>>
    %c0_1040 = arith.constant 0 : index
    %833 = arith.index_cast %832 : i32 to index
    %c0_1041 = arith.constant 0 : index
    %834 = vector.load %arg2[%c0_1040, %833, %c0_1041] : memref<2x5023x3xf32, #tpu.memory_space<vmem>>, vector<2x1x3xf32>
    %c0_1042 = arith.constant 0 : index
    %c208_1043 = arith.constant 208 : index
    %c0_1044 = arith.constant 0 : index
    %835 = vector.load %arg3[%c0_1042, %c208_1043, %c0_1044] : memref<2x256x3xf32, #tpu.memory_space<vmem>>, vector<2x1x3xf32>
    tpu.vector_store %arg3[%c0_1042, %c208_1043, %c0_1044], %834 {strides = array<i32>} : memref<2x256x3xf32, #tpu.memory_space<vmem>>, vector<2x1x3xf32>,
    %c209 = arith.constant 209 : index
    %836 = memref.load %arg1[%c209] : memref<256xi32, #tpu.memory_space<smem>>
    %c0_1045 = arith.constant 0 : index
    %837 = arith.index_cast %836 : i32 to index
    %c0_1046 = arith.constant 0 : index
    %838 = vector.load %arg2[%c0_1045, %837, %c0_1046] : memref<2x5023x3xf32, #tpu.memory_space<vmem>>, vector<2x1x3xf32>
    %c0_1047 = arith.constant 0 : index
    %c209_1048 = arith.constant 209 : index
    %c0_1049 = arith.constant 0 : index
    %839 = vector.load %arg3[%c0_1047, %c209_1048, %c0_1049] : memref<2x256x3xf32, #tpu.memory_space<vmem>>, vector<2x1x3xf32>
    tpu.vector_store %arg3[%c0_1047, %c209_1048, %c0_1049], %838 {strides = array<i32>} : memref<2x256x3xf32, #tpu.memory_space<vmem>>, vector<2x1x3xf32>,
    %c210 = arith.constant 210 : index
    %840 = memref.load %arg1[%c210] : memref<256xi32, #tpu.memory_space<smem>>
    %c0_1050 = arith.constant 0 : index
    %841 = arith.index_cast %840 : i32 to index
    %c0_1051 = arith.constant 0 : index
    %842 = vector.load %arg2[%c0_1050, %841, %c0_1051] : memref<2x5023x3xf32, #tpu.memory_space<vmem>>, vector<2x1x3xf32>
    %c0_1052 = arith.constant 0 : index
    %c210_1053 = arith.constant 210 : index
    %c0_1054 = arith.constant 0 : index
    %843 = vector.load %arg3[%c0_1052, %c210_1053, %c0_1054] : memref<2x256x3xf32, #tpu.memory_space<vmem>>, vector<2x1x3xf32>
    tpu.vector_store %arg3[%c0_1052, %c210_1053, %c0_1054], %842 {strides = array<i32>} : memref<2x256x3xf32, #tpu.memory_space<vmem>>, vector<2x1x3xf32>,
    %c211 = arith.constant 211 : index
    %844 = memref.load %arg1[%c211] : memref<256xi32, #tpu.memory_space<smem>>
    %c0_1055 = arith.constant 0 : index
    %845 = arith.index_cast %844 : i32 to index
    %c0_1056 = arith.constant 0 : index
    %846 = vector.load %arg2[%c0_1055, %845, %c0_1056] : memref<2x5023x3xf32, #tpu.memory_space<vmem>>, vector<2x1x3xf32>
    %c0_1057 = arith.constant 0 : index
    %c211_1058 = arith.constant 211 : index
    %c0_1059 = arith.constant 0 : index
    %847 = vector.load %arg3[%c0_1057, %c211_1058, %c0_1059] : memref<2x256x3xf32, #tpu.memory_space<vmem>>, vector<2x1x3xf32>
    tpu.vector_store %arg3[%c0_1057, %c211_1058, %c0_1059], %846 {strides = array<i32>} : memref<2x256x3xf32, #tpu.memory_space<vmem>>, vector<2x1x3xf32>,
    %c212 = arith.constant 212 : index
    %848 = memref.load %arg1[%c212] : memref<256xi32, #tpu.memory_space<smem>>
    %c0_1060 = arith.constant 0 : index
    %849 = arith.index_cast %848 : i32 to index
    %c0_1061 = arith.constant 0 : index
    %850 = vector.load %arg2[%c0_1060, %849, %c0_1061] : memref<2x5023x3xf32, #tpu.memory_space<vmem>>, vector<2x1x3xf32>
    %c0_1062 = arith.constant 0 : index
    %c212_1063 = arith.constant 212 : index
    %c0_1064 = arith.constant 0 : index
    %851 = vector.load %arg3[%c0_1062, %c212_1063, %c0_1064] : memref<2x256x3xf32, #tpu.memory_space<vmem>>, vector<2x1x3xf32>
    tpu.vector_store %arg3[%c0_1062, %c212_1063, %c0_1064], %850 {strides = array<i32>} : memref<2x256x3xf32, #tpu.memory_space<vmem>>, vector<2x1x3xf32>,
    %c213 = arith.constant 213 : index
    %852 = memref.load %arg1[%c213] : memref<256xi32, #tpu.memory_space<smem>>
    %c0_1065 = arith.constant 0 : index
    %853 = arith.index_cast %852 : i32 to index
    %c0_1066 = arith.constant 0 : index
    %854 = vector.load %arg2[%c0_1065, %853, %c0_1066] : memref<2x5023x3xf32, #tpu.memory_space<vmem>>, vector<2x1x3xf32>
    %c0_1067 = arith.constant 0 : index
    %c213_1068 = arith.constant 213 : index
    %c0_1069 = arith.constant 0 : index
    %855 = vector.load %arg3[%c0_1067, %c213_1068, %c0_1069] : memref<2x256x3xf32, #tpu.memory_space<vmem>>, vector<2x1x3xf32>
    tpu.vector_store %arg3[%c0_1067, %c213_1068, %c0_1069], %854 {strides = array<i32>} : memref<2x256x3xf32, #tpu.memory_space<vmem>>, vector<2x1x3xf32>,
    %c214 = arith.constant 214 : index
    %856 = memref.load %arg1[%c214] : memref<256xi32, #tpu.memory_space<smem>>
    %c0_1070 = arith.constant 0 : index
    %857 = arith.index_cast %856 : i32 to index
    %c0_1071 = arith.constant 0 : index
    %858 = vector.load %arg2[%c0_1070, %857, %c0_1071] : memref<2x5023x3xf32, #tpu.memory_space<vmem>>, vector<2x1x3xf32>
    %c0_1072 = arith.constant 0 : index
    %c214_1073 = arith.constant 214 : index
    %c0_1074 = arith.constant 0 : index
    %859 = vector.load %arg3[%c0_1072, %c214_1073, %c0_1074] : memref<2x256x3xf32, #tpu.memory_space<vmem>>, vector<2x1x3xf32>
    tpu.vector_store %arg3[%c0_1072, %c214_1073, %c0_1074], %858 {strides = array<i32>} : memref<2x256x3xf32, #tpu.memory_space<vmem>>, vector<2x1x3xf32>,
    %c215 = arith.constant 215 : index
    %860 = memref.load %arg1[%c215] : memref<256xi32, #tpu.memory_space<smem>>
    %c0_1075 = arith.constant 0 : index
    %861 = arith.index_cast %860 : i32 to index
    %c0_1076 = arith.constant 0 : index
    %862 = vector.load %arg2[%c0_1075, %861, %c0_1076] : memref<2x5023x3xf32, #tpu.memory_space<vmem>>, vector<2x1x3xf32>
    %c0_1077 = arith.constant 0 : index
    %c215_1078 = arith.constant 215 : index
    %c0_1079 = arith.constant 0 : index
    %863 = vector.load %arg3[%c0_1077, %c215_1078, %c0_1079] : memref<2x256x3xf32, #tpu.memory_space<vmem>>, vector<2x1x3xf32>
    tpu.vector_store %arg3[%c0_1077, %c215_1078, %c0_1079], %862 {strides = array<i32>} : memref<2x256x3xf32, #tpu.memory_space<vmem>>, vector<2x1x3xf32>,
    %c216 = arith.constant 216 : index
    %864 = memref.load %arg1[%c216] : memref<256xi32, #tpu.memory_space<smem>>
    %c0_1080 = arith.constant 0 : index
    %865 = arith.index_cast %864 : i32 to index
    %c0_1081 = arith.constant 0 : index
    %866 = vector.load %arg2[%c0_1080, %865, %c0_1081] : memref<2x5023x3xf32, #tpu.memory_space<vmem>>, vector<2x1x3xf32>
    %c0_1082 = arith.constant 0 : index
    %c216_1083 = arith.constant 216 : index
    %c0_1084 = arith.constant 0 : index
    %867 = vector.load %arg3[%c0_1082, %c216_1083, %c0_1084] : memref<2x256x3xf32, #tpu.memory_space<vmem>>, vector<2x1x3xf32>
    tpu.vector_store %arg3[%c0_1082, %c216_1083, %c0_1084], %866 {strides = array<i32>} : memref<2x256x3xf32, #tpu.memory_space<vmem>>, vector<2x1x3xf32>,
    %c217 = arith.constant 217 : index
    %868 = memref.load %arg1[%c217] : memref<256xi32, #tpu.memory_space<smem>>
    %c0_1085 = arith.constant 0 : index
    %869 = arith.index_cast %868 : i32 to index
    %c0_1086 = arith.constant 0 : index
    %870 = vector.load %arg2[%c0_1085, %869, %c0_1086] : memref<2x5023x3xf32, #tpu.memory_space<vmem>>, vector<2x1x3xf32>
    %c0_1087 = arith.constant 0 : index
    %c217_1088 = arith.constant 217 : index
    %c0_1089 = arith.constant 0 : index
    %871 = vector.load %arg3[%c0_1087, %c217_1088, %c0_1089] : memref<2x256x3xf32, #tpu.memory_space<vmem>>, vector<2x1x3xf32>
    tpu.vector_store %arg3[%c0_1087, %c217_1088, %c0_1089], %870 {strides = array<i32>} : memref<2x256x3xf32, #tpu.memory_space<vmem>>, vector<2x1x3xf32>,
    %c218 = arith.constant 218 : index
    %872 = memref.load %arg1[%c218] : memref<256xi32, #tpu.memory_space<smem>>
    %c0_1090 = arith.constant 0 : index
    %873 = arith.index_cast %872 : i32 to index
    %c0_1091 = arith.constant 0 : index
    %874 = vector.load %arg2[%c0_1090, %873, %c0_1091] : memref<2x5023x3xf32, #tpu.memory_space<vmem>>, vector<2x1x3xf32>
    %c0_1092 = arith.constant 0 : index
    %c218_1093 = arith.constant 218 : index
    %c0_1094 = arith.constant 0 : index
    %875 = vector.load %arg3[%c0_1092, %c218_1093, %c0_1094] : memref<2x256x3xf32, #tpu.memory_space<vmem>>, vector<2x1x3xf32>
    tpu.vector_store %arg3[%c0_1092, %c218_1093, %c0_1094], %874 {strides = array<i32>} : memref<2x256x3xf32, #tpu.memory_space<vmem>>, vector<2x1x3xf32>,
    %c219 = arith.constant 219 : index
    %876 = memref.load %arg1[%c219] : memref<256xi32, #tpu.memory_space<smem>>
    %c0_1095 = arith.constant 0 : index
    %877 = arith.index_cast %876 : i32 to index
    %c0_1096 = arith.constant 0 : index
    %878 = vector.load %arg2[%c0_1095, %877, %c0_1096] : memref<2x5023x3xf32, #tpu.memory_space<vmem>>, vector<2x1x3xf32>
    %c0_1097 = arith.constant 0 : index
    %c219_1098 = arith.constant 219 : index
    %c0_1099 = arith.constant 0 : index
    %879 = vector.load %arg3[%c0_1097, %c219_1098, %c0_1099] : memref<2x256x3xf32, #tpu.memory_space<vmem>>, vector<2x1x3xf32>
    tpu.vector_store %arg3[%c0_1097, %c219_1098, %c0_1099], %878 {strides = array<i32>} : memref<2x256x3xf32, #tpu.memory_space<vmem>>, vector<2x1x3xf32>,
    %c220 = arith.constant 220 : index
    %880 = memref.load %arg1[%c220] : memref<256xi32, #tpu.memory_space<smem>>
    %c0_1100 = arith.constant 0 : index
    %881 = arith.index_cast %880 : i32 to index
    %c0_1101 = arith.constant 0 : index
    %882 = vector.load %arg2[%c0_1100, %881, %c0_1101] : memref<2x5023x3xf32, #tpu.memory_space<vmem>>, vector<2x1x3xf32>
    %c0_1102 = arith.constant 0 : index
    %c220_1103 = arith.constant 220 : index
    %c0_1104 = arith.constant 0 : index
    %883 = vector.load %arg3[%c0_1102, %c220_1103, %c0_1104] : memref<2x256x3xf32, #tpu.memory_space<vmem>>, vector<2x1x3xf32>
    tpu.vector_store %arg3[%c0_1102, %c220_1103, %c0_1104], %882 {strides = array<i32>} : memref<2x256x3xf32, #tpu.memory_space<vmem>>, vector<2x1x3xf32>,
    %c221 = arith.constant 221 : index
    %884 = memref.load %arg1[%c221] : memref<256xi32, #tpu.memory_space<smem>>
    %c0_1105 = arith.constant 0 : index
    %885 = arith.index_cast %884 : i32 to index
    %c0_1106 = arith.constant 0 : index
    %886 = vector.load %arg2[%c0_1105, %885, %c0_1106] : memref<2x5023x3xf32, #tpu.memory_space<vmem>>, vector<2x1x3xf32>
    %c0_1107 = arith.constant 0 : index
    %c221_1108 = arith.constant 221 : index
    %c0_1109 = arith.constant 0 : index
    %887 = vector.load %arg3[%c0_1107, %c221_1108, %c0_1109] : memref<2x256x3xf32, #tpu.memory_space<vmem>>, vector<2x1x3xf32>
    tpu.vector_store %arg3[%c0_1107, %c221_1108, %c0_1109], %886 {strides = array<i32>} : memref<2x256x3xf32, #tpu.memory_space<vmem>>, vector<2x1x3xf32>,
    %c222 = arith.constant 222 : index
    %888 = memref.load %arg1[%c222] : memref<256xi32, #tpu.memory_space<smem>>
    %c0_1110 = arith.constant 0 : index
    %889 = arith.index_cast %888 : i32 to index
    %c0_1111 = arith.constant 0 : index
    %890 = vector.load %arg2[%c0_1110, %889, %c0_1111] : memref<2x5023x3xf32, #tpu.memory_space<vmem>>, vector<2x1x3xf32>
    %c0_1112 = arith.constant 0 : index
    %c222_1113 = arith.constant 222 : index
    %c0_1114 = arith.constant 0 : index
    %891 = vector.load %arg3[%c0_1112, %c222_1113, %c0_1114] : memref<2x256x3xf32, #tpu.memory_space<vmem>>, vector<2x1x3xf32>
    tpu.vector_store %arg3[%c0_1112, %c222_1113, %c0_1114], %890 {strides = array<i32>} : memref<2x256x3xf32, #tpu.memory_space<vmem>>, vector<2x1x3xf32>,
    %c223 = arith.constant 223 : index
    %892 = memref.load %arg1[%c223] : memref<256xi32, #tpu.memory_space<smem>>
    %c0_1115 = arith.constant 0 : index
    %893 = arith.index_cast %892 : i32 to index
    %c0_1116 = arith.constant 0 : index
    %894 = vector.load %arg2[%c0_1115, %893, %c0_1116] : memref<2x5023x3xf32, #tpu.memory_space<vmem>>, vector<2x1x3xf32>
    %c0_1117 = arith.constant 0 : index
    %c223_1118 = arith.constant 223 : index
    %c0_1119 = arith.constant 0 : index
    %895 = vector.load %arg3[%c0_1117, %c223_1118, %c0_1119] : memref<2x256x3xf32, #tpu.memory_space<vmem>>, vector<2x1x3xf32>
    tpu.vector_store %arg3[%c0_1117, %c223_1118, %c0_1119], %894 {strides = array<i32>} : memref<2x256x3xf32, #tpu.memory_space<vmem>>, vector<2x1x3xf32>,
    %c224 = arith.constant 224 : index
    %896 = memref.load %arg1[%c224] : memref<256xi32, #tpu.memory_space<smem>>
    %c0_1120 = arith.constant 0 : index
    %897 = arith.index_cast %896 : i32 to index
    %c0_1121 = arith.constant 0 : index
    %898 = vector.load %arg2[%c0_1120, %897, %c0_1121] : memref<2x5023x3xf32, #tpu.memory_space<vmem>>, vector<2x1x3xf32>
    %c0_1122 = arith.constant 0 : index
    %c224_1123 = arith.constant 224 : index
    %c0_1124 = arith.constant 0 : index
    %899 = vector.load %arg3[%c0_1122, %c224_1123, %c0_1124] : memref<2x256x3xf32, #tpu.memory_space<vmem>>, vector<2x1x3xf32>
    tpu.vector_store %arg3[%c0_1122, %c224_1123, %c0_1124], %898 {strides = array<i32>} : memref<2x256x3xf32, #tpu.memory_space<vmem>>, vector<2x1x3xf32>,
    %c225 = arith.constant 225 : index
    %900 = memref.load %arg1[%c225] : memref<256xi32, #tpu.memory_space<smem>>
    %c0_1125 = arith.constant 0 : index
    %901 = arith.index_cast %900 : i32 to index
    %c0_1126 = arith.constant 0 : index
    %902 = vector.load %arg2[%c0_1125, %901, %c0_1126] : memref<2x5023x3xf32, #tpu.memory_space<vmem>>, vector<2x1x3xf32>
    %c0_1127 = arith.constant 0 : index
    %c225_1128 = arith.constant 225 : index
    %c0_1129 = arith.constant 0 : index
    %903 = vector.load %arg3[%c0_1127, %c225_1128, %c0_1129] : memref<2x256x3xf32, #tpu.memory_space<vmem>>, vector<2x1x3xf32>
    tpu.vector_store %arg3[%c0_1127, %c225_1128, %c0_1129], %902 {strides = array<i32>} : memref<2x256x3xf32, #tpu.memory_space<vmem>>, vector<2x1x3xf32>,
    %c226 = arith.constant 226 : index
    %904 = memref.load %arg1[%c226] : memref<256xi32, #tpu.memory_space<smem>>
    %c0_1130 = arith.constant 0 : index
    %905 = arith.index_cast %904 : i32 to index
    %c0_1131 = arith.constant 0 : index
    %906 = vector.load %arg2[%c0_1130, %905, %c0_1131] : memref<2x5023x3xf32, #tpu.memory_space<vmem>>, vector<2x1x3xf32>
    %c0_1132 = arith.constant 0 : index
    %c226_1133 = arith.constant 226 : index
    %c0_1134 = arith.constant 0 : index
    %907 = vector.load %arg3[%c0_1132, %c226_1133, %c0_1134] : memref<2x256x3xf32, #tpu.memory_space<vmem>>, vector<2x1x3xf32>
    tpu.vector_store %arg3[%c0_1132, %c226_1133, %c0_1134], %906 {strides = array<i32>} : memref<2x256x3xf32, #tpu.memory_space<vmem>>, vector<2x1x3xf32>,
    %c227 = arith.constant 227 : index
    %908 = memref.load %arg1[%c227] : memref<256xi32, #tpu.memory_space<smem>>
    %c0_1135 = arith.constant 0 : index
    %909 = arith.index_cast %908 : i32 to index
    %c0_1136 = arith.constant 0 : index
    %910 = vector.load %arg2[%c0_1135, %909, %c0_1136] : memref<2x5023x3xf32, #tpu.memory_space<vmem>>, vector<2x1x3xf32>
    %c0_1137 = arith.constant 0 : index
    %c227_1138 = arith.constant 227 : index
    %c0_1139 = arith.constant 0 : index
    %911 = vector.load %arg3[%c0_1137, %c227_1138, %c0_1139] : memref<2x256x3xf32, #tpu.memory_space<vmem>>, vector<2x1x3xf32>
    tpu.vector_store %arg3[%c0_1137, %c227_1138, %c0_1139], %910 {strides = array<i32>} : memref<2x256x3xf32, #tpu.memory_space<vmem>>, vector<2x1x3xf32>,
    %c228 = arith.constant 228 : index
    %912 = memref.load %arg1[%c228] : memref<256xi32, #tpu.memory_space<smem>>
    %c0_1140 = arith.constant 0 : index
    %913 = arith.index_cast %912 : i32 to index
    %c0_1141 = arith.constant 0 : index
    %914 = vector.load %arg2[%c0_1140, %913, %c0_1141] : memref<2x5023x3xf32, #tpu.memory_space<vmem>>, vector<2x1x3xf32>
    %c0_1142 = arith.constant 0 : index
    %c228_1143 = arith.constant 228 : index
    %c0_1144 = arith.constant 0 : index
    %915 = vector.load %arg3[%c0_1142, %c228_1143, %c0_1144] : memref<2x256x3xf32, #tpu.memory_space<vmem>>, vector<2x1x3xf32>
    tpu.vector_store %arg3[%c0_1142, %c228_1143, %c0_1144], %914 {strides = array<i32>} : memref<2x256x3xf32, #tpu.memory_space<vmem>>, vector<2x1x3xf32>,
    %c229 = arith.constant 229 : index
    %916 = memref.load %arg1[%c229] : memref<256xi32, #tpu.memory_space<smem>>
    %c0_1145 = arith.constant 0 : index
    %917 = arith.index_cast %916 : i32 to index
    %c0_1146 = arith.constant 0 : index
    %918 = vector.load %arg2[%c0_1145, %917, %c0_1146] : memref<2x5023x3xf32, #tpu.memory_space<vmem>>, vector<2x1x3xf32>
    %c0_1147 = arith.constant 0 : index
    %c229_1148 = arith.constant 229 : index
    %c0_1149 = arith.constant 0 : index
    %919 = vector.load %arg3[%c0_1147, %c229_1148, %c0_1149] : memref<2x256x3xf32, #tpu.memory_space<vmem>>, vector<2x1x3xf32>
    tpu.vector_store %arg3[%c0_1147, %c229_1148, %c0_1149], %918 {strides = array<i32>} : memref<2x256x3xf32, #tpu.memory_space<vmem>>, vector<2x1x3xf32>,
    %c230 = arith.constant 230 : index
    %920 = memref.load %arg1[%c230] : memref<256xi32, #tpu.memory_space<smem>>
    %c0_1150 = arith.constant 0 : index
    %921 = arith.index_cast %920 : i32 to index
    %c0_1151 = arith.constant 0 : index
    %922 = vector.load %arg2[%c0_1150, %921, %c0_1151] : memref<2x5023x3xf32, #tpu.memory_space<vmem>>, vector<2x1x3xf32>
    %c0_1152 = arith.constant 0 : index
    %c230_1153 = arith.constant 230 : index
    %c0_1154 = arith.constant 0 : index
    %923 = vector.load %arg3[%c0_1152, %c230_1153, %c0_1154] : memref<2x256x3xf32, #tpu.memory_space<vmem>>, vector<2x1x3xf32>
    tpu.vector_store %arg3[%c0_1152, %c230_1153, %c0_1154], %922 {strides = array<i32>} : memref<2x256x3xf32, #tpu.memory_space<vmem>>, vector<2x1x3xf32>,
    %c231 = arith.constant 231 : index
    %924 = memref.load %arg1[%c231] : memref<256xi32, #tpu.memory_space<smem>>
    %c0_1155 = arith.constant 0 : index
    %925 = arith.index_cast %924 : i32 to index
    %c0_1156 = arith.constant 0 : index
    %926 = vector.load %arg2[%c0_1155, %925, %c0_1156] : memref<2x5023x3xf32, #tpu.memory_space<vmem>>, vector<2x1x3xf32>
    %c0_1157 = arith.constant 0 : index
    %c231_1158 = arith.constant 231 : index
    %c0_1159 = arith.constant 0 : index
    %927 = vector.load %arg3[%c0_1157, %c231_1158, %c0_1159] : memref<2x256x3xf32, #tpu.memory_space<vmem>>, vector<2x1x3xf32>
    tpu.vector_store %arg3[%c0_1157, %c231_1158, %c0_1159], %926 {strides = array<i32>} : memref<2x256x3xf32, #tpu.memory_space<vmem>>, vector<2x1x3xf32>,
    %c232 = arith.constant 232 : index
    %928 = memref.load %arg1[%c232] : memref<256xi32, #tpu.memory_space<smem>>
    %c0_1160 = arith.constant 0 : index
    %929 = arith.index_cast %928 : i32 to index
    %c0_1161 = arith.constant 0 : index
    %930 = vector.load %arg2[%c0_1160, %929, %c0_1161] : memref<2x5023x3xf32, #tpu.memory_space<vmem>>, vector<2x1x3xf32>
    %c0_1162 = arith.constant 0 : index
    %c232_1163 = arith.constant 232 : index
    %c0_1164 = arith.constant 0 : index
    %931 = vector.load %arg3[%c0_1162, %c232_1163, %c0_1164] : memref<2x256x3xf32, #tpu.memory_space<vmem>>, vector<2x1x3xf32>
    tpu.vector_store %arg3[%c0_1162, %c232_1163, %c0_1164], %930 {strides = array<i32>} : memref<2x256x3xf32, #tpu.memory_space<vmem>>, vector<2x1x3xf32>,
    %c233 = arith.constant 233 : index
    %932 = memref.load %arg1[%c233] : memref<256xi32, #tpu.memory_space<smem>>
    %c0_1165 = arith.constant 0 : index
    %933 = arith.index_cast %932 : i32 to index
    %c0_1166 = arith.constant 0 : index
    %934 = vector.load %arg2[%c0_1165, %933, %c0_1166] : memref<2x5023x3xf32, #tpu.memory_space<vmem>>, vector<2x1x3xf32>
    %c0_1167 = arith.constant 0 : index
    %c233_1168 = arith.constant 233 : index
    %c0_1169 = arith.constant 0 : index
    %935 = vector.load %arg3[%c0_1167, %c233_1168, %c0_1169] : memref<2x256x3xf32, #tpu.memory_space<vmem>>, vector<2x1x3xf32>
    tpu.vector_store %arg3[%c0_1167, %c233_1168, %c0_1169], %934 {strides = array<i32>} : memref<2x256x3xf32, #tpu.memory_space<vmem>>, vector<2x1x3xf32>,
    %c234 = arith.constant 234 : index
    %936 = memref.load %arg1[%c234] : memref<256xi32, #tpu.memory_space<smem>>
    %c0_1170 = arith.constant 0 : index
    %937 = arith.index_cast %936 : i32 to index
    %c0_1171 = arith.constant 0 : index
    %938 = vector.load %arg2[%c0_1170, %937, %c0_1171] : memref<2x5023x3xf32, #tpu.memory_space<vmem>>, vector<2x1x3xf32>
    %c0_1172 = arith.constant 0 : index
    %c234_1173 = arith.constant 234 : index
    %c0_1174 = arith.constant 0 : index
    %939 = vector.load %arg3[%c0_1172, %c234_1173, %c0_1174] : memref<2x256x3xf32, #tpu.memory_space<vmem>>, vector<2x1x3xf32>
    tpu.vector_store %arg3[%c0_1172, %c234_1173, %c0_1174], %938 {strides = array<i32>} : memref<2x256x3xf32, #tpu.memory_space<vmem>>, vector<2x1x3xf32>,
    %c235 = arith.constant 235 : index
    %940 = memref.load %arg1[%c235] : memref<256xi32, #tpu.memory_space<smem>>
    %c0_1175 = arith.constant 0 : index
    %941 = arith.index_cast %940 : i32 to index
    %c0_1176 = arith.constant 0 : index
    %942 = vector.load %arg2[%c0_1175, %941, %c0_1176] : memref<2x5023x3xf32, #tpu.memory_space<vmem>>, vector<2x1x3xf32>
    %c0_1177 = arith.constant 0 : index
    %c235_1178 = arith.constant 235 : index
    %c0_1179 = arith.constant 0 : index
    %943 = vector.load %arg3[%c0_1177, %c235_1178, %c0_1179] : memref<2x256x3xf32, #tpu.memory_space<vmem>>, vector<2x1x3xf32>
    tpu.vector_store %arg3[%c0_1177, %c235_1178, %c0_1179], %942 {strides = array<i32>} : memref<2x256x3xf32, #tpu.memory_space<vmem>>, vector<2x1x3xf32>,
    %c236 = arith.constant 236 : index
    %944 = memref.load %arg1[%c236] : memref<256xi32, #tpu.memory_space<smem>>
    %c0_1180 = arith.constant 0 : index
    %945 = arith.index_cast %944 : i32 to index
    %c0_1181 = arith.constant 0 : index
    %946 = vector.load %arg2[%c0_1180, %945, %c0_1181] : memref<2x5023x3xf32, #tpu.memory_space<vmem>>, vector<2x1x3xf32>
    %c0_1182 = arith.constant 0 : index
    %c236_1183 = arith.constant 236 : index
    %c0_1184 = arith.constant 0 : index
    %947 = vector.load %arg3[%c0_1182, %c236_1183, %c0_1184] : memref<2x256x3xf32, #tpu.memory_space<vmem>>, vector<2x1x3xf32>
    tpu.vector_store %arg3[%c0_1182, %c236_1183, %c0_1184], %946 {strides = array<i32>} : memref<2x256x3xf32, #tpu.memory_space<vmem>>, vector<2x1x3xf32>,
    %c237 = arith.constant 237 : index
    %948 = memref.load %arg1[%c237] : memref<256xi32, #tpu.memory_space<smem>>
    %c0_1185 = arith.constant 0 : index
    %949 = arith.index_cast %948 : i32 to index
    %c0_1186 = arith.constant 0 : index
    %950 = vector.load %arg2[%c0_1185, %949, %c0_1186] : memref<2x5023x3xf32, #tpu.memory_space<vmem>>, vector<2x1x3xf32>
    %c0_1187 = arith.constant 0 : index
    %c237_1188 = arith.constant 237 : index
    %c0_1189 = arith.constant 0 : index
    %951 = vector.load %arg3[%c0_1187, %c237_1188, %c0_1189] : memref<2x256x3xf32, #tpu.memory_space<vmem>>, vector<2x1x3xf32>
    tpu.vector_store %arg3[%c0_1187, %c237_1188, %c0_1189], %950 {strides = array<i32>} : memref<2x256x3xf32, #tpu.memory_space<vmem>>, vector<2x1x3xf32>,
    %c238 = arith.constant 238 : index
    %952 = memref.load %arg1[%c238] : memref<256xi32, #tpu.memory_space<smem>>
    %c0_1190 = arith.constant 0 : index
    %953 = arith.index_cast %952 : i32 to index
    %c0_1191 = arith.constant 0 : index
    %954 = vector.load %arg2[%c0_1190, %953, %c0_1191] : memref<2x5023x3xf32, #tpu.memory_space<vmem>>, vector<2x1x3xf32>
    %c0_1192 = arith.constant 0 : index
    %c238_1193 = arith.constant 238 : index
    %c0_1194 = arith.constant 0 : index
    %955 = vector.load %arg3[%c0_1192, %c238_1193, %c0_1194] : memref<2x256x3xf32, #tpu.memory_space<vmem>>, vector<2x1x3xf32>
    tpu.vector_store %arg3[%c0_1192, %c238_1193, %c0_1194], %954 {strides = array<i32>} : memref<2x256x3xf32, #tpu.memory_space<vmem>>, vector<2x1x3xf32>,
    %c239 = arith.constant 239 : index
    %956 = memref.load %arg1[%c239] : memref<256xi32, #tpu.memory_space<smem>>
    %c0_1195 = arith.constant 0 : index
    %957 = arith.index_cast %956 : i32 to index
    %c0_1196 = arith.constant 0 : index
    %958 = vector.load %arg2[%c0_1195, %957, %c0_1196] : memref<2x5023x3xf32, #tpu.memory_space<vmem>>, vector<2x1x3xf32>
    %c0_1197 = arith.constant 0 : index
    %c239_1198 = arith.constant 239 : index
    %c0_1199 = arith.constant 0 : index
    %959 = vector.load %arg3[%c0_1197, %c239_1198, %c0_1199] : memref<2x256x3xf32, #tpu.memory_space<vmem>>, vector<2x1x3xf32>
    tpu.vector_store %arg3[%c0_1197, %c239_1198, %c0_1199], %958 {strides = array<i32>} : memref<2x256x3xf32, #tpu.memory_space<vmem>>, vector<2x1x3xf32>,
    %c240 = arith.constant 240 : index
    %960 = memref.load %arg1[%c240] : memref<256xi32, #tpu.memory_space<smem>>
    %c0_1200 = arith.constant 0 : index
    %961 = arith.index_cast %960 : i32 to index
    %c0_1201 = arith.constant 0 : index
    %962 = vector.load %arg2[%c0_1200, %961, %c0_1201] : memref<2x5023x3xf32, #tpu.memory_space<vmem>>, vector<2x1x3xf32>
    %c0_1202 = arith.constant 0 : index
    %c240_1203 = arith.constant 240 : index
    %c0_1204 = arith.constant 0 : index
    %963 = vector.load %arg3[%c0_1202, %c240_1203, %c0_1204] : memref<2x256x3xf32, #tpu.memory_space<vmem>>, vector<2x1x3xf32>
    tpu.vector_store %arg3[%c0_1202, %c240_1203, %c0_1204], %962 {strides = array<i32>} : memref<2x256x3xf32, #tpu.memory_space<vmem>>, vector<2x1x3xf32>,
    %c241 = arith.constant 241 : index
    %964 = memref.load %arg1[%c241] : memref<256xi32, #tpu.memory_space<smem>>
    %c0_1205 = arith.constant 0 : index
    %965 = arith.index_cast %964 : i32 to index
    %c0_1206 = arith.constant 0 : index
    %966 = vector.load %arg2[%c0_1205, %965, %c0_1206] : memref<2x5023x3xf32, #tpu.memory_space<vmem>>, vector<2x1x3xf32>
    %c0_1207 = arith.constant 0 : index
    %c241_1208 = arith.constant 241 : index
    %c0_1209 = arith.constant 0 : index
    %967 = vector.load %arg3[%c0_1207, %c241_1208, %c0_1209] : memref<2x256x3xf32, #tpu.memory_space<vmem>>, vector<2x1x3xf32>
    tpu.vector_store %arg3[%c0_1207, %c241_1208, %c0_1209], %966 {strides = array<i32>} : memref<2x256x3xf32, #tpu.memory_space<vmem>>, vector<2x1x3xf32>,
    %c242 = arith.constant 242 : index
    %968 = memref.load %arg1[%c242] : memref<256xi32, #tpu.memory_space<smem>>
    %c0_1210 = arith.constant 0 : index
    %969 = arith.index_cast %968 : i32 to index
    %c0_1211 = arith.constant 0 : index
    %970 = vector.load %arg2[%c0_1210, %969, %c0_1211] : memref<2x5023x3xf32, #tpu.memory_space<vmem>>, vector<2x1x3xf32>
    %c0_1212 = arith.constant 0 : index
    %c242_1213 = arith.constant 242 : index
    %c0_1214 = arith.constant 0 : index
    %971 = vector.load %arg3[%c0_1212, %c242_1213, %c0_1214] : memref<2x256x3xf32, #tpu.memory_space<vmem>>, vector<2x1x3xf32>
    tpu.vector_store %arg3[%c0_1212, %c242_1213, %c0_1214], %970 {strides = array<i32>} : memref<2x256x3xf32, #tpu.memory_space<vmem>>, vector<2x1x3xf32>,
    %c243 = arith.constant 243 : index
    %972 = memref.load %arg1[%c243] : memref<256xi32, #tpu.memory_space<smem>>
    %c0_1215 = arith.constant 0 : index
    %973 = arith.index_cast %972 : i32 to index
    %c0_1216 = arith.constant 0 : index
    %974 = vector.load %arg2[%c0_1215, %973, %c0_1216] : memref<2x5023x3xf32, #tpu.memory_space<vmem>>, vector<2x1x3xf32>
    %c0_1217 = arith.constant 0 : index
    %c243_1218 = arith.constant 243 : index
    %c0_1219 = arith.constant 0 : index
    %975 = vector.load %arg3[%c0_1217, %c243_1218, %c0_1219] : memref<2x256x3xf32, #tpu.memory_space<vmem>>, vector<2x1x3xf32>
    tpu.vector_store %arg3[%c0_1217, %c243_1218, %c0_1219], %974 {strides = array<i32>} : memref<2x256x3xf32, #tpu.memory_space<vmem>>, vector<2x1x3xf32>,
    %c244 = arith.constant 244 : index
    %976 = memref.load %arg1[%c244] : memref<256xi32, #tpu.memory_space<smem>>
    %c0_1220 = arith.constant 0 : index
    %977 = arith.index_cast %976 : i32 to index
    %c0_1221 = arith.constant 0 : index
    %978 = vector.load %arg2[%c0_1220, %977, %c0_1221] : memref<2x5023x3xf32, #tpu.memory_space<vmem>>, vector<2x1x3xf32>
    %c0_1222 = arith.constant 0 : index
    %c244_1223 = arith.constant 244 : index
    %c0_1224 = arith.constant 0 : index
    %979 = vector.load %arg3[%c0_1222, %c244_1223, %c0_1224] : memref<2x256x3xf32, #tpu.memory_space<vmem>>, vector<2x1x3xf32>
    tpu.vector_store %arg3[%c0_1222, %c244_1223, %c0_1224], %978 {strides = array<i32>} : memref<2x256x3xf32, #tpu.memory_space<vmem>>, vector<2x1x3xf32>,
    %c245 = arith.constant 245 : index
    %980 = memref.load %arg1[%c245] : memref<256xi32, #tpu.memory_space<smem>>
    %c0_1225 = arith.constant 0 : index
    %981 = arith.index_cast %980 : i32 to index
    %c0_1226 = arith.constant 0 : index
    %982 = vector.load %arg2[%c0_1225, %981, %c0_1226] : memref<2x5023x3xf32, #tpu.memory_space<vmem>>, vector<2x1x3xf32>
    %c0_1227 = arith.constant 0 : index
    %c245_1228 = arith.constant 245 : index
    %c0_1229 = arith.constant 0 : index
    %983 = vector.load %arg3[%c0_1227, %c245_1228, %c0_1229] : memref<2x256x3xf32, #tpu.memory_space<vmem>>, vector<2x1x3xf32>
    tpu.vector_store %arg3[%c0_1227, %c245_1228, %c0_1229], %982 {strides = array<i32>} : memref<2x256x3xf32, #tpu.memory_space<vmem>>, vector<2x1x3xf32>,
    %c246 = arith.constant 246 : index
    %984 = memref.load %arg1[%c246] : memref<256xi32, #tpu.memory_space<smem>>
    %c0_1230 = arith.constant 0 : index
    %985 = arith.index_cast %984 : i32 to index
    %c0_1231 = arith.constant 0 : index
    %986 = vector.load %arg2[%c0_1230, %985, %c0_1231] : memref<2x5023x3xf32, #tpu.memory_space<vmem>>, vector<2x1x3xf32>
    %c0_1232 = arith.constant 0 : index
    %c246_1233 = arith.constant 246 : index
    %c0_1234 = arith.constant 0 : index
    %987 = vector.load %arg3[%c0_1232, %c246_1233, %c0_1234] : memref<2x256x3xf32, #tpu.memory_space<vmem>>, vector<2x1x3xf32>
    tpu.vector_store %arg3[%c0_1232, %c246_1233, %c0_1234], %986 {strides = array<i32>} : memref<2x256x3xf32, #tpu.memory_space<vmem>>, vector<2x1x3xf32>,
    %c247 = arith.constant 247 : index
    %988 = memref.load %arg1[%c247] : memref<256xi32, #tpu.memory_space<smem>>
    %c0_1235 = arith.constant 0 : index
    %989 = arith.index_cast %988 : i32 to index
    %c0_1236 = arith.constant 0 : index
    %990 = vector.load %arg2[%c0_1235, %989, %c0_1236] : memref<2x5023x3xf32, #tpu.memory_space<vmem>>, vector<2x1x3xf32>
    %c0_1237 = arith.constant 0 : index
    %c247_1238 = arith.constant 247 : index
    %c0_1239 = arith.constant 0 : index
    %991 = vector.load %arg3[%c0_1237, %c247_1238, %c0_1239] : memref<2x256x3xf32, #tpu.memory_space<vmem>>, vector<2x1x3xf32>
    tpu.vector_store %arg3[%c0_1237, %c247_1238, %c0_1239], %990 {strides = array<i32>} : memref<2x256x3xf32, #tpu.memory_space<vmem>>, vector<2x1x3xf32>,
    %c248 = arith.constant 248 : index
    %992 = memref.load %arg1[%c248] : memref<256xi32, #tpu.memory_space<smem>>
    %c0_1240 = arith.constant 0 : index
    %993 = arith.index_cast %992 : i32 to index
    %c0_1241 = arith.constant 0 : index
    %994 = vector.load %arg2[%c0_1240, %993, %c0_1241] : memref<2x5023x3xf32, #tpu.memory_space<vmem>>, vector<2x1x3xf32>
    %c0_1242 = arith.constant 0 : index
    %c248_1243 = arith.constant 248 : index
    %c0_1244 = arith.constant 0 : index
    %995 = vector.load %arg3[%c0_1242, %c248_1243, %c0_1244] : memref<2x256x3xf32, #tpu.memory_space<vmem>>, vector<2x1x3xf32>
    tpu.vector_store %arg3[%c0_1242, %c248_1243, %c0_1244], %994 {strides = array<i32>} : memref<2x256x3xf32, #tpu.memory_space<vmem>>, vector<2x1x3xf32>,
    %c249 = arith.constant 249 : index
    %996 = memref.load %arg1[%c249] : memref<256xi32, #tpu.memory_space<smem>>
    %c0_1245 = arith.constant 0 : index
    %997 = arith.index_cast %996 : i32 to index
    %c0_1246 = arith.constant 0 : index
    %998 = vector.load %arg2[%c0_1245, %997, %c0_1246] : memref<2x5023x3xf32, #tpu.memory_space<vmem>>, vector<2x1x3xf32>
    %c0_1247 = arith.constant 0 : index
    %c249_1248 = arith.constant 249 : index
    %c0_1249 = arith.constant 0 : index
    %999 = vector.load %arg3[%c0_1247, %c249_1248, %c0_1249] : memref<2x256x3xf32, #tpu.memory_space<vmem>>, vector<2x1x3xf32>
    tpu.vector_store %arg3[%c0_1247, %c249_1248, %c0_1249], %998 {strides = array<i32>} : memref<2x256x3xf32, #tpu.memory_space<vmem>>, vector<2x1x3xf32>,
    %c250 = arith.constant 250 : index
    %1000 = memref.load %arg1[%c250] : memref<256xi32, #tpu.memory_space<smem>>
    %c0_1250 = arith.constant 0 : index
    %1001 = arith.index_cast %1000 : i32 to index
    %c0_1251 = arith.constant 0 : index
    %1002 = vector.load %arg2[%c0_1250, %1001, %c0_1251] : memref<2x5023x3xf32, #tpu.memory_space<vmem>>, vector<2x1x3xf32>
    %c0_1252 = arith.constant 0 : index
    %c250_1253 = arith.constant 250 : index
    %c0_1254 = arith.constant 0 : index
    %1003 = vector.load %arg3[%c0_1252, %c250_1253, %c0_1254] : memref<2x256x3xf32, #tpu.memory_space<vmem>>, vector<2x1x3xf32>
    tpu.vector_store %arg3[%c0_1252, %c250_1253, %c0_1254], %1002 {strides = array<i32>} : memref<2x256x3xf32, #tpu.memory_space<vmem>>, vector<2x1x3xf32>,
    %c251 = arith.constant 251 : index
    %1004 = memref.load %arg1[%c251] : memref<256xi32, #tpu.memory_space<smem>>
    %c0_1255 = arith.constant 0 : index
    %1005 = arith.index_cast %1004 : i32 to index
    %c0_1256 = arith.constant 0 : index
    %1006 = vector.load %arg2[%c0_1255, %1005, %c0_1256] : memref<2x5023x3xf32, #tpu.memory_space<vmem>>, vector<2x1x3xf32>
    %c0_1257 = arith.constant 0 : index
    %c251_1258 = arith.constant 251 : index
    %c0_1259 = arith.constant 0 : index
    %1007 = vector.load %arg3[%c0_1257, %c251_1258, %c0_1259] : memref<2x256x3xf32, #tpu.memory_space<vmem>>, vector<2x1x3xf32>
    tpu.vector_store %arg3[%c0_1257, %c251_1258, %c0_1259], %1006 {strides = array<i32>} : memref<2x256x3xf32, #tpu.memory_space<vmem>>, vector<2x1x3xf32>,
    %c252 = arith.constant 252 : index
    %1008 = memref.load %arg1[%c252] : memref<256xi32, #tpu.memory_space<smem>>
    %c0_1260 = arith.constant 0 : index
    %1009 = arith.index_cast %1008 : i32 to index
    %c0_1261 = arith.constant 0 : index
    %1010 = vector.load %arg2[%c0_1260, %1009, %c0_1261] : memref<2x5023x3xf32, #tpu.memory_space<vmem>>, vector<2x1x3xf32>
    %c0_1262 = arith.constant 0 : index
    %c252_1263 = arith.constant 252 : index
    %c0_1264 = arith.constant 0 : index
    %1011 = vector.load %arg3[%c0_1262, %c252_1263, %c0_1264] : memref<2x256x3xf32, #tpu.memory_space<vmem>>, vector<2x1x3xf32>
    tpu.vector_store %arg3[%c0_1262, %c252_1263, %c0_1264], %1010 {strides = array<i32>} : memref<2x256x3xf32, #tpu.memory_space<vmem>>, vector<2x1x3xf32>,
    %c253 = arith.constant 253 : index
    %1012 = memref.load %arg1[%c253] : memref<256xi32, #tpu.memory_space<smem>>
    %c0_1265 = arith.constant 0 : index
    %1013 = arith.index_cast %1012 : i32 to index
    %c0_1266 = arith.constant 0 : index
    %1014 = vector.load %arg2[%c0_1265, %1013, %c0_1266] : memref<2x5023x3xf32, #tpu.memory_space<vmem>>, vector<2x1x3xf32>
    %c0_1267 = arith.constant 0 : index
    %c253_1268 = arith.constant 253 : index
    %c0_1269 = arith.constant 0 : index
    %1015 = vector.load %arg3[%c0_1267, %c253_1268, %c0_1269] : memref<2x256x3xf32, #tpu.memory_space<vmem>>, vector<2x1x3xf32>
    tpu.vector_store %arg3[%c0_1267, %c253_1268, %c0_1269], %1014 {strides = array<i32>} : memref<2x256x3xf32, #tpu.memory_space<vmem>>, vector<2x1x3xf32>,
    %c254 = arith.constant 254 : index
    %1016 = memref.load %arg1[%c254] : memref<256xi32, #tpu.memory_space<smem>>
    %c0_1270 = arith.constant 0 : index
    %1017 = arith.index_cast %1016 : i32 to index
    %c0_1271 = arith.constant 0 : index
    %1018 = vector.load %arg2[%c0_1270, %1017, %c0_1271] : memref<2x5023x3xf32, #tpu.memory_space<vmem>>, vector<2x1x3xf32>
    %c0_1272 = arith.constant 0 : index
    %c254_1273 = arith.constant 254 : index
    %c0_1274 = arith.constant 0 : index
    %1019 = vector.load %arg3[%c0_1272, %c254_1273, %c0_1274] : memref<2x256x3xf32, #tpu.memory_space<vmem>>, vector<2x1x3xf32>
    tpu.vector_store %arg3[%c0_1272, %c254_1273, %c0_1274], %1018 {strides = array<i32>} : memref<2x256x3xf32, #tpu.memory_space<vmem>>, vector<2x1x3xf32>,
    %c255 = arith.constant 255 : index
    %1020 = memref.load %arg1[%c255] : memref<256xi32, #tpu.memory_space<smem>>
    %c0_1275 = arith.constant 0 : index
    %1021 = arith.index_cast %1020 : i32 to index
    %c0_1276 = arith.constant 0 : index
    %1022 = vector.load %arg2[%c0_1275, %1021, %c0_1276] : memref<2x5023x3xf32, #tpu.memory_space<vmem>>, vector<2x1x3xf32>
    %c0_1277 = arith.constant 0 : index
    %c255_1278 = arith.constant 255 : index
    %c0_1279 = arith.constant 0 : index
    %1023 = vector.load %arg3[%c0_1277, %c255_1278, %c0_1279] : memref<2x256x3xf32, #tpu.memory_space<vmem>>, vector<2x1x3xf32>
    tpu.vector_store %arg3[%c0_1277, %c255_1278, %c0_1279], %1022 {strides = array<i32>} : memref<2x256x3xf32, #tpu.memory_space<vmem>>, vector<2x1x3xf32>,
    return
  }
  func.func @transform_0(%arg0: i32, %arg1: memref<256xi32, #tpu.memory_space<smem>>) -> (i32, i32, i32) {
    %c0_i32 = arith.constant 0 : i32
    %c0_i32_0 = arith.constant 0 : i32
    %c0_i32_1 = arith.constant 0 : i32
    return %arg0, %c0_i32, %c0_i32_0 : i32, i32, i32
  }
  func.func @transform_1(%arg0: i32, %arg1: memref<256xi32, #tpu.memory_space<smem>>) -> (i32, i32, i32) {
    %c0_i32 = arith.constant 0 : i32
    %c0_i32_0 = arith.constant 0 : i32
    %c0_i32_1 = arith.constant 0 : i32
    return %arg0, %c0_i32, %c0_i32_0 : i32, i32, i32
  }
}

</mosaic_0001>

<llo_original>
// kernel: tpu_custom_call.1
$region0: #{tpu_custom_call.1}
  #allocation0 [shape = 'u32[]', space=smem, size = 0x4, offset = 0x4, fixed_abs, tag = 'smem constant byte address 0x4 - core index']
  #allocation1 [shape = 'u32[144,128]{1,0:T(1,128)}', space=vmem, size = 0x12000, scoped, tag = 'internal scratch']
  #allocation2 [shape = 's32[1]{0}', space=sflag, size = 0x4, scoped, tag = 'scoped memory for tpu_custom_call.1']
  #allocation3 [shape = 'u8[1024]{0}', space=smem, size = 0x400, scoped, tag = 'prefetched SMEM operand 0']
  %s0 = inlined_call_operand.vmem [shape: s32[256], index: 0, kind: input, shape index: {}]
  %s1 = inlined_call_operand.vmem [shape: f32[2,5023,3], index: 1, kind: input, shape index: {}]
  %s2 = inlined_call_operand.vmem [shape: f32[2,256,3], index: 2, kind: output, shape index: {}]
  %s3 = sld [smem:[#allocation0]]
  $region14: #{tpu_custom_call.1} parent=0
    _
  %s5 = ssub.s32 1, %s3
  %s6 = scalar_select 0, %s5, %s3
  %s7 = sshll.u32 %s0, 4
  %s8 = int_to_ptr.vmem [resolvable:$true] %s7
  %10 = dma.vmem_to_smem %s8, 32, [#allocation3], [#allocation2]
  %11 = dma.done [#allocation2], 32
  %12 = sfence
  // Predicated region
  $region2: #{tpu_custom_call.1} parent=0 // pred_check
    _
  $region3: #{tpu_custom_call.1} parent=0 // pred_check_branch
    %14 = sbr.rel (0) target = $region5
  $region4: #{tpu_custom_call.1} parent=0 // pred_region
    _
  $region5: #{tpu_custom_call.1} parent=0 // pred_fallthru
    _
  %s15 = sld [smem:[#allocation3]]
  %s16 = scalar_lea.vmem %s1, %s15
  %v17 = vld [vmem:[%s16] sm:$0x1]
  %v18 = vld [vmem:[%s16 + $0x13a0] sm:$0x1]
  %vm19 = vcmask 16384
  %20 = vst.msk [vmem:[%s2] sm:$0x1] %vm19, %v17
  %21 = vst.msk [vmem:[%s2 + $0x100] sm:$0x1] %vm19, %v18
  %s22 = sld [smem:[#allocation3 + $0x1]]
  %s23 = scalar_lea.vmem %s1, %s22
  %v24 = vld [vmem:[%s23] sm:$0x1]
  %v25 = vld [vmem:[%s23 + $0x13a0] sm:$0x1]
  %26 = vst.msk [vmem:[%s2 + $0x1] sm:$0x1] %vm19, %v24
  %27 = vst.msk [vmem:[%s2 + $0x101] sm:$0x1] %vm19, %v25
  %s28 = sld [smem:[#allocation3 + $0x2]]
  %s29 = scalar_lea.vmem %s1, %s28
  %v30 = vld [vmem:[%s29] sm:$0x1]
  %v31 = vld [vmem:[%s29 + $0x13a0] sm:$0x1]
  %32 = vst.msk [vmem:[%s2 + $0x2] sm:$0x1] %vm19, %v30
  %33 = vst.msk [vmem:[%s2 + $0x102] sm:$0x1] %vm19, %v31
  %s34 = sld [smem:[#allocation3 + $0x3]]
  %s35 = scalar_lea.vmem %s1, %s34
  %v36 = vld [vmem:[%s35] sm:$0x1]
  %v37 = vld [vmem:[%s35 + $0x13a0] sm:$0x1]
  %38 = vst.msk [vmem:[%s2 + $0x3] sm:$0x1] %vm19, %v36
  %39 = vst.msk [vmem:[%s2 + $0x103] sm:$0x1] %vm19, %v37
  %s40 = sld [smem:[#allocation3 + $0x4]]
  %s41 = scalar_lea.vmem %s1, %s40
  %v42 = vld [vmem:[%s41] sm:$0x1]
  %v43 = vld [vmem:[%s41 + $0x13a0] sm:$0x1]
  %44 = vst.msk [vmem:[%s2 + $0x4] sm:$0x1] %vm19, %v42
  %45 = vst.msk [vmem:[%s2 + $0x104] sm:$0x1] %vm19, %v43
  %s46 = sld [smem:[#allocation3 + $0x5]]
  %s47 = scalar_lea.vmem %s1, %s46
  %v48 = vld [vmem:[%s47] sm:$0x1]
  %v49 = vld [vmem:[%s47 + $0x13a0] sm:$0x1]
  %50 = vst.msk [vmem:[%s2 + $0x5] sm:$0x1] %vm19, %v48
  %51 = vst.msk [vmem:[%s2 + $0x105] sm:$0x1] %vm19, %v49
  %s52 = sld [smem:[#allocation3 + $0x6]]
  %s53 = scalar_lea.vmem %s1, %s52
  %v54 = vld [vmem:[%s53] sm:$0x1]
  %v55 = vld [vmem:[%s53 + $0x13a0] sm:$0x1]
  %56 = vst.msk [vmem:[%s2 + $0x6] sm:$0x1] %vm19, %v54
  %57 = vst.msk [vmem:[%s2 + $0x106] sm:$0x1] %vm19, %v55
  %s58 = sld [smem:[#allocation3 + $0x7]]
  %s59 = scalar_lea.vmem %s1, %s58
  %v60 = vld [vmem:[%s59] sm:$0x1]
  %v61 = vld [vmem:[%s59 + $0x13a0] sm:$0x1]
  %62 = vst.msk [vmem:[%s2 + $0x7] sm:$0x1] %vm19, %v60
  %63 = vst.msk [vmem:[%s2 + $0x107] sm:$0x1] %vm19, %v61
  %s64 = sld [smem:[#allocation3 + $0x8]]
  %s65 = scalar_lea.vmem %s1, %s64
  %v66 = vld [vmem:[%s65] sm:$0x1]
  %v67 = vld [vmem:[%s65 + $0x13a0] sm:$0x1]
  %68 = vst.msk [vmem:[%s2 + $0x8] sm:$0x1] %vm19, %v66
  %69 = vst.msk [vmem:[%s2 + $0x108] sm:$0x1] %vm19, %v67
  %s70 = sld [smem:[#allocation3 + $0x9]]
  %s71 = scalar_lea.vmem %s1, %s70
  %v72 = vld [vmem:[%s71] sm:$0x1]
  %v73 = vld [vmem:[%s71 + $0x13a0] sm:$0x1]
  %74 = vst.msk [vmem:[%s2 + $0x9] sm:$0x1] %vm19, %v72
  %75 = vst.msk [vmem:[%s2 + $0x109] sm:$0x1] %vm19, %v73
  %s76 = sld [smem:[#allocation3 + $0xa]]
  %s77 = scalar_lea.vmem %s1, %s76
  %v78 = vld [vmem:[%s77] sm:$0x1]
  %v79 = vld [vmem:[%s77 + $0x13a0] sm:$0x1]
  %80 = vst.msk [vmem:[%s2 + $0xa] sm:$0x1] %vm19, %v78
  %81 = vst.msk [vmem:[%s2 + $0x10a] sm:$0x1] %vm19, %v79
  %s82 = sld [smem:[#allocation3 + $0xb]]
  %s83 = scalar_lea.vmem %s1, %s82
  %v84 = vld [vmem:[%s83] sm:$0x1]
  %v85 = vld [vmem:[%s83 + $0x13a0] sm:$0x1]
  %86 = vst.msk [vmem:[%s2 + $0xb] sm:$0x1] %vm19, %v84
  %87 = vst.msk [vmem:[%s2 + $0x10b] sm:$0x1] %vm19, %v85
  %s88 = sld [smem:[#allocation3 + $0xc]]
  %s89 = scalar_lea.vmem %s1, %s88
  %v90 = vld [vmem:[%s89] sm:$0x1]
  %v91 = vld [vmem:[%s89 + $0x13a0] sm:$0x1]
  %92 = vst.msk [vmem:[%s2 + $0xc] sm:$0x1] %vm19, %v90
  %93 = vst.msk [vmem:[%s2 + $0x10c] sm:$0x1] %vm19, %v91
  %s94 = sld [smem:[#allocation3 + $0xd]]
  %s95 = scalar_lea.vmem %s1, %s94
  %v96 = vld [vmem:[%s95] sm:$0x1]
  %v97 = vld [vmem:[%s95 + $0x13a0] sm:$0x1]
  %98 = vst.msk [vmem:[%s2 + $0xd] sm:$0x1] %vm19, %v96
  %99 = vst.msk [vmem:[%s2 + $0x10d] sm:$0x1] %vm19, %v97
  %s100 = sld [smem:[#allocation3 + $0xe]]
  %s101 = scalar_lea.vmem %s1, %s100
  %v102 = vld [vmem:[%s101] sm:$0x1]
  %v103 = vld [vmem:[%s101 + $0x13a0] sm:$0x1]
  %104 = vst.msk [vmem:[%s2 + $0xe] sm:$0x1] %vm19, %v102
  %105 = vst.msk [vmem:[%s2 + $0x10e] sm:$0x1] %vm19, %v103
  %s106 = sld [smem:[#allocation3 + $0xf]]
  %s107 = scalar_lea.vmem %s1, %s106
  %v108 = vld [vmem:[%s107] sm:$0x1]
  %v109 = vld [vmem:[%s107 + $0x13a0] sm:$0x1]
  %110 = vst.msk [vmem:[%s2 + $0xf] sm:$0x1] %vm19, %v108
  %111 = vst.msk [vmem:[%s2 + $0x10f] sm:$0x1] %vm19, %v109
  %s112 = sld [smem:[#allocation3 + $0x10]]
  %s113 = scalar_lea.vmem %s1, %s112
  %v114 = vld [vmem:[%s113] sm:$0x1]
  %v115 = vld [vmem:[%s113 + $0x13a0] sm:$0x1]
  %116 = vst.msk [vmem:[%s2 + $0x10] sm:$0x1] %vm19, %v114
  %117 = vst.msk [vmem:[%s2 + $0x110] sm:$0x1] %vm19, %v115
  %s118 = sld [smem:[#allocation3 + $0x11]]
  %s119 = scalar_lea.vmem %s1, %s118
  %v120 = vld [vmem:[%s119] sm:$0x1]
  %v121 = vld [vmem:[%s119 + $0x13a0] sm:$0x1]
  %122 = vst.msk [vmem:[%s2 + $0x11] sm:$0x1] %vm19, %v120
  %123 = vst.msk [vmem:[%s2 + $0x111] sm:$0x1] %vm19, %v121
  %s124 = sld [smem:[#allocation3 + $0x12]]
  %s125 = scalar_lea.vmem %s1, %s124
  %v126 = vld [vmem:[%s125] sm:$0x1]
  %v127 = vld [vmem:[%s125 + $0x13a0] sm:$0x1]
  %128 = vst.msk [vmem:[%s2 + $0x12] sm:$0x1] %vm19, %v126
  %129 = vst.msk [vmem:[%s2 + $0x112] sm:$0x1] %vm19, %v127
  %s130 = sld [smem:[#allocation3 + $0x13]]
  %s131 = scalar_lea.vmem %s1, %s130
  %v132 = vld [vmem:[%s131] sm:$0x1]
  %v133 = vld [vmem:[%s131 + $0x13a0] sm:$0x1]
  %134 = vst.msk [vmem:[%s2 + $0x13] sm:$0x1] %vm19, %v132
  %135 = vst.msk [vmem:[%s2 + $0x113] sm:$0x1] %vm19, %v133
  %s136 = sld [smem:[#allocation3 + $0x14]]
  %s137 = scalar_lea.vmem %s1, %s136
  %v138 = vld [vmem:[%s137] sm:$0x1]
  %v139 = vld [vmem:[%s137 + $0x13a0] sm:$0x1]
  %140 = vst.msk [vmem:[%s2 + $0x14] sm:$0x1] %vm19, %v138
  %141 = vst.msk [vmem:[%s2 + $0x114] sm:$0x1] %vm19, %v139
  %s142 = sld [smem:[#allocation3 + $0x15]]
  %s143 = scalar_lea.vmem %s1, %s142
  %v144 = vld [vmem:[%s143] sm:$0x1]
  %v145 = vld [vmem:[%s143 + $0x13a0] sm:$0x1]
  %146 = vst.msk [vmem:[%s2 + $0x15] sm:$0x1] %vm19, %v144
  %147 = vst.msk [vmem:[%s2 + $0x115] sm:$0x1] %vm19, %v145
  %s148 = sld [smem:[#allocation3 + $0x16]]
  %s149 = scalar_lea.vmem %s1, %s148
  %v150 = vld [vmem:[%s149] sm:$0x1]
  %v151 = vld [vmem:[%s149 + $0x13a0] sm:$0x1]
  %152 = vst.msk [vmem:[%s2 + $0x16] sm:$0x1] %vm19, %v150
  %153 = vst.msk [vmem:[%s2 + $0x116] sm:$0x1] %vm19, %v151
  %s154 = sld [smem:[#allocation3 + $0x17]]
  %s155 = scalar_lea.vmem %s1, %s154
  %v156 = vld [vmem:[%s155] sm:$0x1]
  %v157 = vld [vmem:[%s155 + $0x13a0] sm:$0x1]
  %158 = vst.msk [vmem:[%s2 + $0x17] sm:$0x1] %vm19, %v156
  %159 = vst.msk [vmem:[%s2 + $0x117] sm:$0x1] %vm19, %v157
  %s160 = sld [smem:[#allocation3 + $0x18]]
  %s161 = scalar_lea.vmem %s1, %s160
  %v162 = vld [vmem:[%s161] sm:$0x1]
  %v163 = vld [vmem:[%s161 + $0x13a0] sm:$0x1]
  %164 = vst.msk [vmem:[%s2 + $0x18] sm:$0x1] %vm19, %v162
  %165 = vst.msk [vmem:[%s2 + $0x118] sm:$0x1] %vm19, %v163
  %s166 = sld [smem:[#allocation3 + $0x19]]
  %s167 = scalar_lea.vmem %s1, %s166
  %v168 = vld [vmem:[%s167] sm:$0x1]
  %v169 = vld [vmem:[%s167 + $0x13a0] sm:$0x1]
  %170 = vst.msk [vmem:[%s2 + $0x19] sm:$0x1] %vm19, %v168
  %171 = vst.msk [vmem:[%s2 + $0x119] sm:$0x1] %vm19, %v169
  %s172 = sld [smem:[#allocation3 + $0x1a]]
  %s173 = scalar_lea.vmem %s1, %s172
  %v174 = vld [vmem:[%s173] sm:$0x1]
  %v175 = vld [vmem:[%s173 + $0x13a0] sm:$0x1]
  %176 = vst.msk [vmem:[%s2 + $0x1a] sm:$0x1] %vm19, %v174
  %177 = vst.msk [vmem:[%s2 + $0x11a] sm:$0x1] %vm19, %v175
  %s178 = sld [smem:[#allocation3 + $0x1b]]
  %s179 = scalar_lea.vmem %s1, %s178
  %v180 = vld [vmem:[%s179] sm:$0x1]
  %v181 = vld [vmem:[%s179 + $0x13a0] sm:$0x1]
  %182 = vst.msk [vmem:[%s2 + $0x1b] sm:$0x1] %vm19, %v180
  %183 = vst.msk [vmem:[%s2 + $0x11b] sm:$0x1] %vm19, %v181
  %s184 = sld [smem:[#allocation3 + $0x1c]]
  %s185 = scalar_lea.vmem %s1, %s184
  %v186 = vld [vmem:[%s185] sm:$0x1]
  %v187 = vld [vmem:[%s185 + $0x13a0] sm:$0x1]
  %188 = vst.msk [vmem:[%s2 + $0x1c] sm:$0x1] %vm19, %v186
  %189 = vst.msk [vmem:[%s2 + $0x11c] sm:$0x1] %vm19, %v187
  %s190 = sld [smem:[#allocation3 + $0x1d]]
  %s191 = scalar_lea.vmem %s1, %s190
  %v192 = vld [vmem:[%s191] sm:$0x1]
  %v193 = vld [vmem:[%s191 + $0x13a0] sm:$0x1]
  %194 = vst.msk [vmem:[%s2 + $0x1d] sm:$0x1] %vm19, %v192
  %195 = vst.msk [vmem:[%s2 + $0x11d] sm:$0x1] %vm19, %v193
  %s196 = sld [smem:[#allocation3 + $0x1e]]
  %s197 = scalar_lea.vmem %s1, %s196
  %v198 = vld [vmem:[%s197] sm:$0x1]
  %v199 = vld [vmem:[%s197 + $0x13a0] sm:$0x1]
  %200 = vst.msk [vmem:[%s2 + $0x1e] sm:$0x1] %vm19, %v198
  %201 = vst.msk [vmem:[%s2 + $0x11e] sm:$0x1] %vm19, %v199
  %s202 = sld [smem:[#allocation3 + $0x1f]]
  %s203 = scalar_lea.vmem %s1, %s202
  %v204 = vld [vmem:[%s203] sm:$0x1]
  %v205 = vld [vmem:[%s203 + $0x13a0] sm:$0x1]
  %206 = vst.msk [vmem:[%s2 + $0x1f] sm:$0x1] %vm19, %v204
  %207 = vst.msk [vmem:[%s2 + $0x11f] sm:$0x1] %vm19, %v205
  %s208 = sld [smem:[#allocation3 + $0x20]]
  %s209 = scalar_lea.vmem %s1, %s208
  %v210 = vld [vmem:[%s209] sm:$0x1]
  %v211 = vld [vmem:[%s209 + $0x13a0] sm:$0x1]
  %212 = vst.msk [vmem:[%s2 + $0x20] sm:$0x1] %vm19, %v210
  %213 = vst.msk [vmem:[%s2 + $0x120] sm:$0x1] %vm19, %v211
  %s214 = sld [smem:[#allocation3 + $0x21]]
  %s215 = scalar_lea.vmem %s1, %s214
  %v216 = vld [vmem:[%s215] sm:$0x1]
  %v217 = vld [vmem:[%s215 + $0x13a0] sm:$0x1]
  %218 = vst.msk [vmem:[%s2 + $0x21] sm:$0x1] %vm19, %v216
  %219 = vst.msk [vmem:[%s2 + $0x121] sm:$0x1] %vm19, %v217
  %s220 = sld [smem:[#allocation3 + $0x22]]
  %s221 = scalar_lea.vmem %s1, %s220
  %v222 = vld [vmem:[%s221] sm:$0x1]
  %v223 = vld [vmem:[%s221 + $0x13a0] sm:$0x1]
  %224 = vst.msk [vmem:[%s2 + $0x22] sm:$0x1] %vm19, %v222
  %225 = vst.msk [vmem:[%s2 + $0x122] sm:$0x1] %vm19, %v223
  %s226 = sld [smem:[#allocation3 + $0x23]]
  %s227 = scalar_lea.vmem %s1, %s226
  %v228 = vld [vmem:[%s227] sm:$0x1]
  %v229 = vld [vmem:[%s227 + $0x13a0] sm:$0x1]
  %230 = vst.msk [vmem:[%s2 + $0x23] sm:$0x1] %vm19, %v228
  %231 = vst.msk [vmem:[%s2 + $0x123] sm:$0x1] %vm19, %v229
  %s232 = sld [smem:[#allocation3 + $0x24]]
  %s233 = scalar_lea.vmem %s1, %s232
  %v234 = vld [vmem:[%s233] sm:$0x1]
  %v235 = vld [vmem:[%s233 + $0x13a0] sm:$0x1]
  %236 = vst.msk [vmem:[%s2 + $0x24] sm:$0x1] %vm19, %v234
  %237 = vst.msk [vmem:[%s2 + $0x124] sm:$0x1] %vm19, %v235
  %s238 = sld [smem:[#allocation3 + $0x25]]
  %s239 = scalar_lea.vmem %s1, %s238
  %v240 = vld [vmem:[%s239] sm:$0x1]
  %v241 = vld [vmem:[%s239 + $0x13a0] sm:$0x1]
  %242 = vst.msk [vmem:[%s2 + $0x25] sm:$0x1] %vm19, %v240
  %243 = vst.msk [vmem:[%s2 + $0x125] sm:$0x1] %vm19, %v241
  %s244 = sld [smem:[#allocation3 + $0x26]]
  %s245 = scalar_lea.vmem %s1, %s244
  %v246 = vld [vmem:[%s245] sm:$0x1]
  %v247 = vld [vmem:[%s245 + $0x13a0] sm:$0x1]
  %248 = vst.msk [vmem:[%s2 + $0x26] sm:$0x1] %vm19, %v246
  %249 = vst.msk [vmem:[%s2 + $0x126] sm:$0x1] %vm19, %v247
  %s250 = sld [smem:[#allocation3 + $0x27]]
  %s251 = scalar_lea.vmem %s1, %s250
  %v252 = vld [vmem:[%s251] sm:$0x1]
  %v253 = vld [vmem:[%s251 + $0x13a0] sm:$0x1]
  %254 = vst.msk [vmem:[%s2 + $0x27] sm:$0x1] %vm19, %v252
  %255 = vst.msk [vmem:[%s2 + $0x127] sm:$0x1] %vm19, %v253
  %s256 = sld [smem:[#allocation3 + $0x28]]
  %s257 = scalar_lea.vmem %s1, %s256
  %v258 = vld [vmem:[%s257] sm:$0x1]
  %v259 = vld [vmem:[%s257 + $0x13a0] sm:$0x1]
  %260 = vst.msk [vmem:[%s2 + $0x28] sm:$0x1] %vm19, %v258
  %261 = vst.msk [vmem:[%s2 + $0x128] sm:$0x1] %vm19, %v259
  %s262 = sld [smem:[#allocation3 + $0x29]]
  %s263 = scalar_lea.vmem %s1, %s262
  %v264 = vld [vmem:[%s263] sm:$0x1]
  %v265 = vld [vmem:[%s263 + $0x13a0] sm:$0x1]
  %266 = vst.msk [vmem:[%s2 + $0x29] sm:$0x1] %vm19, %v264
  %267 = vst.msk [vmem:[%s2 + $0x129] sm:$0x1] %vm19, %v265
  %s268 = sld [smem:[#allocation3 + $0x2a]]
  %s269 = scalar_lea.vmem %s1, %s268
  %v270 = vld [vmem:[%s269] sm:$0x1]
  %v271 = vld [vmem:[%s269 + $0x13a0] sm:$0x1]
  %272 = vst.msk [vmem:[%s2 + $0x2a] sm:$0x1] %vm19, %v270
  %273 = vst.msk [vmem:[%s2 + $0x12a] sm:$0x1] %vm19, %v271
  %s274 = sld [smem:[#allocation3 + $0x2b]]
  %s275 = scalar_lea.vmem %s1, %s274
  %v276 = vld [vmem:[%s275] sm:$0x1]
  %v277 = vld [vmem:[%s275 + $0x13a0] sm:$0x1]
  %278 = vst.msk [vmem:[%s2 + $0x2b] sm:$0x1] %vm19, %v276
  %279 = vst.msk [vmem:[%s2 + $0x12b] sm:$0x1] %vm19, %v277
  %s280 = sld [smem:[#allocation3 + $0x2c]]
  %s281 = scalar_lea.vmem %s1, %s280
  %v282 = vld [vmem:[%s281] sm:$0x1]
  %v283 = vld [vmem:[%s281 + $0x13a0] sm:$0x1]
  %284 = vst.msk [vmem:[%s2 + $0x2c] sm:$0x1] %vm19, %v282
  %285 = vst.msk [vmem:[%s2 + $0x12c] sm:$0x1] %vm19, %v283
  %s286 = sld [smem:[#allocation3 + $0x2d]]
  %s287 = scalar_lea.vmem %s1, %s286
  %v288 = vld [vmem:[%s287] sm:$0x1]
  %v289 = vld [vmem:[%s287 + $0x13a0] sm:$0x1]
  %290 = vst.msk [vmem:[%s2 + $0x2d] sm:$0x1] %vm19, %v288
  %291 = vst.msk [vmem:[%s2 + $0x12d] sm:$0x1] %vm19, %v289
  %s292 = sld [smem:[#allocation3 + $0x2e]]
  %s293 = scalar_lea.vmem %s1, %s292
  %v294 = vld [vmem:[%s293] sm:$0x1]
  %v295 = vld [vmem:[%s293 + $0x13a0] sm:$0x1]
  %296 = vst.msk [vmem:[%s2 + $0x2e] sm:$0x1] %vm19, %v294
  %297 = vst.msk [vmem:[%s2 + $0x12e] sm:$0x1] %vm19, %v295
  %s298 = sld [smem:[#allocation3 + $0x2f]]
  %s299 = scalar_lea.vmem %s1, %s298
  %v300 = vld [vmem:[%s299] sm:$0x1]
  %v301 = vld [vmem:[%s299 + $0x13a0] sm:$0x1]
  %302 = vst.msk [vmem:[%s2 + $0x2f] sm:$0x1] %vm19, %v300
  %303 = vst.msk [vmem:[%s2 + $0x12f] sm:$0x1] %vm19, %v301
  %s304 = sld [smem:[#allocation3 + $0x30]]
  %s305 = scalar_lea.vmem %s1, %s304
  %v306 = vld [vmem:[%s305] sm:$0x1]
  %v307 = vld [vmem:[%s305 + $0x13a0] sm:$0x1]
  %308 = vst.msk [vmem:[%s2 + $0x30] sm:$0x1] %vm19, %v306
  %309 = vst.msk [vmem:[%s2 + $0x130] sm:$0x1] %vm19, %v307
  %s310 = sld [smem:[#allocation3 + $0x31]]
  %s311 = scalar_lea.vmem %s1, %s310
  %v312 = vld [vmem:[%s311] sm:$0x1]
  %v313 = vld [vmem:[%s311 + $0x13a0] sm:$0x1]
  %314 = vst.msk [vmem:[%s2 + $0x31] sm:$0x1] %vm19, %v312
  %315 = vst.msk [vmem:[%s2 + $0x131] sm:$0x1] %vm19, %v313
  %s316 = sld [smem:[#allocation3 + $0x32]]
  %s317 = scalar_lea.vmem %s1, %s316
  %v318 = vld [vmem:[%s317] sm:$0x1]
  %v319 = vld [vmem:[%s317 + $0x13a0] sm:$0x1]
  %320 = vst.msk [vmem:[%s2 + $0x32] sm:$0x1] %vm19, %v318
  %321 = vst.msk [vmem:[%s2 + $0x132] sm:$0x1] %vm19, %v319
  %s322 = sld [smem:[#allocation3 + $0x33]]
  %s323 = scalar_lea.vmem %s1, %s322
  %v324 = vld [vmem:[%s323] sm:$0x1]
  %v325 = vld [vmem:[%s323 + $0x13a0] sm:$0x1]
  %326 = vst.msk [vmem:[%s2 + $0x33] sm:$0x1] %vm19, %v324
  %327 = vst.msk [vmem:[%s2 + $0x133] sm:$0x1] %vm19, %v325
  %s328 = sld [smem:[#allocation3 + $0x34]]
  %s329 = scalar_lea.vmem %s1, %s328
  %v330 = vld [vmem:[%s329] sm:$0x1]
  %v331 = vld [vmem:[%s329 + $0x13a0] sm:$0x1]
  %332 = vst.msk [vmem:[%s2 + $0x34] sm:$0x1] %vm19, %v330
  %333 = vst.msk [vmem:[%s2 + $0x134] sm:$0x1] %vm19, %v331
  %s334 = sld [smem:[#allocation3 + $0x35]]
  %s335 = scalar_lea.vmem %s1, %s334
  %v336 = vld [vmem:[%s335] sm:$0x1]
  %v337 = vld [vmem:[%s335 + $0x13a0] sm:$0x1]
  %338 = vst.msk [vmem:[%s2 + $0x35] sm:$0x1] %vm19, %v336
  %339 = vst.msk [vmem:[%s2 + $0x135] sm:$0x1] %vm19, %v337
  %s340 = sld [smem:[#allocation3 + $0x36]]
  %s341 = scalar_lea.vmem %s1, %s340
  %v342 = vld [vmem:[%s341] sm:$0x1]
  %v343 = vld [vmem:[%s341 + $0x13a0] sm:$0x1]
  %344 = vst.msk [vmem:[%s2 + $0x36] sm:$0x1] %vm19, %v342
  %345 = vst.msk [vmem:[%s2 + $0x136] sm:$0x1] %vm19, %v343
  %s346 = sld [smem:[#allocation3 + $0x37]]
  %s347 = scalar_lea.vmem %s1, %s346
  %v348 = vld [vmem:[%s347] sm:$0x1]
  %v349 = vld [vmem:[%s347 + $0x13a0] sm:$0x1]
  %350 = vst.msk [vmem:[%s2 + $0x37] sm:$0x1] %vm19, %v348
  %351 = vst.msk [vmem:[%s2 + $0x137] sm:$0x1] %vm19, %v349
  %s352 = sld [smem:[#allocation3 + $0x38]]
  %s353 = scalar_lea.vmem %s1, %s352
  %v354 = vld [vmem:[%s353] sm:$0x1]
  %v355 = vld [vmem:[%s353 + $0x13a0] sm:$0x1]
  %356 = vst.msk [vmem:[%s2 + $0x38] sm:$0x1] %vm19, %v354
  %357 = vst.msk [vmem:[%s2 + $0x138] sm:$0x1] %vm19, %v355
  %s358 = sld [smem:[#allocation3 + $0x39]]
  %s359 = scalar_lea.vmem %s1, %s358
  %v360 = vld [vmem:[%s359] sm:$0x1]
  %v361 = vld [vmem:[%s359 + $0x13a0] sm:$0x1]
  %362 = vst.msk [vmem:[%s2 + $0x39] sm:$0x1] %vm19, %v360
  %363 = vst.msk [vmem:[%s2 + $0x139] sm:$0x1] %vm19, %v361
  %s364 = sld [smem:[#allocation3 + $0x3a]]
  %s365 = scalar_lea.vmem %s1, %s364
  %v366 = vld [vmem:[%s365] sm:$0x1]
  %v367 = vld [vmem:[%s365 + $0x13a0] sm:$0x1]
  %368 = vst.msk [vmem:[%s2 + $0x3a] sm:$0x1] %vm19, %v366
  %369 = vst.msk [vmem:[%s2 + $0x13a] sm:$0x1] %vm19, %v367
  %s370 = sld [smem:[#allocation3 + $0x3b]]
  %s371 = scalar_lea.vmem %s1, %s370
  %v372 = vld [vmem:[%s371] sm:$0x1]
  %v373 = vld [vmem:[%s371 + $0x13a0] sm:$0x1]
  %374 = vst.msk [vmem:[%s2 + $0x3b] sm:$0x1] %vm19, %v372
  %375 = vst.msk [vmem:[%s2 + $0x13b] sm:$0x1] %vm19, %v373
  %s376 = sld [smem:[#allocation3 + $0x3c]]
  %s377 = scalar_lea.vmem %s1, %s376
  %v378 = vld [vmem:[%s377] sm:$0x1]
  %v379 = vld [vmem:[%s377 + $0x13a0] sm:$0x1]
  %380 = vst.msk [vmem:[%s2 + $0x3c] sm:$0x1] %vm19, %v378
  %381 = vst.msk [vmem:[%s2 + $0x13c] sm:$0x1] %vm19, %v379
  %s382 = sld [smem:[#allocation3 + $0x3d]]
  %s383 = scalar_lea.vmem %s1, %s382
  %v384 = vld [vmem:[%s383] sm:$0x1]
  %v385 = vld [vmem:[%s383 + $0x13a0] sm:$0x1]
  %386 = vst.msk [vmem:[%s2 + $0x3d] sm:$0x1] %vm19, %v384
  %387 = vst.msk [vmem:[%s2 + $0x13d] sm:$0x1] %vm19, %v385
  %s388 = sld [smem:[#allocation3 + $0x3e]]
  %s389 = scalar_lea.vmem %s1, %s388
  %v390 = vld [vmem:[%s389] sm:$0x1]
  %v391 = vld [vmem:[%s389 + $0x13a0] sm:$0x1]
  %392 = vst.msk [vmem:[%s2 + $0x3e] sm:$0x1] %vm19, %v390
  %393 = vst.msk [vmem:[%s2 + $0x13e] sm:$0x1] %vm19, %v391
  %s394 = sld [smem:[#allocation3 + $0x3f]]
  %s395 = scalar_lea.vmem %s1, %s394
  %v396 = vld [vmem:[%s395] sm:$0x1]
  %v397 = vld [vmem:[%s395 + $0x13a0] sm:$0x1]
  %398 = vst.msk [vmem:[%s2 + $0x3f] sm:$0x1] %vm19, %v396
  %399 = vst.msk [vmem:[%s2 + $0x13f] sm:$0x1] %vm19, %v397
  %s400 = sld [smem:[#allocation3 + $0x40]]
  %s401 = scalar_lea.vmem %s1, %s400
  %v402 = vld [vmem:[%s401] sm:$0x1]
  %v403 = vld [vmem:[%s401 + $0x13a0] sm:$0x1]
  %404 = vst.msk [vmem:[%s2 + $0x40] sm:$0x1] %vm19, %v402
  %405 = vst.msk [vmem:[%s2 + $0x140] sm:$0x1] %vm19, %v403
  %s406 = sld [smem:[#allocation3 + $0x41]]
  %s407 = scalar_lea.vmem %s1, %s406
  %v408 = vld [vmem:[%s407] sm:$0x1]
  %v409 = vld [vmem:[%s407 + $0x13a0] sm:$0x1]
  %410 = vst.msk [vmem:[%s2 + $0x41] sm:$0x1] %vm19, %v408
  %411 = vst.msk [vmem:[%s2 + $0x141] sm:$0x1] %vm19, %v409
  %s412 = sld [smem:[#allocation3 + $0x42]]
  %s413 = scalar_lea.vmem %s1, %s412
  %v414 = vld [vmem:[%s413] sm:$0x1]
  %v415 = vld [vmem:[%s413 + $0x13a0] sm:$0x1]
  %416 = vst.msk [vmem:[%s2 + $0x42] sm:$0x1] %vm19, %v414
  %417 = vst.msk [vmem:[%s2 + $0x142] sm:$0x1] %vm19, %v415
  %s418 = sld [smem:[#allocation3 + $0x43]]
  %s419 = scalar_lea.vmem %s1, %s418
  %v420 = vld [vmem:[%s419] sm:$0x1]
  %v421 = vld [vmem:[%s419 + $0x13a0] sm:$0x1]
  %422 = vst.msk [vmem:[%s2 + $0x43] sm:$0x1] %vm19, %v420
  %423 = vst.msk [vmem:[%s2 + $0x143] sm:$0x1] %vm19, %v421
  %s424 = sld [smem:[#allocation3 + $0x44]]
  %s425 = scalar_lea.vmem %s1, %s424
  %v426 = vld [vmem:[%s425] sm:$0x1]
  %v427 = vld [vmem:[%s425 + $0x13a0] sm:$0x1]
  %428 = vst.msk [vmem:[%s2 + $0x44] sm:$0x1] %vm19, %v426
  %429 = vst.msk [vmem:[%s2 + $0x144] sm:$0x1] %vm19, %v427
  %s430 = sld [smem:[#allocation3 + $0x45]]
  %s431 = scalar_lea.vmem %s1, %s430
  %v432 = vld [vmem:[%s431] sm:$0x1]
  %v433 = vld [vmem:[%s431 + $0x13a0] sm:$0x1]
  %434 = vst.msk [vmem:[%s2 + $0x45] sm:$0x1] %vm19, %v432
  %435 = vst.msk [vmem:[%s2 + $0x145] sm:$0x1] %vm19, %v433
  %s436 = sld [smem:[#allocation3 + $0x46]]
  %s437 = scalar_lea.vmem %s1, %s436
  %v438 = vld [vmem:[%s437] sm:$0x1]
  %v439 = vld [vmem:[%s437 + $0x13a0] sm:$0x1]
  %440 = vst.msk [vmem:[%s2 + $0x46] sm:$0x1] %vm19, %v438
  %441 = vst.msk [vmem:[%s2 + $0x146] sm:$0x1] %vm19, %v439
  %s442 = sld [smem:[#allocation3 + $0x47]]
  %s443 = scalar_lea.vmem %s1, %s442
  %v444 = vld [vmem:[%s443] sm:$0x1]
  %v445 = vld [vmem:[%s443 + $0x13a0] sm:$0x1]
  %446 = vst.msk [vmem:[%s2 + $0x47] sm:$0x1] %vm19, %v444
  %447 = vst.msk [vmem:[%s2 + $0x147] sm:$0x1] %vm19, %v445
  %s448 = sld [smem:[#allocation3 + $0x48]]
  %s449 = scalar_lea.vmem %s1, %s448
  %v450 = vld [vmem:[%s449] sm:$0x1]
  %v451 = vld [vmem:[%s449 + $0x13a0] sm:$0x1]
  %452 = vst.msk [vmem:[%s2 + $0x48] sm:$0x1] %vm19, %v450
  %453 = vst.msk [vmem:[%s2 + $0x148] sm:$0x1] %vm19, %v451
  %s454 = sld [smem:[#allocation3 + $0x49]]
  %s455 = scalar_lea.vmem %s1, %s454
  %v456 = vld [vmem:[%s455] sm:$0x1]
  %v457 = vld [vmem:[%s455 + $0x13a0] sm:$0x1]
  %458 = vst.msk [vmem:[%s2 + $0x49] sm:$0x1] %vm19, %v456
  %459 = vst.msk [vmem:[%s2 + $0x149] sm:$0x1] %vm19, %v457
  %s460 = sld [smem:[#allocation3 + $0x4a]]
  %s461 = scalar_lea.vmem %s1, %s460
  %v462 = vld [vmem:[%s461] sm:$0x1]
  %v463 = vld [vmem:[%s461 + $0x13a0] sm:$0x1]
  %464 = vst.msk [vmem:[%s2 + $0x4a] sm:$0x1] %vm19, %v462
  %465 = vst.msk [vmem:[%s2 + $0x14a] sm:$0x1] %vm19, %v463
  %s466 = sld [smem:[#allocation3 + $0x4b]]
  %s467 = scalar_lea.vmem %s1, %s466
  %v468 = vld [vmem:[%s467] sm:$0x1]
  %v469 = vld [vmem:[%s467 + $0x13a0] sm:$0x1]
  %470 = vst.msk [vmem:[%s2 + $0x4b] sm:$0x1] %vm19, %v468
  %471 = vst.msk [vmem:[%s2 + $0x14b] sm:$0x1] %vm19, %v469
  %s472 = sld [smem:[#allocation3 + $0x4c]]
  %s473 = scalar_lea.vmem %s1, %s472
  %v474 = vld [vmem:[%s473] sm:$0x1]
  %v475 = vld [vmem:[%s473 + $0x13a0] sm:$0x1]
  %476 = vst.msk [vmem:[%s2 + $0x4c] sm:$0x1] %vm19, %v474
  %477 = vst.msk [vmem:[%s2 + $0x14c] sm:$0x1] %vm19, %v475
  %s478 = sld [smem:[#allocation3 + $0x4d]]
  %s479 = scalar_lea.vmem %s1, %s478
  %v480 = vld [vmem:[%s479] sm:$0x1]
  %v481 = vld [vmem:[%s479 + $0x13a0] sm:$0x1]
  %482 = vst.msk [vmem:[%s2 + $0x4d] sm:$0x1] %vm19, %v480
  %483 = vst.msk [vmem:[%s2 + $0x14d] sm:$0x1] %vm19, %v481
  %s484 = sld [smem:[#allocation3 + $0x4e]]
  %s485 = scalar_lea.vmem %s1, %s484
  %v486 = vld [vmem:[%s485] sm:$0x1]
  %v487 = vld [vmem:[%s485 + $0x13a0] sm:$0x1]
  %488 = vst.msk [vmem:[%s2 + $0x4e] sm:$0x1] %vm19, %v486
  %489 = vst.msk [vmem:[%s2 + $0x14e] sm:$0x1] %vm19, %v487
  %s490 = sld [smem:[#allocation3 + $0x4f]]
  %s491 = scalar_lea.vmem %s1, %s490
  %v492 = vld [vmem:[%s491] sm:$0x1]
  %v493 = vld [vmem:[%s491 + $0x13a0] sm:$0x1]
  %494 = vst.msk [vmem:[%s2 + $0x4f] sm:$0x1] %vm19, %v492
  %495 = vst.msk [vmem:[%s2 + $0x14f] sm:$0x1] %vm19, %v493
  %s496 = sld [smem:[#allocation3 + $0x50]]
  %s497 = scalar_lea.vmem %s1, %s496
  %v498 = vld [vmem:[%s497] sm:$0x1]
  %v499 = vld [vmem:[%s497 + $0x13a0] sm:$0x1]
  %500 = vst.msk [vmem:[%s2 + $0x50] sm:$0x1] %vm19, %v498
  %501 = vst.msk [vmem:[%s2 + $0x150] sm:$0x1] %vm19, %v499
  %s502 = sld [smem:[#allocation3 + $0x51]]
  %s503 = scalar_lea.vmem %s1, %s502
  %v504 = vld [vmem:[%s503] sm:$0x1]
  %v505 = vld [vmem:[%s503 + $0x13a0] sm:$0x1]
  %506 = vst.msk [vmem:[%s2 + $0x51] sm:$0x1] %vm19, %v504
  %507 = vst.msk [vmem:[%s2 + $0x151] sm:$0x1] %vm19, %v505
  %s508 = sld [smem:[#allocation3 + $0x52]]
  %s509 = scalar_lea.vmem %s1, %s508
  %v510 = vld [vmem:[%s509] sm:$0x1]
  %v511 = vld [vmem:[%s509 + $0x13a0] sm:$0x1]
  %512 = vst.msk [vmem:[%s2 + $0x52] sm:$0x1] %vm19, %v510
  %513 = vst.msk [vmem:[%s2 + $0x152] sm:$0x1] %vm19, %v511
  %s514 = sld [smem:[#allocation3 + $0x53]]
  %s515 = scalar_lea.vmem %s1, %s514
  %v516 = vld [vmem:[%s515] sm:$0x1]
  %v517 = vld [vmem:[%s515 + $0x13a0] sm:$0x1]
  %518 = vst.msk [vmem:[%s2 + $0x53] sm:$0x1] %vm19, %v516
  %519 = vst.msk [vmem:[%s2 + $0x153] sm:$0x1] %vm19, %v517
  %s520 = sld [smem:[#allocation3 + $0x54]]
  %s521 = scalar_lea.vmem %s1, %s520
  %v522 = vld [vmem:[%s521] sm:$0x1]
  %v523 = vld [vmem:[%s521 + $0x13a0] sm:$0x1]
  %524 = vst.msk [vmem:[%s2 + $0x54] sm:$0x1] %vm19, %v522
  %525 = vst.msk [vmem:[%s2 + $0x154] sm:$0x1] %vm19, %v523
  %s526 = sld [smem:[#allocation3 + $0x55]]
  %s527 = scalar_lea.vmem %s1, %s526
  %v528 = vld [vmem:[%s527] sm:$0x1]
  %v529 = vld [vmem:[%s527 + $0x13a0] sm:$0x1]
  %530 = vst.msk [vmem:[%s2 + $0x55] sm:$0x1] %vm19, %v528
  %531 = vst.msk [vmem:[%s2 + $0x155] sm:$0x1] %vm19, %v529
  %s532 = sld [smem:[#allocation3 + $0x56]]
  %s533 = scalar_lea.vmem %s1, %s532
  %v534 = vld [vmem:[%s533] sm:$0x1]
  %v535 = vld [vmem:[%s533 + $0x13a0] sm:$0x1]
  %536 = vst.msk [vmem:[%s2 + $0x56] sm:$0x1] %vm19, %v534
  %537 = vst.msk [vmem:[%s2 + $0x156] sm:$0x1] %vm19, %v535
  %s538 = sld [smem:[#allocation3 + $0x57]]
  %s539 = scalar_lea.vmem %s1, %s538
  %v540 = vld [vmem:[%s539] sm:$0x1]
  %v541 = vld [vmem:[%s539 + $0x13a0] sm:$0x1]
  %542 = vst.msk [vmem:[%s2 + $0x57] sm:$0x1] %vm19, %v540
  %543 = vst.msk [vmem:[%s2 + $0x157] sm:$0x1] %vm19, %v541
  %s544 = sld [smem:[#allocation3 + $0x58]]
  %s545 = scalar_lea.vmem %s1, %s544
  %v546 = vld [vmem:[%s545] sm:$0x1]
  %v547 = vld [vmem:[%s545 + $0x13a0] sm:$0x1]
  %548 = vst.msk [vmem:[%s2 + $0x58] sm:$0x1] %vm19, %v546
  %549 = vst.msk [vmem:[%s2 + $0x158] sm:$0x1] %vm19, %v547
  %s550 = sld [smem:[#allocation3 + $0x59]]
  %s551 = scalar_lea.vmem %s1, %s550
  %v552 = vld [vmem:[%s551] sm:$0x1]
  %v553 = vld [vmem:[%s551 + $0x13a0] sm:$0x1]
  %554 = vst.msk [vmem:[%s2 + $0x59] sm:$0x1] %vm19, %v552
  %555 = vst.msk [vmem:[%s2 + $0x159] sm:$0x1] %vm19, %v553
  %s556 = sld [smem:[#allocation3 + $0x5a]]
  %s557 = scalar_lea.vmem %s1, %s556
  %v558 = vld [vmem:[%s557] sm:$0x1]
  %v559 = vld [vmem:[%s557 + $0x13a0] sm:$0x1]
  %560 = vst.msk [vmem:[%s2 + $0x5a] sm:$0x1] %vm19, %v558
  %561 = vst.msk [vmem:[%s2 + $0x15a] sm:$0x1] %vm19, %v559
  %s562 = sld [smem:[#allocation3 + $0x5b]]
  %s563 = scalar_lea.vmem %s1, %s562
  %v564 = vld [vmem:[%s563] sm:$0x1]
  %v565 = vld [vmem:[%s563 + $0x13a0] sm:$0x1]
  %566 = vst.msk [vmem:[%s2 + $0x5b] sm:$0x1] %vm19, %v564
  %567 = vst.msk [vmem:[%s2 + $0x15b] sm:$0x1] %vm19, %v565
  %s568 = sld [smem:[#allocation3 + $0x5c]]
  %s569 = scalar_lea.vmem %s1, %s568
  %v570 = vld [vmem:[%s569] sm:$0x1]
  %v571 = vld [vmem:[%s569 + $0x13a0] sm:$0x1]
  %572 = vst.msk [vmem:[%s2 + $0x5c] sm:$0x1] %vm19, %v570
  %573 = vst.msk [vmem:[%s2 + $0x15c] sm:$0x1] %vm19, %v571
  %s574 = sld [smem:[#allocation3 + $0x5d]]
  %s575 = scalar_lea.vmem %s1, %s574
  %v576 = vld [vmem:[%s575] sm:$0x1]
  %v577 = vld [vmem:[%s575 + $0x13a0] sm:$0x1]
  %578 = vst.msk [vmem:[%s2 + $0x5d] sm:$0x1] %vm19, %v576
  %579 = vst.msk [vmem:[%s2 + $0x15d] sm:$0x1] %vm19, %v577
  %s580 = sld [smem:[#allocation3 + $0x5e]]
  %s581 = scalar_lea.vmem %s1, %s580
  %v582 = vld [vmem:[%s581] sm:$0x1]
  %v583 = vld [vmem:[%s581 + $0x13a0] sm:$0x1]
  %584 = vst.msk [vmem:[%s2 + $0x5e] sm:$0x1] %vm19, %v582
  %585 = vst.msk [vmem:[%s2 + $0x15e] sm:$0x1] %vm19, %v583
  %s586 = sld [smem:[#allocation3 + $0x5f]]
  %s587 = scalar_lea.vmem %s1, %s586
  %v588 = vld [vmem:[%s587] sm:$0x1]
  %v589 = vld [vmem:[%s587 + $0x13a0] sm:$0x1]
  %590 = vst.msk [vmem:[%s2 + $0x5f] sm:$0x1] %vm19, %v588
  %591 = vst.msk [vmem:[%s2 + $0x15f] sm:$0x1] %vm19, %v589
  %s592 = sld [smem:[#allocation3 + $0x60]]
  %s593 = scalar_lea.vmem %s1, %s592
  %v594 = vld [vmem:[%s593] sm:$0x1]
  %v595 = vld [vmem:[%s593 + $0x13a0] sm:$0x1]
  %596 = vst.msk [vmem:[%s2 + $0x60] sm:$0x1] %vm19, %v594
  %597 = vst.msk [vmem:[%s2 + $0x160] sm:$0x1] %vm19, %v595
  %s598 = sld [smem:[#allocation3 + $0x61]]
  %s599 = scalar_lea.vmem %s1, %s598
  %v600 = vld [vmem:[%s599] sm:$0x1]
  %v601 = vld [vmem:[%s599 + $0x13a0] sm:$0x1]
  %602 = vst.msk [vmem:[%s2 + $0x61] sm:$0x1] %vm19, %v600
  %603 = vst.msk [vmem:[%s2 + $0x161] sm:$0x1] %vm19, %v601
  %s604 = sld [smem:[#allocation3 + $0x62]]
  %s605 = scalar_lea.vmem %s1, %s604
  %v606 = vld [vmem:[%s605] sm:$0x1]
  %v607 = vld [vmem:[%s605 + $0x13a0] sm:$0x1]
  %608 = vst.msk [vmem:[%s2 + $0x62] sm:$0x1] %vm19, %v606
  %609 = vst.msk [vmem:[%s2 + $0x162] sm:$0x1] %vm19, %v607
  %s610 = sld [smem:[#allocation3 + $0x63]]
  %s611 = scalar_lea.vmem %s1, %s610
  %v612 = vld [vmem:[%s611] sm:$0x1]
  %v613 = vld [vmem:[%s611 + $0x13a0] sm:$0x1]
  %614 = vst.msk [vmem:[%s2 + $0x63] sm:$0x1] %vm19, %v612
  %615 = vst.msk [vmem:[%s2 + $0x163] sm:$0x1] %vm19, %v613
  %s616 = sld [smem:[#allocation3 + $0x64]]
  %s617 = scalar_lea.vmem %s1, %s616
  %v618 = vld [vmem:[%s617] sm:$0x1]
  %v619 = vld [vmem:[%s617 + $0x13a0] sm:$0x1]
  %620 = vst.msk [vmem:[%s2 + $0x64] sm:$0x1] %vm19, %v618
  %621 = vst.msk [vmem:[%s2 + $0x164] sm:$0x1] %vm19, %v619
  %s622 = sld [smem:[#allocation3 + $0x65]]
  %s623 = scalar_lea.vmem %s1, %s622
  %v624 = vld [vmem:[%s623] sm:$0x1]
  %v625 = vld [vmem:[%s623 + $0x13a0] sm:$0x1]
  %626 = vst.msk [vmem:[%s2 + $0x65] sm:$0x1] %vm19, %v624
  %627 = vst.msk [vmem:[%s2 + $0x165] sm:$0x1] %vm19, %v625
  %s628 = sld [smem:[#allocation3 + $0x66]]
  %s629 = scalar_lea.vmem %s1, %s628
  %v630 = vld [vmem:[%s629] sm:$0x1]
  %v631 = vld [vmem:[%s629 + $0x13a0] sm:$0x1]
  %632 = vst.msk [vmem:[%s2 + $0x66] sm:$0x1] %vm19, %v630
  %633 = vst.msk [vmem:[%s2 + $0x166] sm:$0x1] %vm19, %v631
  %s634 = sld [smem:[#allocation3 + $0x67]]
  %s635 = scalar_lea.vmem %s1, %s634
  %v636 = vld [vmem:[%s635] sm:$0x1]
  %v637 = vld [vmem:[%s635 + $0x13a0] sm:$0x1]
  %638 = vst.msk [vmem:[%s2 + $0x67] sm:$0x1] %vm19, %v636
  %639 = vst.msk [vmem:[%s2 + $0x167] sm:$0x1] %vm19, %v637
  %s640 = sld [smem:[#allocation3 + $0x68]]
  %s641 = scalar_lea.vmem %s1, %s640
  %v642 = vld [vmem:[%s641] sm:$0x1]
  %v643 = vld [vmem:[%s641 + $0x13a0] sm:$0x1]
  %644 = vst.msk [vmem:[%s2 + $0x68] sm:$0x1] %vm19, %v642
  %645 = vst.msk [vmem:[%s2 + $0x168] sm:$0x1] %vm19, %v643
  %s646 = sld [smem:[#allocation3 + $0x69]]
  %s647 = scalar_lea.vmem %s1, %s646
  %v648 = vld [vmem:[%s647] sm:$0x1]
  %v649 = vld [vmem:[%s647 + $0x13a0] sm:$0x1]
  %650 = vst.msk [vmem:[%s2 + $0x69] sm:$0x1] %vm19, %v648
  %651 = vst.msk [vmem:[%s2 + $0x169] sm:$0x1] %vm19, %v649
  %s652 = sld [smem:[#allocation3 + $0x6a]]
  %s653 = scalar_lea.vmem %s1, %s652
  %v654 = vld [vmem:[%s653] sm:$0x1]
  %v655 = vld [vmem:[%s653 + $0x13a0] sm:$0x1]
  %656 = vst.msk [vmem:[%s2 + $0x6a] sm:$0x1] %vm19, %v654
  %657 = vst.msk [vmem:[%s2 + $0x16a] sm:$0x1] %vm19, %v655
  %s658 = sld [smem:[#allocation3 + $0x6b]]
  %s659 = scalar_lea.vmem %s1, %s658
  %v660 = vld [vmem:[%s659] sm:$0x1]
  %v661 = vld [vmem:[%s659 + $0x13a0] sm:$0x1]
  %662 = vst.msk [vmem:[%s2 + $0x6b] sm:$0x1] %vm19, %v660
  %663 = vst.msk [vmem:[%s2 + $0x16b] sm:$0x1] %vm19, %v661
  %s664 = sld [smem:[#allocation3 + $0x6c]]
  %s665 = scalar_lea.vmem %s1, %s664
  %v666 = vld [vmem:[%s665] sm:$0x1]
  %v667 = vld [vmem:[%s665 + $0x13a0] sm:$0x1]
  %668 = vst.msk [vmem:[%s2 + $0x6c] sm:$0x1] %vm19, %v666
  %669 = vst.msk [vmem:[%s2 + $0x16c] sm:$0x1] %vm19, %v667
  %s670 = sld [smem:[#allocation3 + $0x6d]]
  %s671 = scalar_lea.vmem %s1, %s670
  %v672 = vld [vmem:[%s671] sm:$0x1]
  %v673 = vld [vmem:[%s671 + $0x13a0] sm:$0x1]
  %674 = vst.msk [vmem:[%s2 + $0x6d] sm:$0x1] %vm19, %v672
  %675 = vst.msk [vmem:[%s2 + $0x16d] sm:$0x1] %vm19, %v673
  %s676 = sld [smem:[#allocation3 + $0x6e]]
  %s677 = scalar_lea.vmem %s1, %s676
  %v678 = vld [vmem:[%s677] sm:$0x1]
  %v679 = vld [vmem:[%s677 + $0x13a0] sm:$0x1]
  %680 = vst.msk [vmem:[%s2 + $0x6e] sm:$0x1] %vm19, %v678
  %681 = vst.msk [vmem:[%s2 + $0x16e] sm:$0x1] %vm19, %v679
  %s682 = sld [smem:[#allocation3 + $0x6f]]
  %s683 = scalar_lea.vmem %s1, %s682
  %v684 = vld [vmem:[%s683] sm:$0x1]
  %v685 = vld [vmem:[%s683 + $0x13a0] sm:$0x1]
  %686 = vst.msk [vmem:[%s2 + $0x6f] sm:$0x1] %vm19, %v684
  %687 = vst.msk [vmem:[%s2 + $0x16f] sm:$0x1] %vm19, %v685
  %s688 = sld [smem:[#allocation3 + $0x70]]
  %s689 = scalar_lea.vmem %s1, %s688
  %v690 = vld [vmem:[%s689] sm:$0x1]
  %v691 = vld [vmem:[%s689 + $0x13a0] sm:$0x1]
  %692 = vst.msk [vmem:[%s2 + $0x70] sm:$0x1] %vm19, %v690
  %693 = vst.msk [vmem:[%s2 + $0x170] sm:$0x1] %vm19, %v691
  %s694 = sld [smem:[#allocation3 + $0x71]]
  %s695 = scalar_lea.vmem %s1, %s694
  %v696 = vld [vmem:[%s695] sm:$0x1]
  %v697 = vld [vmem:[%s695 + $0x13a0] sm:$0x1]
  %698 = vst.msk [vmem:[%s2 + $0x71] sm:$0x1] %vm19, %v696
  %699 = vst.msk [vmem:[%s2 + $0x171] sm:$0x1] %vm19, %v697
  %s700 = sld [smem:[#allocation3 + $0x72]]
  %s701 = scalar_lea.vmem %s1, %s700
  %v702 = vld [vmem:[%s701] sm:$0x1]
  %v703 = vld [vmem:[%s701 + $0x13a0] sm:$0x1]
  %704 = vst.msk [vmem:[%s2 + $0x72] sm:$0x1] %vm19, %v702
  %705 = vst.msk [vmem:[%s2 + $0x172] sm:$0x1] %vm19, %v703
  %s706 = sld [smem:[#allocation3 + $0x73]]
  %s707 = scalar_lea.vmem %s1, %s706
  %v708 = vld [vmem:[%s707] sm:$0x1]
  %v709 = vld [vmem:[%s707 + $0x13a0] sm:$0x1]
  %710 = vst.msk [vmem:[%s2 + $0x73] sm:$0x1] %vm19, %v708
  %711 = vst.msk [vmem:[%s2 + $0x173] sm:$0x1] %vm19, %v709
  %s712 = sld [smem:[#allocation3 + $0x74]]
  %s713 = scalar_lea.vmem %s1, %s712
  %v714 = vld [vmem:[%s713] sm:$0x1]
  %v715 = vld [vmem:[%s713 + $0x13a0] sm:$0x1]
  %716 = vst.msk [vmem:[%s2 + $0x74] sm:$0x1] %vm19, %v714
  %717 = vst.msk [vmem:[%s2 + $0x174] sm:$0x1] %vm19, %v715
  %s718 = sld [smem:[#allocation3 + $0x75]]
  %s719 = scalar_lea.vmem %s1, %s718
  %v720 = vld [vmem:[%s719] sm:$0x1]
  %v721 = vld [vmem:[%s719 + $0x13a0] sm:$0x1]
  %722 = vst.msk [vmem:[%s2 + $0x75] sm:$0x1] %vm19, %v720
  %723 = vst.msk [vmem:[%s2 + $0x175] sm:$0x1] %vm19, %v721
  %s724 = sld [smem:[#allocation3 + $0x76]]
  %s725 = scalar_lea.vmem %s1, %s724
  %v726 = vld [vmem:[%s725] sm:$0x1]
  %v727 = vld [vmem:[%s725 + $0x13a0] sm:$0x1]
  %728 = vst.msk [vmem:[%s2 + $0x76] sm:$0x1] %vm19, %v726
  %729 = vst.msk [vmem:[%s2 + $0x176] sm:$0x1] %vm19, %v727
  %s730 = sld [smem:[#allocation3 + $0x77]]
  %s731 = scalar_lea.vmem %s1, %s730
  %v732 = vld [vmem:[%s731] sm:$0x1]
  %v733 = vld [vmem:[%s731 + $0x13a0] sm:$0x1]
  %734 = vst.msk [vmem:[%s2 + $0x77] sm:$0x1] %vm19, %v732
  %735 = vst.msk [vmem:[%s2 + $0x177] sm:$0x1] %vm19, %v733
  %s736 = sld [smem:[#allocation3 + $0x78]]
  %s737 = scalar_lea.vmem %s1, %s736
  %v738 = vld [vmem:[%s737] sm:$0x1]
  %v739 = vld [vmem:[%s737 + $0x13a0] sm:$0x1]
  %740 = vst.msk [vmem:[%s2 + $0x78] sm:$0x1] %vm19, %v738
  %741 = vst.msk [vmem:[%s2 + $0x178] sm:$0x1] %vm19, %v739
  %s742 = sld [smem:[#allocation3 + $0x79]]
  %s743 = scalar_lea.vmem %s1, %s742
  %v744 = vld [vmem:[%s743] sm:$0x1]
  %v745 = vld [vmem:[%s743 + $0x13a0] sm:$0x1]
  %746 = vst.msk [vmem:[%s2 + $0x79] sm:$0x1] %vm19, %v744
  %747 = vst.msk [vmem:[%s2 + $0x179] sm:$0x1] %vm19, %v745
  %s748 = sld [smem:[#allocation3 + $0x7a]]
  %s749 = scalar_lea.vmem %s1, %s748
  %v750 = vld [vmem:[%s749] sm:$0x1]
  %v751 = vld [vmem:[%s749 + $0x13a0] sm:$0x1]
  %752 = vst.msk [vmem:[%s2 + $0x7a] sm:$0x1] %vm19, %v750
  %753 = vst.msk [vmem:[%s2 + $0x17a] sm:$0x1] %vm19, %v751
  %s754 = sld [smem:[#allocation3 + $0x7b]]
  %s755 = scalar_lea.vmem %s1, %s754
  %v756 = vld [vmem:[%s755] sm:$0x1]
  %v757 = vld [vmem:[%s755 + $0x13a0] sm:$0x1]
  %758 = vst.msk [vmem:[%s2 + $0x7b] sm:$0x1] %vm19, %v756
  %759 = vst.msk [vmem:[%s2 + $0x17b] sm:$0x1] %vm19, %v757
  %s760 = sld [smem:[#allocation3 + $0x7c]]
  %s761 = scalar_lea.vmem %s1, %s760
  %v762 = vld [vmem:[%s761] sm:$0x1]
  %v763 = vld [vmem:[%s761 + $0x13a0] sm:$0x1]
  %764 = vst.msk [vmem:[%s2 + $0x7c] sm:$0x1] %vm19, %v762
  %765 = vst.msk [vmem:[%s2 + $0x17c] sm:$0x1] %vm19, %v763
  %s766 = sld [smem:[#allocation3 + $0x7d]]
  %s767 = scalar_lea.vmem %s1, %s766
  %v768 = vld [vmem:[%s767] sm:$0x1]
  %v769 = vld [vmem:[%s767 + $0x13a0] sm:$0x1]
  %770 = vst.msk [vmem:[%s2 + $0x7d] sm:$0x1] %vm19, %v768
  %771 = vst.msk [vmem:[%s2 + $0x17d] sm:$0x1] %vm19, %v769
  %s772 = sld [smem:[#allocation3 + $0x7e]]
  %s773 = scalar_lea.vmem %s1, %s772
  %v774 = vld [vmem:[%s773] sm:$0x1]
  %v775 = vld [vmem:[%s773 + $0x13a0] sm:$0x1]
  %776 = vst.msk [vmem:[%s2 + $0x7e] sm:$0x1] %vm19, %v774
  %777 = vst.msk [vmem:[%s2 + $0x17e] sm:$0x1] %vm19, %v775
  %s778 = sld [smem:[#allocation3 + $0x7f]]
  %s779 = scalar_lea.vmem %s1, %s778
  %v780 = vld [vmem:[%s779] sm:$0x1]
  %v781 = vld [vmem:[%s779 + $0x13a0] sm:$0x1]
  %782 = vst.msk [vmem:[%s2 + $0x7f] sm:$0x1] %vm19, %v780
  %783 = vst.msk [vmem:[%s2 + $0x17f] sm:$0x1] %vm19, %v781
  %s784 = sld [smem:[#allocation3 + $0x80]]
  %s785 = scalar_lea.vmem %s1, %s784
  %v786 = vld [vmem:[%s785] sm:$0x1]
  %v787 = vld [vmem:[%s785 + $0x13a0] sm:$0x1]
  %788 = vst.msk [vmem:[%s2 + $0x80] sm:$0x1] %vm19, %v786
  %789 = vst.msk [vmem:[%s2 + $0x180] sm:$0x1] %vm19, %v787
  %s790 = sld [smem:[#allocation3 + $0x81]]
  %s791 = scalar_lea.vmem %s1, %s790
  %v792 = vld [vmem:[%s791] sm:$0x1]
  %v793 = vld [vmem:[%s791 + $0x13a0] sm:$0x1]
  %794 = vst.msk [vmem:[%s2 + $0x81] sm:$0x1] %vm19, %v792
  %795 = vst.msk [vmem:[%s2 + $0x181] sm:$0x1] %vm19, %v793
  %s796 = sld [smem:[#allocation3 + $0x82]]
  %s797 = scalar_lea.vmem %s1, %s796
  %v798 = vld [vmem:[%s797] sm:$0x1]
  %v799 = vld [vmem:[%s797 + $0x13a0] sm:$0x1]
  %800 = vst.msk [vmem:[%s2 + $0x82] sm:$0x1] %vm19, %v798
  %801 = vst.msk [vmem:[%s2 + $0x182] sm:$0x1] %vm19, %v799
  %s802 = sld [smem:[#allocation3 + $0x83]]
  %s803 = scalar_lea.vmem %s1, %s802
  %v804 = vld [vmem:[%s803] sm:$0x1]
  %v805 = vld [vmem:[%s803 + $0x13a0] sm:$0x1]
  %806 = vst.msk [vmem:[%s2 + $0x83] sm:$0x1] %vm19, %v804
  %807 = vst.msk [vmem:[%s2 + $0x183] sm:$0x1] %vm19, %v805
  %s808 = sld [smem:[#allocation3 + $0x84]]
  %s809 = scalar_lea.vmem %s1, %s808
  %v810 = vld [vmem:[%s809] sm:$0x1]
  %v811 = vld [vmem:[%s809 + $0x13a0] sm:$0x1]
  %812 = vst.msk [vmem:[%s2 + $0x84] sm:$0x1] %vm19, %v810
  %813 = vst.msk [vmem:[%s2 + $0x184] sm:$0x1] %vm19, %v811
  %s814 = sld [smem:[#allocation3 + $0x85]]
  %s815 = scalar_lea.vmem %s1, %s814
  %v816 = vld [vmem:[%s815] sm:$0x1]
  %v817 = vld [vmem:[%s815 + $0x13a0] sm:$0x1]
  %818 = vst.msk [vmem:[%s2 + $0x85] sm:$0x1] %vm19, %v816
  %819 = vst.msk [vmem:[%s2 + $0x185] sm:$0x1] %vm19, %v817
  %s820 = sld [smem:[#allocation3 + $0x86]]
  %s821 = scalar_lea.vmem %s1, %s820
  %v822 = vld [vmem:[%s821] sm:$0x1]
  %v823 = vld [vmem:[%s821 + $0x13a0] sm:$0x1]
  %824 = vst.msk [vmem:[%s2 + $0x86] sm:$0x1] %vm19, %v822
  %825 = vst.msk [vmem:[%s2 + $0x186] sm:$0x1] %vm19, %v823
  %s826 = sld [smem:[#allocation3 + $0x87]]
  %s827 = scalar_lea.vmem %s1, %s826
  %v828 = vld [vmem:[%s827] sm:$0x1]
  %v829 = vld [vmem:[%s827 + $0x13a0] sm:$0x1]
  %830 = vst.msk [vmem:[%s2 + $0x87] sm:$0x1] %vm19, %v828
  %831 = vst.msk [vmem:[%s2 + $0x187] sm:$0x1] %vm19, %v829
  %s832 = sld [smem:[#allocation3 + $0x88]]
  %s833 = scalar_lea.vmem %s1, %s832
  %v834 = vld [vmem:[%s833] sm:$0x1]
  %v835 = vld [vmem:[%s833 + $0x13a0] sm:$0x1]
  %836 = vst.msk [vmem:[%s2 + $0x88] sm:$0x1] %vm19, %v834
  %837 = vst.msk [vmem:[%s2 + $0x188] sm:$0x1] %vm19, %v835
  %s838 = sld [smem:[#allocation3 + $0x89]]
  %s839 = scalar_lea.vmem %s1, %s838
  %v840 = vld [vmem:[%s839] sm:$0x1]
  %v841 = vld [vmem:[%s839 + $0x13a0] sm:$0x1]
  %842 = vst.msk [vmem:[%s2 + $0x89] sm:$0x1] %vm19, %v840
  %843 = vst.msk [vmem:[%s2 + $0x189] sm:$0x1] %vm19, %v841
  %s844 = sld [smem:[#allocation3 + $0x8a]]
  %s845 = scalar_lea.vmem %s1, %s844
  %v846 = vld [vmem:[%s845] sm:$0x1]
  %v847 = vld [vmem:[%s845 + $0x13a0] sm:$0x1]
  %848 = vst.msk [vmem:[%s2 + $0x8a] sm:$0x1] %vm19, %v846
  %849 = vst.msk [vmem:[%s2 + $0x18a] sm:$0x1] %vm19, %v847
  %s850 = sld [smem:[#allocation3 + $0x8b]]
  %s851 = scalar_lea.vmem %s1, %s850
  %v852 = vld [vmem:[%s851] sm:$0x1]
  %v853 = vld [vmem:[%s851 + $0x13a0] sm:$0x1]
  %854 = vst.msk [vmem:[%s2 + $0x8b] sm:$0x1] %vm19, %v852
  %855 = vst.msk [vmem:[%s2 + $0x18b] sm:$0x1] %vm19, %v853
  %s856 = sld [smem:[#allocation3 + $0x8c]]
  %s857 = scalar_lea.vmem %s1, %s856
  %v858 = vld [vmem:[%s857] sm:$0x1]
  %v859 = vld [vmem:[%s857 + $0x13a0] sm:$0x1]
  %860 = vst.msk [vmem:[%s2 + $0x8c] sm:$0x1] %vm19, %v858
  %861 = vst.msk [vmem:[%s2 + $0x18c] sm:$0x1] %vm19, %v859
  %s862 = sld [smem:[#allocation3 + $0x8d]]
  %s863 = scalar_lea.vmem %s1, %s862
  %v864 = vld [vmem:[%s863] sm:$0x1]
  %v865 = vld [vmem:[%s863 + $0x13a0] sm:$0x1]
  %866 = vst.msk [vmem:[%s2 + $0x8d] sm:$0x1] %vm19, %v864
  %867 = vst.msk [vmem:[%s2 + $0x18d] sm:$0x1] %vm19, %v865
  %s868 = sld [smem:[#allocation3 + $0x8e]]
  %s869 = scalar_lea.vmem %s1, %s868
  %v870 = vld [vmem:[%s869] sm:$0x1]
  %v871 = vld [vmem:[%s869 + $0x13a0] sm:$0x1]
  %872 = vst.msk [vmem:[%s2 + $0x8e] sm:$0x1] %vm19, %v870
  %873 = vst.msk [vmem:[%s2 + $0x18e] sm:$0x1] %vm19, %v871
  %s874 = sld [smem:[#allocation3 + $0x8f]]
  %s875 = scalar_lea.vmem %s1, %s874
  %v876 = vld [vmem:[%s875] sm:$0x1]
  %v877 = vld [vmem:[%s875 + $0x13a0] sm:$0x1]
  %878 = vst.msk [vmem:[%s2 + $0x8f] sm:$0x1] %vm19, %v876
  %879 = vst.msk [vmem:[%s2 + $0x18f] sm:$0x1] %vm19, %v877
  %s880 = sld [smem:[#allocation3 + $0x90]]
  %s881 = scalar_lea.vmem %s1, %s880
  %v882 = vld [vmem:[%s881] sm:$0x1]
  %v883 = vld [vmem:[%s881 + $0x13a0] sm:$0x1]
  %884 = vst.msk [vmem:[%s2 + $0x90] sm:$0x1] %vm19, %v882
  %885 = vst.msk [vmem:[%s2 + $0x190] sm:$0x1] %vm19, %v883
  %s886 = sld [smem:[#allocation3 + $0x91]]
  %s887 = scalar_lea.vmem %s1, %s886
  %v888 = vld [vmem:[%s887] sm:$0x1]
  %v889 = vld [vmem:[%s887 + $0x13a0] sm:$0x1]
  %890 = vst.msk [vmem:[%s2 + $0x91] sm:$0x1] %vm19, %v888
  %891 = vst.msk [vmem:[%s2 + $0x191] sm:$0x1] %vm19, %v889
  %s892 = sld [smem:[#allocation3 + $0x92]]
  %s893 = scalar_lea.vmem %s1, %s892
  %v894 = vld [vmem:[%s893] sm:$0x1]
  %v895 = vld [vmem:[%s893 + $0x13a0] sm:$0x1]
  %896 = vst.msk [vmem:[%s2 + $0x92] sm:$0x1] %vm19, %v894
  %897 = vst.msk [vmem:[%s2 + $0x192] sm:$0x1] %vm19, %v895
  %s898 = sld [smem:[#allocation3 + $0x93]]
  %s899 = scalar_lea.vmem %s1, %s898
  %v900 = vld [vmem:[%s899] sm:$0x1]
  %v901 = vld [vmem:[%s899 + $0x13a0] sm:$0x1]
  %902 = vst.msk [vmem:[%s2 + $0x93] sm:$0x1] %vm19, %v900
  %903 = vst.msk [vmem:[%s2 + $0x193] sm:$0x1] %vm19, %v901
  %s904 = sld [smem:[#allocation3 + $0x94]]
  %s905 = scalar_lea.vmem %s1, %s904
  %v906 = vld [vmem:[%s905] sm:$0x1]
  %v907 = vld [vmem:[%s905 + $0x13a0] sm:$0x1]
  %908 = vst.msk [vmem:[%s2 + $0x94] sm:$0x1] %vm19, %v906
  %909 = vst.msk [vmem:[%s2 + $0x194] sm:$0x1] %vm19, %v907
  %s910 = sld [smem:[#allocation3 + $0x95]]
  %s911 = scalar_lea.vmem %s1, %s910
  %v912 = vld [vmem:[%s911] sm:$0x1]
  %v913 = vld [vmem:[%s911 + $0x13a0] sm:$0x1]
  %914 = vst.msk [vmem:[%s2 + $0x95] sm:$0x1] %vm19, %v912
  %915 = vst.msk [vmem:[%s2 + $0x195] sm:$0x1] %vm19, %v913
  %s916 = sld [smem:[#allocation3 + $0x96]]
  %s917 = scalar_lea.vmem %s1, %s916
  %v918 = vld [vmem:[%s917] sm:$0x1]
  %v919 = vld [vmem:[%s917 + $0x13a0] sm:$0x1]
  %920 = vst.msk [vmem:[%s2 + $0x96] sm:$0x1] %vm19, %v918
  %921 = vst.msk [vmem:[%s2 + $0x196] sm:$0x1] %vm19, %v919
  %s922 = sld [smem:[#allocation3 + $0x97]]
  %s923 = scalar_lea.vmem %s1, %s922
  %v924 = vld [vmem:[%s923] sm:$0x1]
  %v925 = vld [vmem:[%s923 + $0x13a0] sm:$0x1]
  %926 = vst.msk [vmem:[%s2 + $0x97] sm:$0x1] %vm19, %v924
  %927 = vst.msk [vmem:[%s2 + $0x197] sm:$0x1] %vm19, %v925
  %s928 = sld [smem:[#allocation3 + $0x98]]
  %s929 = scalar_lea.vmem %s1, %s928
  %v930 = vld [vmem:[%s929] sm:$0x1]
  %v931 = vld [vmem:[%s929 + $0x13a0] sm:$0x1]
  %932 = vst.msk [vmem:[%s2 + $0x98] sm:$0x1] %vm19, %v930
  %933 = vst.msk [vmem:[%s2 + $0x198] sm:$0x1] %vm19, %v931
  %s934 = sld [smem:[#allocation3 + $0x99]]
  %s935 = scalar_lea.vmem %s1, %s934
  %v936 = vld [vmem:[%s935] sm:$0x1]
  %v937 = vld [vmem:[%s935 + $0x13a0] sm:$0x1]
  %938 = vst.msk [vmem:[%s2 + $0x99] sm:$0x1] %vm19, %v936
  %939 = vst.msk [vmem:[%s2 + $0x199] sm:$0x1] %vm19, %v937
  %s940 = sld [smem:[#allocation3 + $0x9a]]
  %s941 = scalar_lea.vmem %s1, %s940
  %v942 = vld [vmem:[%s941] sm:$0x1]
  %v943 = vld [vmem:[%s941 + $0x13a0] sm:$0x1]
  %944 = vst.msk [vmem:[%s2 + $0x9a] sm:$0x1] %vm19, %v942
  %945 = vst.msk [vmem:[%s2 + $0x19a] sm:$0x1] %vm19, %v943
  %s946 = sld [smem:[#allocation3 + $0x9b]]
  %s947 = scalar_lea.vmem %s1, %s946
  %v948 = vld [vmem:[%s947] sm:$0x1]
  %v949 = vld [vmem:[%s947 + $0x13a0] sm:$0x1]
  %950 = vst.msk [vmem:[%s2 + $0x9b] sm:$0x1] %vm19, %v948
  %951 = vst.msk [vmem:[%s2 + $0x19b] sm:$0x1] %vm19, %v949
  %s952 = sld [smem:[#allocation3 + $0x9c]]
  %s953 = scalar_lea.vmem %s1, %s952
  %v954 = vld [vmem:[%s953] sm:$0x1]
  %v955 = vld [vmem:[%s953 + $0x13a0] sm:$0x1]
  %956 = vst.msk [vmem:[%s2 + $0x9c] sm:$0x1] %vm19, %v954
  %957 = vst.msk [vmem:[%s2 + $0x19c] sm:$0x1] %vm19, %v955
  %s958 = sld [smem:[#allocation3 + $0x9d]]
  %s959 = scalar_lea.vmem %s1, %s958
  %v960 = vld [vmem:[%s959] sm:$0x1]
  %v961 = vld [vmem:[%s959 + $0x13a0] sm:$0x1]
  %962 = vst.msk [vmem:[%s2 + $0x9d] sm:$0x1] %vm19, %v960
  %963 = vst.msk [vmem:[%s2 + $0x19d] sm:$0x1] %vm19, %v961
  %s964 = sld [smem:[#allocation3 + $0x9e]]
  %s965 = scalar_lea.vmem %s1, %s964
  %v966 = vld [vmem:[%s965] sm:$0x1]
  %v967 = vld [vmem:[%s965 + $0x13a0] sm:$0x1]
  %968 = vst.msk [vmem:[%s2 + $0x9e] sm:$0x1] %vm19, %v966
  %969 = vst.msk [vmem:[%s2 + $0x19e] sm:$0x1] %vm19, %v967
  %s970 = sld [smem:[#allocation3 + $0x9f]]
  %s971 = scalar_lea.vmem %s1, %s970
  %v972 = vld [vmem:[%s971] sm:$0x1]
  %v973 = vld [vmem:[%s971 + $0x13a0] sm:$0x1]
  %974 = vst.msk [vmem:[%s2 + $0x9f] sm:$0x1] %vm19, %v972
  %975 = vst.msk [vmem:[%s2 + $0x19f] sm:$0x1] %vm19, %v973
  %s976 = sld [smem:[#allocation3 + $0xa0]]
  %s977 = scalar_lea.vmem %s1, %s976
  %v978 = vld [vmem:[%s977] sm:$0x1]
  %v979 = vld [vmem:[%s977 + $0x13a0] sm:$0x1]
  %980 = vst.msk [vmem:[%s2 + $0xa0] sm:$0x1] %vm19, %v978
  %981 = vst.msk [vmem:[%s2 + $0x1a0] sm:$0x1] %vm19, %v979
  %s982 = sld [smem:[#allocation3 + $0xa1]]
  %s983 = scalar_lea.vmem %s1, %s982
  %v984 = vld [vmem:[%s983] sm:$0x1]
  %v985 = vld [vmem:[%s983 + $0x13a0] sm:$0x1]
  %986 = vst.msk [vmem:[%s2 + $0xa1] sm:$0x1] %vm19, %v984
  %987 = vst.msk [vmem:[%s2 + $0x1a1] sm:$0x1] %vm19, %v985
  %s988 = sld [smem:[#allocation3 + $0xa2]]
  %s989 = scalar_lea.vmem %s1, %s988
  %v990 = vld [vmem:[%s989] sm:$0x1]
  %v991 = vld [vmem:[%s989 + $0x13a0] sm:$0x1]
  %992 = vst.msk [vmem:[%s2 + $0xa2] sm:$0x1] %vm19, %v990
  %993 = vst.msk [vmem:[%s2 + $0x1a2] sm:$0x1] %vm19, %v991
  %s994 = sld [smem:[#allocation3 + $0xa3]]
  %s995 = scalar_lea.vmem %s1, %s994
  %v996 = vld [vmem:[%s995] sm:$0x1]
  %v997 = vld [vmem:[%s995 + $0x13a0] sm:$0x1]
  %998 = vst.msk [vmem:[%s2 + $0xa3] sm:$0x1] %vm19, %v996
  %999 = vst.msk [vmem:[%s2 + $0x1a3] sm:$0x1] %vm19, %v997
  %s1000 = sld [smem:[#allocation3 + $0xa4]]
  %s1001 = scalar_lea.vmem %s1, %s1000
  %v1002 = vld [vmem:[%s1001] sm:$0x1]
  %v1003 = vld [vmem:[%s1001 + $0x13a0] sm:$0x1]
  %1004 = vst.msk [vmem:[%s2 + $0xa4] sm:$0x1] %vm19, %v1002
  %1005 = vst.msk [vmem:[%s2 + $0x1a4] sm:$0x1] %vm19, %v1003
  %s1006 = sld [smem:[#allocation3 + $0xa5]]
  %s1007 = scalar_lea.vmem %s1, %s1006
  %v1008 = vld [vmem:[%s1007] sm:$0x1]
  %v1009 = vld [vmem:[%s1007 + $0x13a0] sm:$0x1]
  %1010 = vst.msk [vmem:[%s2 + $0xa5] sm:$0x1] %vm19, %v1008
  %1011 = vst.msk [vmem:[%s2 + $0x1a5] sm:$0x1] %vm19, %v1009
  %s1012 = sld [smem:[#allocation3 + $0xa6]]
  %s1013 = scalar_lea.vmem %s1, %s1012
  %v1014 = vld [vmem:[%s1013] sm:$0x1]
  %v1015 = vld [vmem:[%s1013 + $0x13a0] sm:$0x1]
  %1016 = vst.msk [vmem:[%s2 + $0xa6] sm:$0x1] %vm19, %v1014
  %1017 = vst.msk [vmem:[%s2 + $0x1a6] sm:$0x1] %vm19, %v1015
  %s1018 = sld [smem:[#allocation3 + $0xa7]]
  %s1019 = scalar_lea.vmem %s1, %s1018
  %v1020 = vld [vmem:[%s1019] sm:$0x1]
  %v1021 = vld [vmem:[%s1019 + $0x13a0] sm:$0x1]
  %1022 = vst.msk [vmem:[%s2 + $0xa7] sm:$0x1] %vm19, %v1020
  %1023 = vst.msk [vmem:[%s2 + $0x1a7] sm:$0x1] %vm19, %v1021
  %s1024 = sld [smem:[#allocation3 + $0xa8]]
  %s1025 = scalar_lea.vmem %s1, %s1024
  %v1026 = vld [vmem:[%s1025] sm:$0x1]
  %v1027 = vld [vmem:[%s1025 + $0x13a0] sm:$0x1]
  %1028 = vst.msk [vmem:[%s2 + $0xa8] sm:$0x1] %vm19, %v1026
  %1029 = vst.msk [vmem:[%s2 + $0x1a8] sm:$0x1] %vm19, %v1027
  %s1030 = sld [smem:[#allocation3 + $0xa9]]
  %s1031 = scalar_lea.vmem %s1, %s1030
  %v1032 = vld [vmem:[%s1031] sm:$0x1]
  %v1033 = vld [vmem:[%s1031 + $0x13a0] sm:$0x1]
  %1034 = vst.msk [vmem:[%s2 + $0xa9] sm:$0x1] %vm19, %v1032
  %1035 = vst.msk [vmem:[%s2 + $0x1a9] sm:$0x1] %vm19, %v1033
  %s1036 = sld [smem:[#allocation3 + $0xaa]]
  %s1037 = scalar_lea.vmem %s1, %s1036
  %v1038 = vld [vmem:[%s1037] sm:$0x1]
  %v1039 = vld [vmem:[%s1037 + $0x13a0] sm:$0x1]
  %1040 = vst.msk [vmem:[%s2 + $0xaa] sm:$0x1] %vm19, %v1038
  %1041 = vst.msk [vmem:[%s2 + $0x1aa] sm:$0x1] %vm19, %v1039
  %s1042 = sld [smem:[#allocation3 + $0xab]]
  %s1043 = scalar_lea.vmem %s1, %s1042
  %v1044 = vld [vmem:[%s1043] sm:$0x1]
  %v1045 = vld [vmem:[%s1043 + $0x13a0] sm:$0x1]
  %1046 = vst.msk [vmem:[%s2 + $0xab] sm:$0x1] %vm19, %v1044
  %1047 = vst.msk [vmem:[%s2 + $0x1ab] sm:$0x1] %vm19, %v1045
  %s1048 = sld [smem:[#allocation3 + $0xac]]
  %s1049 = scalar_lea.vmem %s1, %s1048
  %v1050 = vld [vmem:[%s1049] sm:$0x1]
  %v1051 = vld [vmem:[%s1049 + $0x13a0] sm:$0x1]
  %1052 = vst.msk [vmem:[%s2 + $0xac] sm:$0x1] %vm19, %v1050
  %1053 = vst.msk [vmem:[%s2 + $0x1ac] sm:$0x1] %vm19, %v1051
  %s1054 = sld [smem:[#allocation3 + $0xad]]
  %s1055 = scalar_lea.vmem %s1, %s1054
  %v1056 = vld [vmem:[%s1055] sm:$0x1]
  %v1057 = vld [vmem:[%s1055 + $0x13a0] sm:$0x1]
  %1058 = vst.msk [vmem:[%s2 + $0xad] sm:$0x1] %vm19, %v1056
  %1059 = vst.msk [vmem:[%s2 + $0x1ad] sm:$0x1] %vm19, %v1057
  %s1060 = sld [smem:[#allocation3 + $0xae]]
  %s1061 = scalar_lea.vmem %s1, %s1060
  %v1062 = vld [vmem:[%s1061] sm:$0x1]
  %v1063 = vld [vmem:[%s1061 + $0x13a0] sm:$0x1]
  %1064 = vst.msk [vmem:[%s2 + $0xae] sm:$0x1] %vm19, %v1062
  %1065 = vst.msk [vmem:[%s2 + $0x1ae] sm:$0x1] %vm19, %v1063
  %s1066 = sld [smem:[#allocation3 + $0xaf]]
  %s1067 = scalar_lea.vmem %s1, %s1066
  %v1068 = vld [vmem:[%s1067] sm:$0x1]
  %v1069 = vld [vmem:[%s1067 + $0x13a0] sm:$0x1]
  %1070 = vst.msk [vmem:[%s2 + $0xaf] sm:$0x1] %vm19, %v1068
  %1071 = vst.msk [vmem:[%s2 + $0x1af] sm:$0x1] %vm19, %v1069
  %s1072 = sld [smem:[#allocation3 + $0xb0]]
  %s1073 = scalar_lea.vmem %s1, %s1072
  %v1074 = vld [vmem:[%s1073] sm:$0x1]
  %v1075 = vld [vmem:[%s1073 + $0x13a0] sm:$0x1]
  %1076 = vst.msk [vmem:[%s2 + $0xb0] sm:$0x1] %vm19, %v1074
  %1077 = vst.msk [vmem:[%s2 + $0x1b0] sm:$0x1] %vm19, %v1075
  %s1078 = sld [smem:[#allocation3 + $0xb1]]
  %s1079 = scalar_lea.vmem %s1, %s1078
  %v1080 = vld [vmem:[%s1079] sm:$0x1]
  %v1081 = vld [vmem:[%s1079 + $0x13a0] sm:$0x1]
  %1082 = vst.msk [vmem:[%s2 + $0xb1] sm:$0x1] %vm19, %v1080
  %1083 = vst.msk [vmem:[%s2 + $0x1b1] sm:$0x1] %vm19, %v1081
  %s1084 = sld [smem:[#allocation3 + $0xb2]]
  %s1085 = scalar_lea.vmem %s1, %s1084
  %v1086 = vld [vmem:[%s1085] sm:$0x1]
  %v1087 = vld [vmem:[%s1085 + $0x13a0] sm:$0x1]
  %1088 = vst.msk [vmem:[%s2 + $0xb2] sm:$0x1] %vm19, %v1086
  %1089 = vst.msk [vmem:[%s2 + $0x1b2] sm:$0x1] %vm19, %v1087
  %s1090 = sld [smem:[#allocation3 + $0xb3]]
  %s1091 = scalar_lea.vmem %s1, %s1090
  %v1092 = vld [vmem:[%s1091] sm:$0x1]
  %v1093 = vld [vmem:[%s1091 + $0x13a0] sm:$0x1]
  %1094 = vst.msk [vmem:[%s2 + $0xb3] sm:$0x1] %vm19, %v1092
  %1095 = vst.msk [vmem:[%s2 + $0x1b3] sm:$0x1] %vm19, %v1093
  %s1096 = sld [smem:[#allocation3 + $0xb4]]
  %s1097 = scalar_lea.vmem %s1, %s1096
  %v1098 = vld [vmem:[%s1097] sm:$0x1]
  %v1099 = vld [vmem:[%s1097 + $0x13a0] sm:$0x1]
  %1100 = vst.msk [vmem:[%s2 + $0xb4] sm:$0x1] %vm19, %v1098
  %1101 = vst.msk [vmem:[%s2 + $0x1b4] sm:$0x1] %vm19, %v1099
  %s1102 = sld [smem:[#allocation3 + $0xb5]]
  %s1103 = scalar_lea.vmem %s1, %s1102
  %v1104 = vld [vmem:[%s1103] sm:$0x1]
  %v1105 = vld [vmem:[%s1103 + $0x13a0] sm:$0x1]
  %1106 = vst.msk [vmem:[%s2 + $0xb5] sm:$0x1] %vm19, %v1104
  %1107 = vst.msk [vmem:[%s2 + $0x1b5] sm:$0x1] %vm19, %v1105
  %s1108 = sld [smem:[#allocation3 + $0xb6]]
  %s1109 = scalar_lea.vmem %s1, %s1108
  %v1110 = vld [vmem:[%s1109] sm:$0x1]
  %v1111 = vld [vmem:[%s1109 + $0x13a0] sm:$0x1]
  %1112 = vst.msk [vmem:[%s2 + $0xb6] sm:$0x1] %vm19, %v1110
  %1113 = vst.msk [vmem:[%s2 + $0x1b6] sm:$0x1] %vm19, %v1111
  %s1114 = sld [smem:[#allocation3 + $0xb7]]
  %s1115 = scalar_lea.vmem %s1, %s1114
  %v1116 = vld [vmem:[%s1115] sm:$0x1]
  %v1117 = vld [vmem:[%s1115 + $0x13a0] sm:$0x1]
  %1118 = vst.msk [vmem:[%s2 + $0xb7] sm:$0x1] %vm19, %v1116
  %1119 = vst.msk [vmem:[%s2 + $0x1b7] sm:$0x1] %vm19, %v1117
  %s1120 = sld [smem:[#allocation3 + $0xb8]]
  %s1121 = scalar_lea.vmem %s1, %s1120
  %v1122 = vld [vmem:[%s1121] sm:$0x1]
  %v1123 = vld [vmem:[%s1121 + $0x13a0] sm:$0x1]
  %1124 = vst.msk [vmem:[%s2 + $0xb8] sm:$0x1] %vm19, %v1122
  %1125 = vst.msk [vmem:[%s2 + $0x1b8] sm:$0x1] %vm19, %v1123
  %s1126 = sld [smem:[#allocation3 + $0xb9]]
  %s1127 = scalar_lea.vmem %s1, %s1126
  %v1128 = vld [vmem:[%s1127] sm:$0x1]
  %v1129 = vld [vmem:[%s1127 + $0x13a0] sm:$0x1]
  %1130 = vst.msk [vmem:[%s2 + $0xb9] sm:$0x1] %vm19, %v1128
  %1131 = vst.msk [vmem:[%s2 + $0x1b9] sm:$0x1] %vm19, %v1129
  %s1132 = sld [smem:[#allocation3 + $0xba]]
  %s1133 = scalar_lea.vmem %s1, %s1132
  %v1134 = vld [vmem:[%s1133] sm:$0x1]
  %v1135 = vld [vmem:[%s1133 + $0x13a0] sm:$0x1]
  %1136 = vst.msk [vmem:[%s2 + $0xba] sm:$0x1] %vm19, %v1134
  %1137 = vst.msk [vmem:[%s2 + $0x1ba] sm:$0x1] %vm19, %v1135
  %s1138 = sld [smem:[#allocation3 + $0xbb]]
  %s1139 = scalar_lea.vmem %s1, %s1138
  %v1140 = vld [vmem:[%s1139] sm:$0x1]
  %v1141 = vld [vmem:[%s1139 + $0x13a0] sm:$0x1]
  %1142 = vst.msk [vmem:[%s2 + $0xbb] sm:$0x1] %vm19, %v1140
  %1143 = vst.msk [vmem:[%s2 + $0x1bb] sm:$0x1] %vm19, %v1141
  %s1144 = sld [smem:[#allocation3 + $0xbc]]
  %s1145 = scalar_lea.vmem %s1, %s1144
  %v1146 = vld [vmem:[%s1145] sm:$0x1]
  %v1147 = vld [vmem:[%s1145 + $0x13a0] sm:$0x1]
  %1148 = vst.msk [vmem:[%s2 + $0xbc] sm:$0x1] %vm19, %v1146
  %1149 = vst.msk [vmem:[%s2 + $0x1bc] sm:$0x1] %vm19, %v1147
  %s1150 = sld [smem:[#allocation3 + $0xbd]]
  %s1151 = scalar_lea.vmem %s1, %s1150
  %v1152 = vld [vmem:[%s1151] sm:$0x1]
  %v1153 = vld [vmem:[%s1151 + $0x13a0] sm:$0x1]
  %1154 = vst.msk [vmem:[%s2 + $0xbd] sm:$0x1] %vm19, %v1152
  %1155 = vst.msk [vmem:[%s2 + $0x1bd] sm:$0x1] %vm19, %v1153
  %s1156 = sld [smem:[#allocation3 + $0xbe]]
  %s1157 = scalar_lea.vmem %s1, %s1156
  %v1158 = vld [vmem:[%s1157] sm:$0x1]
  %v1159 = vld [vmem:[%s1157 + $0x13a0] sm:$0x1]
  %1160 = vst.msk [vmem:[%s2 + $0xbe] sm:$0x1] %vm19, %v1158
  %1161 = vst.msk [vmem:[%s2 + $0x1be] sm:$0x1] %vm19, %v1159
  %s1162 = sld [smem:[#allocation3 + $0xbf]]
  %s1163 = scalar_lea.vmem %s1, %s1162
  %v1164 = vld [vmem:[%s1163] sm:$0x1]
  %v1165 = vld [vmem:[%s1163 + $0x13a0] sm:$0x1]
  %1166 = vst.msk [vmem:[%s2 + $0xbf] sm:$0x1] %vm19, %v1164
  %1167 = vst.msk [vmem:[%s2 + $0x1bf] sm:$0x1] %vm19, %v1165
  %s1168 = sld [smem:[#allocation3 + $0xc0]]
  %s1169 = scalar_lea.vmem %s1, %s1168
  %v1170 = vld [vmem:[%s1169] sm:$0x1]
  %v1171 = vld [vmem:[%s1169 + $0x13a0] sm:$0x1]
  %1172 = vst.msk [vmem:[%s2 + $0xc0] sm:$0x1] %vm19, %v1170
  %1173 = vst.msk [vmem:[%s2 + $0x1c0] sm:$0x1] %vm19, %v1171
  %s1174 = sld [smem:[#allocation3 + $0xc1]]
  %s1175 = scalar_lea.vmem %s1, %s1174
  %v1176 = vld [vmem:[%s1175] sm:$0x1]
  %v1177 = vld [vmem:[%s1175 + $0x13a0] sm:$0x1]
  %1178 = vst.msk [vmem:[%s2 + $0xc1] sm:$0x1] %vm19, %v1176
  %1179 = vst.msk [vmem:[%s2 + $0x1c1] sm:$0x1] %vm19, %v1177
  %s1180 = sld [smem:[#allocation3 + $0xc2]]
  %s1181 = scalar_lea.vmem %s1, %s1180
  %v1182 = vld [vmem:[%s1181] sm:$0x1]
  %v1183 = vld [vmem:[%s1181 + $0x13a0] sm:$0x1]
  %1184 = vst.msk [vmem:[%s2 + $0xc2] sm:$0x1] %vm19, %v1182
  %1185 = vst.msk [vmem:[%s2 + $0x1c2] sm:$0x1] %vm19, %v1183
  %s1186 = sld [smem:[#allocation3 + $0xc3]]
  %s1187 = scalar_lea.vmem %s1, %s1186
  %v1188 = vld [vmem:[%s1187] sm:$0x1]
  %v1189 = vld [vmem:[%s1187 + $0x13a0] sm:$0x1]
  %1190 = vst.msk [vmem:[%s2 + $0xc3] sm:$0x1] %vm19, %v1188
  %1191 = vst.msk [vmem:[%s2 + $0x1c3] sm:$0x1] %vm19, %v1189
  %s1192 = sld [smem:[#allocation3 + $0xc4]]
  %s1193 = scalar_lea.vmem %s1, %s1192
  %v1194 = vld [vmem:[%s1193] sm:$0x1]
  %v1195 = vld [vmem:[%s1193 + $0x13a0] sm:$0x1]
  %1196 = vst.msk [vmem:[%s2 + $0xc4] sm:$0x1] %vm19, %v1194
  %1197 = vst.msk [vmem:[%s2 + $0x1c4] sm:$0x1] %vm19, %v1195
  %s1198 = sld [smem:[#allocation3 + $0xc5]]
  %s1199 = scalar_lea.vmem %s1, %s1198
  %v1200 = vld [vmem:[%s1199] sm:$0x1]
  %v1201 = vld [vmem:[%s1199 + $0x13a0] sm:$0x1]
  %1202 = vst.msk [vmem:[%s2 + $0xc5] sm:$0x1] %vm19, %v1200
  %1203 = vst.msk [vmem:[%s2 + $0x1c5] sm:$0x1] %vm19, %v1201
  %s1204 = sld [smem:[#allocation3 + $0xc6]]
  %s1205 = scalar_lea.vmem %s1, %s1204
  %v1206 = vld [vmem:[%s1205] sm:$0x1]
  %v1207 = vld [vmem:[%s1205 + $0x13a0] sm:$0x1]
  %1208 = vst.msk [vmem:[%s2 + $0xc6] sm:$0x1] %vm19, %v1206
  %1209 = vst.msk [vmem:[%s2 + $0x1c6] sm:$0x1] %vm19, %v1207
  %s1210 = sld [smem:[#allocation3 + $0xc7]]
  %s1211 = scalar_lea.vmem %s1, %s1210
  %v1212 = vld [vmem:[%s1211] sm:$0x1]
  %v1213 = vld [vmem:[%s1211 + $0x13a0] sm:$0x1]
  %1214 = vst.msk [vmem:[%s2 + $0xc7] sm:$0x1] %vm19, %v1212
  %1215 = vst.msk [vmem:[%s2 + $0x1c7] sm:$0x1] %vm19, %v1213
  %s1216 = sld [smem:[#allocation3 + $0xc8]]
  %s1217 = scalar_lea.vmem %s1, %s1216
  %v1218 = vld [vmem:[%s1217] sm:$0x1]
  %v1219 = vld [vmem:[%s1217 + $0x13a0] sm:$0x1]
  %1220 = vst.msk [vmem:[%s2 + $0xc8] sm:$0x1] %vm19, %v1218
  %1221 = vst.msk [vmem:[%s2 + $0x1c8] sm:$0x1] %vm19, %v1219
  %s1222 = sld [smem:[#allocation3 + $0xc9]]
  %s1223 = scalar_lea.vmem %s1, %s1222
  %v1224 = vld [vmem:[%s1223] sm:$0x1]
  %v1225 = vld [vmem:[%s1223 + $0x13a0] sm:$0x1]
  %1226 = vst.msk [vmem:[%s2 + $0xc9] sm:$0x1] %vm19, %v1224
  %1227 = vst.msk [vmem:[%s2 + $0x1c9] sm:$0x1] %vm19, %v1225
  %s1228 = sld [smem:[#allocation3 + $0xca]]
  %s1229 = scalar_lea.vmem %s1, %s1228
  %v1230 = vld [vmem:[%s1229] sm:$0x1]
  %v1231 = vld [vmem:[%s1229 + $0x13a0] sm:$0x1]
  %1232 = vst.msk [vmem:[%s2 + $0xca] sm:$0x1] %vm19, %v1230
  %1233 = vst.msk [vmem:[%s2 + $0x1ca] sm:$0x1] %vm19, %v1231
  %s1234 = sld [smem:[#allocation3 + $0xcb]]
  %s1235 = scalar_lea.vmem %s1, %s1234
  %v1236 = vld [vmem:[%s1235] sm:$0x1]
  %v1237 = vld [vmem:[%s1235 + $0x13a0] sm:$0x1]
  %1238 = vst.msk [vmem:[%s2 + $0xcb] sm:$0x1] %vm19, %v1236
  %1239 = vst.msk [vmem:[%s2 + $0x1cb] sm:$0x1] %vm19, %v1237
  %s1240 = sld [smem:[#allocation3 + $0xcc]]
  %s1241 = scalar_lea.vmem %s1, %s1240
  %v1242 = vld [vmem:[%s1241] sm:$0x1]
  %v1243 = vld [vmem:[%s1241 + $0x13a0] sm:$0x1]
  %1244 = vst.msk [vmem:[%s2 + $0xcc] sm:$0x1] %vm19, %v1242
  %1245 = vst.msk [vmem:[%s2 + $0x1cc] sm:$0x1] %vm19, %v1243
  %s1246 = sld [smem:[#allocation3 + $0xcd]]
  %s1247 = scalar_lea.vmem %s1, %s1246
  %v1248 = vld [vmem:[%s1247] sm:$0x1]
  %v1249 = vld [vmem:[%s1247 + $0x13a0] sm:$0x1]
  %1250 = vst.msk [vmem:[%s2 + $0xcd] sm:$0x1] %vm19, %v1248
  %1251 = vst.msk [vmem:[%s2 + $0x1cd] sm:$0x1] %vm19, %v1249
  %s1252 = sld [smem:[#allocation3 + $0xce]]
  %s1253 = scalar_lea.vmem %s1, %s1252
  %v1254 = vld [vmem:[%s1253] sm:$0x1]
  %v1255 = vld [vmem:[%s1253 + $0x13a0] sm:$0x1]
  %1256 = vst.msk [vmem:[%s2 + $0xce] sm:$0x1] %vm19, %v1254
  %1257 = vst.msk [vmem:[%s2 + $0x1ce] sm:$0x1] %vm19, %v1255
  %s1258 = sld [smem:[#allocation3 + $0xcf]]
  %s1259 = scalar_lea.vmem %s1, %s1258
  %v1260 = vld [vmem:[%s1259] sm:$0x1]
  %v1261 = vld [vmem:[%s1259 + $0x13a0] sm:$0x1]
  %1262 = vst.msk [vmem:[%s2 + $0xcf] sm:$0x1] %vm19, %v1260
  %1263 = vst.msk [vmem:[%s2 + $0x1cf] sm:$0x1] %vm19, %v1261
  %s1264 = sld [smem:[#allocation3 + $0xd0]]
  %s1265 = scalar_lea.vmem %s1, %s1264
  %v1266 = vld [vmem:[%s1265] sm:$0x1]
  %v1267 = vld [vmem:[%s1265 + $0x13a0] sm:$0x1]
  %1268 = vst.msk [vmem:[%s2 + $0xd0] sm:$0x1] %vm19, %v1266
  %1269 = vst.msk [vmem:[%s2 + $0x1d0] sm:$0x1] %vm19, %v1267
  %s1270 = sld [smem:[#allocation3 + $0xd1]]
  %s1271 = scalar_lea.vmem %s1, %s1270
  %v1272 = vld [vmem:[%s1271] sm:$0x1]
  %v1273 = vld [vmem:[%s1271 + $0x13a0] sm:$0x1]
  %1274 = vst.msk [vmem:[%s2 + $0xd1] sm:$0x1] %vm19, %v1272
  %1275 = vst.msk [vmem:[%s2 + $0x1d1] sm:$0x1] %vm19, %v1273
  %s1276 = sld [smem:[#allocation3 + $0xd2]]
  %s1277 = scalar_lea.vmem %s1, %s1276
  %v1278 = vld [vmem:[%s1277] sm:$0x1]
  %v1279 = vld [vmem:[%s1277 + $0x13a0] sm:$0x1]
  %1280 = vst.msk [vmem:[%s2 + $0xd2] sm:$0x1] %vm19, %v1278
  %1281 = vst.msk [vmem:[%s2 + $0x1d2] sm:$0x1] %vm19, %v1279
  %s1282 = sld [smem:[#allocation3 + $0xd3]]
  %s1283 = scalar_lea.vmem %s1, %s1282
  %v1284 = vld [vmem:[%s1283] sm:$0x1]
  %v1285 = vld [vmem:[%s1283 + $0x13a0] sm:$0x1]
  %1286 = vst.msk [vmem:[%s2 + $0xd3] sm:$0x1] %vm19, %v1284
  %1287 = vst.msk [vmem:[%s2 + $0x1d3] sm:$0x1] %vm19, %v1285
  %s1288 = sld [smem:[#allocation3 + $0xd4]]
  %s1289 = scalar_lea.vmem %s1, %s1288
  %v1290 = vld [vmem:[%s1289] sm:$0x1]
  %v1291 = vld [vmem:[%s1289 + $0x13a0] sm:$0x1]
  %1292 = vst.msk [vmem:[%s2 + $0xd4] sm:$0x1] %vm19, %v1290
  %1293 = vst.msk [vmem:[%s2 + $0x1d4] sm:$0x1] %vm19, %v1291
  %s1294 = sld [smem:[#allocation3 + $0xd5]]
  %s1295 = scalar_lea.vmem %s1, %s1294
  %v1296 = vld [vmem:[%s1295] sm:$0x1]
  %v1297 = vld [vmem:[%s1295 + $0x13a0] sm:$0x1]
  %1298 = vst.msk [vmem:[%s2 + $0xd5] sm:$0x1] %vm19, %v1296
  %1299 = vst.msk [vmem:[%s2 + $0x1d5] sm:$0x1] %vm19, %v1297
  %s1300 = sld [smem:[#allocation3 + $0xd6]]
  %s1301 = scalar_lea.vmem %s1, %s1300
  %v1302 = vld [vmem:[%s1301] sm:$0x1]
  %v1303 = vld [vmem:[%s1301 + $0x13a0] sm:$0x1]
  %1304 = vst.msk [vmem:[%s2 + $0xd6] sm:$0x1] %vm19, %v1302
  %1305 = vst.msk [vmem:[%s2 + $0x1d6] sm:$0x1] %vm19, %v1303
  %s1306 = sld [smem:[#allocation3 + $0xd7]]
  %s1307 = scalar_lea.vmem %s1, %s1306
  %v1308 = vld [vmem:[%s1307] sm:$0x1]
  %v1309 = vld [vmem:[%s1307 + $0x13a0] sm:$0x1]
  %1310 = vst.msk [vmem:[%s2 + $0xd7] sm:$0x1] %vm19, %v1308
  %1311 = vst.msk [vmem:[%s2 + $0x1d7] sm:$0x1] %vm19, %v1309
  %s1312 = sld [smem:[#allocation3 + $0xd8]]
  %s1313 = scalar_lea.vmem %s1, %s1312
  %v1314 = vld [vmem:[%s1313] sm:$0x1]
  %v1315 = vld [vmem:[%s1313 + $0x13a0] sm:$0x1]
  %1316 = vst.msk [vmem:[%s2 + $0xd8] sm:$0x1] %vm19, %v1314
  %1317 = vst.msk [vmem:[%s2 + $0x1d8] sm:$0x1] %vm19, %v1315
  %s1318 = sld [smem:[#allocation3 + $0xd9]]
  %s1319 = scalar_lea.vmem %s1, %s1318
  %v1320 = vld [vmem:[%s1319] sm:$0x1]
  %v1321 = vld [vmem:[%s1319 + $0x13a0] sm:$0x1]
  %1322 = vst.msk [vmem:[%s2 + $0xd9] sm:$0x1] %vm19, %v1320
  %1323 = vst.msk [vmem:[%s2 + $0x1d9] sm:$0x1] %vm19, %v1321
  %s1324 = sld [smem:[#allocation3 + $0xda]]
  %s1325 = scalar_lea.vmem %s1, %s1324
  %v1326 = vld [vmem:[%s1325] sm:$0x1]
  %v1327 = vld [vmem:[%s1325 + $0x13a0] sm:$0x1]
  %1328 = vst.msk [vmem:[%s2 + $0xda] sm:$0x1] %vm19, %v1326
  %1329 = vst.msk [vmem:[%s2 + $0x1da] sm:$0x1] %vm19, %v1327
  %s1330 = sld [smem:[#allocation3 + $0xdb]]
  %s1331 = scalar_lea.vmem %s1, %s1330
  %v1332 = vld [vmem:[%s1331] sm:$0x1]
  %v1333 = vld [vmem:[%s1331 + $0x13a0] sm:$0x1]
  %1334 = vst.msk [vmem:[%s2 + $0xdb] sm:$0x1] %vm19, %v1332
  %1335 = vst.msk [vmem:[%s2 + $0x1db] sm:$0x1] %vm19, %v1333
  %s1336 = sld [smem:[#allocation3 + $0xdc]]
  %s1337 = scalar_lea.vmem %s1, %s1336
  %v1338 = vld [vmem:[%s1337] sm:$0x1]
  %v1339 = vld [vmem:[%s1337 + $0x13a0] sm:$0x1]
  %1340 = vst.msk [vmem:[%s2 + $0xdc] sm:$0x1] %vm19, %v1338
  %1341 = vst.msk [vmem:[%s2 + $0x1dc] sm:$0x1] %vm19, %v1339
  %s1342 = sld [smem:[#allocation3 + $0xdd]]
  %s1343 = scalar_lea.vmem %s1, %s1342
  %v1344 = vld [vmem:[%s1343] sm:$0x1]
  %v1345 = vld [vmem:[%s1343 + $0x13a0] sm:$0x1]
  %1346 = vst.msk [vmem:[%s2 + $0xdd] sm:$0x1] %vm19, %v1344
  %1347 = vst.msk [vmem:[%s2 + $0x1dd] sm:$0x1] %vm19, %v1345
  %s1348 = sld [smem:[#allocation3 + $0xde]]
  %s1349 = scalar_lea.vmem %s1, %s1348
  %v1350 = vld [vmem:[%s1349] sm:$0x1]
  %v1351 = vld [vmem:[%s1349 + $0x13a0] sm:$0x1]
  %1352 = vst.msk [vmem:[%s2 + $0xde] sm:$0x1] %vm19, %v1350
  %1353 = vst.msk [vmem:[%s2 + $0x1de] sm:$0x1] %vm19, %v1351
  %s1354 = sld [smem:[#allocation3 + $0xdf]]
  %s1355 = scalar_lea.vmem %s1, %s1354
  %v1356 = vld [vmem:[%s1355] sm:$0x1]
  %v1357 = vld [vmem:[%s1355 + $0x13a0] sm:$0x1]
  %1358 = vst.msk [vmem:[%s2 + $0xdf] sm:$0x1] %vm19, %v1356
  %1359 = vst.msk [vmem:[%s2 + $0x1df] sm:$0x1] %vm19, %v1357
  %s1360 = sld [smem:[#allocation3 + $0xe0]]
  %s1361 = scalar_lea.vmem %s1, %s1360
  %v1362 = vld [vmem:[%s1361] sm:$0x1]
  %v1363 = vld [vmem:[%s1361 + $0x13a0] sm:$0x1]
  %1364 = vst.msk [vmem:[%s2 + $0xe0] sm:$0x1] %vm19, %v1362
  %1365 = vst.msk [vmem:[%s2 + $0x1e0] sm:$0x1] %vm19, %v1363
  %s1366 = sld [smem:[#allocation3 + $0xe1]]
  %s1367 = scalar_lea.vmem %s1, %s1366
  %v1368 = vld [vmem:[%s1367] sm:$0x1]
  %v1369 = vld [vmem:[%s1367 + $0x13a0] sm:$0x1]
  %1370 = vst.msk [vmem:[%s2 + $0xe1] sm:$0x1] %vm19, %v1368
  %1371 = vst.msk [vmem:[%s2 + $0x1e1] sm:$0x1] %vm19, %v1369
  %s1372 = sld [smem:[#allocation3 + $0xe2]]
  %s1373 = scalar_lea.vmem %s1, %s1372
  %v1374 = vld [vmem:[%s1373] sm:$0x1]
  %v1375 = vld [vmem:[%s1373 + $0x13a0] sm:$0x1]
  %1376 = vst.msk [vmem:[%s2 + $0xe2] sm:$0x1] %vm19, %v1374
  %1377 = vst.msk [vmem:[%s2 + $0x1e2] sm:$0x1] %vm19, %v1375
  %s1378 = sld [smem:[#allocation3 + $0xe3]]
  %s1379 = scalar_lea.vmem %s1, %s1378
  %v1380 = vld [vmem:[%s1379] sm:$0x1]
  %v1381 = vld [vmem:[%s1379 + $0x13a0] sm:$0x1]
  %1382 = vst.msk [vmem:[%s2 + $0xe3] sm:$0x1] %vm19, %v1380
  %1383 = vst.msk [vmem:[%s2 + $0x1e3] sm:$0x1] %vm19, %v1381
  %s1384 = sld [smem:[#allocation3 + $0xe4]]
  %s1385 = scalar_lea.vmem %s1, %s1384
  %v1386 = vld [vmem:[%s1385] sm:$0x1]
  %v1387 = vld [vmem:[%s1385 + $0x13a0] sm:$0x1]
  %1388 = vst.msk [vmem:[%s2 + $0xe4] sm:$0x1] %vm19, %v1386
  %1389 = vst.msk [vmem:[%s2 + $0x1e4] sm:$0x1] %vm19, %v1387
  %s1390 = sld [smem:[#allocation3 + $0xe5]]
  %s1391 = scalar_lea.vmem %s1, %s1390
  %v1392 = vld [vmem:[%s1391] sm:$0x1]
  %v1393 = vld [vmem:[%s1391 + $0x13a0] sm:$0x1]
  %1394 = vst.msk [vmem:[%s2 + $0xe5] sm:$0x1] %vm19, %v1392
  %1395 = vst.msk [vmem:[%s2 + $0x1e5] sm:$0x1] %vm19, %v1393
  %s1396 = sld [smem:[#allocation3 + $0xe6]]
  %s1397 = scalar_lea.vmem %s1, %s1396
  %v1398 = vld [vmem:[%s1397] sm:$0x1]
  %v1399 = vld [vmem:[%s1397 + $0x13a0] sm:$0x1]
  %1400 = vst.msk [vmem:[%s2 + $0xe6] sm:$0x1] %vm19, %v1398
  %1401 = vst.msk [vmem:[%s2 + $0x1e6] sm:$0x1] %vm19, %v1399
  %s1402 = sld [smem:[#allocation3 + $0xe7]]
  %s1403 = scalar_lea.vmem %s1, %s1402
  %v1404 = vld [vmem:[%s1403] sm:$0x1]
  %v1405 = vld [vmem:[%s1403 + $0x13a0] sm:$0x1]
  %1406 = vst.msk [vmem:[%s2 + $0xe7] sm:$0x1] %vm19, %v1404
  %1407 = vst.msk [vmem:[%s2 + $0x1e7] sm:$0x1] %vm19, %v1405
  %s1408 = sld [smem:[#allocation3 + $0xe8]]
  %s1409 = scalar_lea.vmem %s1, %s1408
  %v1410 = vld [vmem:[%s1409] sm:$0x1]
  %v1411 = vld [vmem:[%s1409 + $0x13a0] sm:$0x1]
  %1412 = vst.msk [vmem:[%s2 + $0xe8] sm:$0x1] %vm19, %v1410
  %1413 = vst.msk [vmem:[%s2 + $0x1e8] sm:$0x1] %vm19, %v1411
  %s1414 = sld [smem:[#allocation3 + $0xe9]]
  %s1415 = scalar_lea.vmem %s1, %s1414
  %v1416 = vld [vmem:[%s1415] sm:$0x1]
  %v1417 = vld [vmem:[%s1415 + $0x13a0] sm:$0x1]
  %1418 = vst.msk [vmem:[%s2 + $0xe9] sm:$0x1] %vm19, %v1416
  %1419 = vst.msk [vmem:[%s2 + $0x1e9] sm:$0x1] %vm19, %v1417
  %s1420 = sld [smem:[#allocation3 + $0xea]]
  %s1421 = scalar_lea.vmem %s1, %s1420
  %v1422 = vld [vmem:[%s1421] sm:$0x1]
  %v1423 = vld [vmem:[%s1421 + $0x13a0] sm:$0x1]
  %1424 = vst.msk [vmem:[%s2 + $0xea] sm:$0x1] %vm19, %v1422
  %1425 = vst.msk [vmem:[%s2 + $0x1ea] sm:$0x1] %vm19, %v1423
  %s1426 = sld [smem:[#allocation3 + $0xeb]]
  %s1427 = scalar_lea.vmem %s1, %s1426
  %v1428 = vld [vmem:[%s1427] sm:$0x1]
  %v1429 = vld [vmem:[%s1427 + $0x13a0] sm:$0x1]
  %1430 = vst.msk [vmem:[%s2 + $0xeb] sm:$0x1] %vm19, %v1428
  %1431 = vst.msk [vmem:[%s2 + $0x1eb] sm:$0x1] %vm19, %v1429
  %s1432 = sld [smem:[#allocation3 + $0xec]]
  %s1433 = scalar_lea.vmem %s1, %s1432
  %v1434 = vld [vmem:[%s1433] sm:$0x1]
  %v1435 = vld [vmem:[%s1433 + $0x13a0] sm:$0x1]
  %1436 = vst.msk [vmem:[%s2 + $0xec] sm:$0x1] %vm19, %v1434
  %1437 = vst.msk [vmem:[%s2 + $0x1ec] sm:$0x1] %vm19, %v1435
  %s1438 = sld [smem:[#allocation3 + $0xed]]
  %s1439 = scalar_lea.vmem %s1, %s1438
  %v1440 = vld [vmem:[%s1439] sm:$0x1]
  %v1441 = vld [vmem:[%s1439 + $0x13a0] sm:$0x1]
  %1442 = vst.msk [vmem:[%s2 + $0xed] sm:$0x1] %vm19, %v1440
  %1443 = vst.msk [vmem:[%s2 + $0x1ed] sm:$0x1] %vm19, %v1441
  %s1444 = sld [smem:[#allocation3 + $0xee]]
  %s1445 = scalar_lea.vmem %s1, %s1444
  %v1446 = vld [vmem:[%s1445] sm:$0x1]
  %v1447 = vld [vmem:[%s1445 + $0x13a0] sm:$0x1]
  %1448 = vst.msk [vmem:[%s2 + $0xee] sm:$0x1] %vm19, %v1446
  %1449 = vst.msk [vmem:[%s2 + $0x1ee] sm:$0x1] %vm19, %v1447
  %s1450 = sld [smem:[#allocation3 + $0xef]]
  %s1451 = scalar_lea.vmem %s1, %s1450
  %v1452 = vld [vmem:[%s1451] sm:$0x1]
  %v1453 = vld [vmem:[%s1451 + $0x13a0] sm:$0x1]
  %1454 = vst.msk [vmem:[%s2 + $0xef] sm:$0x1] %vm19, %v1452
  %1455 = vst.msk [vmem:[%s2 + $0x1ef] sm:$0x1] %vm19, %v1453
  %s1456 = sld [smem:[#allocation3 + $0xf0]]
  %s1457 = scalar_lea.vmem %s1, %s1456
  %v1458 = vld [vmem:[%s1457] sm:$0x1]
  %v1459 = vld [vmem:[%s1457 + $0x13a0] sm:$0x1]
  %1460 = vst.msk [vmem:[%s2 + $0xf0] sm:$0x1] %vm19, %v1458
  %1461 = vst.msk [vmem:[%s2 + $0x1f0] sm:$0x1] %vm19, %v1459
  %s1462 = sld [smem:[#allocation3 + $0xf1]]
  %s1463 = scalar_lea.vmem %s1, %s1462
  %v1464 = vld [vmem:[%s1463] sm:$0x1]
  %v1465 = vld [vmem:[%s1463 + $0x13a0] sm:$0x1]
  %1466 = vst.msk [vmem:[%s2 + $0xf1] sm:$0x1] %vm19, %v1464
  %1467 = vst.msk [vmem:[%s2 + $0x1f1] sm:$0x1] %vm19, %v1465
  %s1468 = sld [smem:[#allocation3 + $0xf2]]
  %s1469 = scalar_lea.vmem %s1, %s1468
  %v1470 = vld [vmem:[%s1469] sm:$0x1]
  %v1471 = vld [vmem:[%s1469 + $0x13a0] sm:$0x1]
  %1472 = vst.msk [vmem:[%s2 + $0xf2] sm:$0x1] %vm19, %v1470
  %1473 = vst.msk [vmem:[%s2 + $0x1f2] sm:$0x1] %vm19, %v1471
  %s1474 = sld [smem:[#allocation3 + $0xf3]]
  %s1475 = scalar_lea.vmem %s1, %s1474
  %v1476 = vld [vmem:[%s1475] sm:$0x1]
  %v1477 = vld [vmem:[%s1475 + $0x13a0] sm:$0x1]
  %1478 = vst.msk [vmem:[%s2 + $0xf3] sm:$0x1] %vm19, %v1476
  %1479 = vst.msk [vmem:[%s2 + $0x1f3] sm:$0x1] %vm19, %v1477
  %s1480 = sld [smem:[#allocation3 + $0xf4]]
  %s1481 = scalar_lea.vmem %s1, %s1480
  %v1482 = vld [vmem:[%s1481] sm:$0x1]
  %v1483 = vld [vmem:[%s1481 + $0x13a0] sm:$0x1]
  %1484 = vst.msk [vmem:[%s2 + $0xf4] sm:$0x1] %vm19, %v1482
  %1485 = vst.msk [vmem:[%s2 + $0x1f4] sm:$0x1] %vm19, %v1483
  %s1486 = sld [smem:[#allocation3 + $0xf5]]
  %s1487 = scalar_lea.vmem %s1, %s1486
  %v1488 = vld [vmem:[%s1487] sm:$0x1]
  %v1489 = vld [vmem:[%s1487 + $0x13a0] sm:$0x1]
  %1490 = vst.msk [vmem:[%s2 + $0xf5] sm:$0x1] %vm19, %v1488
  %1491 = vst.msk [vmem:[%s2 + $0x1f5] sm:$0x1] %vm19, %v1489
  %s1492 = sld [smem:[#allocation3 + $0xf6]]
  %s1493 = scalar_lea.vmem %s1, %s1492
  %v1494 = vld [vmem:[%s1493] sm:$0x1]
  %v1495 = vld [vmem:[%s1493 + $0x13a0] sm:$0x1]
  %1496 = vst.msk [vmem:[%s2 + $0xf6] sm:$0x1] %vm19, %v1494
  %1497 = vst.msk [vmem:[%s2 + $0x1f6] sm:$0x1] %vm19, %v1495
  %s1498 = sld [smem:[#allocation3 + $0xf7]]
  %s1499 = scalar_lea.vmem %s1, %s1498
  %v1500 = vld [vmem:[%s1499] sm:$0x1]
  %v1501 = vld [vmem:[%s1499 + $0x13a0] sm:$0x1]
  %1502 = vst.msk [vmem:[%s2 + $0xf7] sm:$0x1] %vm19, %v1500
  %1503 = vst.msk [vmem:[%s2 + $0x1f7] sm:$0x1] %vm19, %v1501
  %s1504 = sld [smem:[#allocation3 + $0xf8]]
  %s1505 = scalar_lea.vmem %s1, %s1504
  %v1506 = vld [vmem:[%s1505] sm:$0x1]
  %v1507 = vld [vmem:[%s1505 + $0x13a0] sm:$0x1]
  %1508 = vst.msk [vmem:[%s2 + $0xf8] sm:$0x1] %vm19, %v1506
  %1509 = vst.msk [vmem:[%s2 + $0x1f8] sm:$0x1] %vm19, %v1507
  %s1510 = sld [smem:[#allocation3 + $0xf9]]
  %s1511 = scalar_lea.vmem %s1, %s1510
  %v1512 = vld [vmem:[%s1511] sm:$0x1]
  %v1513 = vld [vmem:[%s1511 + $0x13a0] sm:$0x1]
  %1514 = vst.msk [vmem:[%s2 + $0xf9] sm:$0x1] %vm19, %v1512
  %1515 = vst.msk [vmem:[%s2 + $0x1f9] sm:$0x1] %vm19, %v1513
  %s1516 = sld [smem:[#allocation3 + $0xfa]]
  %s1517 = scalar_lea.vmem %s1, %s1516
  %v1518 = vld [vmem:[%s1517] sm:$0x1]
  %v1519 = vld [vmem:[%s1517 + $0x13a0] sm:$0x1]
  %1520 = vst.msk [vmem:[%s2 + $0xfa] sm:$0x1] %vm19, %v1518
  %1521 = vst.msk [vmem:[%s2 + $0x1fa] sm:$0x1] %vm19, %v1519
  %s1522 = sld [smem:[#allocation3 + $0xfb]]
  %s1523 = scalar_lea.vmem %s1, %s1522
  %v1524 = vld [vmem:[%s1523] sm:$0x1]
  %v1525 = vld [vmem:[%s1523 + $0x13a0] sm:$0x1]
  %1526 = vst.msk [vmem:[%s2 + $0xfb] sm:$0x1] %vm19, %v1524
  %1527 = vst.msk [vmem:[%s2 + $0x1fb] sm:$0x1] %vm19, %v1525
  %s1528 = sld [smem:[#allocation3 + $0xfc]]
  %s1529 = scalar_lea.vmem %s1, %s1528
  %v1530 = vld [vmem:[%s1529] sm:$0x1]
  %v1531 = vld [vmem:[%s1529 + $0x13a0] sm:$0x1]
  %1532 = vst.msk [vmem:[%s2 + $0xfc] sm:$0x1] %vm19, %v1530
  %1533 = vst.msk [vmem:[%s2 + $0x1fc] sm:$0x1] %vm19, %v1531
  %s1534 = sld [smem:[#allocation3 + $0xfd]]
  %s1535 = scalar_lea.vmem %s1, %s1534
  %v1536 = vld [vmem:[%s1535] sm:$0x1]
  %v1537 = vld [vmem:[%s1535 + $0x13a0] sm:$0x1]
  %1538 = vst.msk [vmem:[%s2 + $0xfd] sm:$0x1] %vm19, %v1536
  %1539 = vst.msk [vmem:[%s2 + $0x1fd] sm:$0x1] %vm19, %v1537
  %s1540 = sld [smem:[#allocation3 + $0xfe]]
  %s1541 = scalar_lea.vmem %s1, %s1540
  %v1542 = vld [vmem:[%s1541] sm:$0x1]
  %v1543 = vld [vmem:[%s1541 + $0x13a0] sm:$0x1]
  %1544 = vst.msk [vmem:[%s2 + $0xfe] sm:$0x1] %vm19, %v1542
  %1545 = vst.msk [vmem:[%s2 + $0x1fe] sm:$0x1] %vm19, %v1543
  %s1546 = sld [smem:[#allocation3 + $0xff]]
  %s1547 = scalar_lea.vmem %s1, %s1546
  %v1548 = vld [vmem:[%s1547] sm:$0x1]
  %v1549 = vld [vmem:[%s1547 + $0x13a0] sm:$0x1]
  %1550 = vst.msk [vmem:[%s2 + $0xff] sm:$0x1] %vm19, %v1548
  %1551 = vst.msk [vmem:[%s2 + $0x1ff] sm:$0x1] %vm19, %v1549
  // Predicated region
  $region6: #{tpu_custom_call.1} parent=0 // pred_check
    _
  $region7: #{tpu_custom_call.1} parent=0 // pred_check_branch
    %1553 = sbr.rel (0) target = $region9
  $region8: #{tpu_custom_call.1} parent=0 // pred_region
    _
  $region9: #{tpu_custom_call.1} parent=0 // pred_fallthru
    _
  // Predicated region
  $region10: #{tpu_custom_call.1} parent=0 // pred_check
    _
  $region11: #{tpu_custom_call.1} parent=0 // pred_check_branch
    %1555 = sbr.rel (0) target = $region13
  $region12: #{tpu_custom_call.1} parent=0 // pred_region
    _
  $region13: #{tpu_custom_call.1} parent=0 // pred_fallthru
    _

</llo_original>
